<compile_context>
chip_gen: v5e
topology: v5e:2x2
jax: 0.10.0
libtpu: 0.0.40
codegen_flags: <defaults>
</compile_context>

<pallas_src>
import functools

import numpy as np
import jax
import jax.numpy as jnp
from jax import lax
from jax.experimental import pallas as pl
from jax.experimental.pallas import tpu as pltpu

# ---------------- synthetic config (mirrors config.ood_scoring.*) -----------
STATE_DIM = 8               # state_dim
N_COMPONENTS = 4            # made_components
GAUSSIAN_MIN_SCALE = 1e-3   # gaussian_min_scale
MASK_EMBED_LAYERS = 2       # mask_embed_layers
MASK_EMBED_DIM = 16         # mask_embed_dim
MADE_RESIDUAL_BLOCKS = 2    # made_residual_blocks
MADE_HIDDEN_DIM = 32        # made_hidden_dim
CONV_HIDDEN_CH = 16         # internal ConvNet channel width (assumed)


# =============================================================================
# Pallas kernel 1: 3x3 / stride-2 / pad-1 conv + bias + relu  (one batch elem
# per program; input is the padded, parity-split (space-to-depth) image so all
# 9 taps become unstrided slices -> dots; no im2col materialization).
# =============================================================================
def _conv3x3_s2_kernel(xs_ref, w_ref, b_ref, o_ref, *, ho_n, wo_n):
    # xs_ref: (4, Hq, Wq, Cin)   parity grids, xs[pi*2+pj, r, s] = xpad[2r+pi, 2s+pj]
    # w_ref : (9, Cin, Cout)     tap (di, dj) -> row di*3+dj
    # b_ref : (1, Cout)
    # o_ref : (ho_n*wo_n, Cout)
    cin = w_ref.shape[1]
    cout = w_ref.shape[2]
    bias = b_ref[...]
    # NOTE: ho_n is small (<=8 here) so a static unrolled loop is fine; for large
    # images this loop would become another grid axis.
    for ho in range(ho_n):
        acc = jnp.zeros((wo_n, cout), jnp.float32)
        for di in range(3):
            pi, qi = di % 2, di // 2
            for dj in range(3):
                pj, qj = dj % 2, dj // 2
                patch = xs_ref[pi * 2 + pj, ho + qi, qj:qj + wo_n, :]   # (Wo, Cin)
                w_dd = w_ref[di * 3 + dj]                                # (Cin, Cout)
                if cin == 1:
                    # outer-product tap: pure VPU broadcast multiply
                    acc = acc + patch * w_dd
                else:
                    acc = acc + jnp.dot(patch, w_dd,
                                        preferred_element_type=jnp.float32)
        o_ref[ho * wo_n:(ho + 1) * wo_n, :] = jnp.maximum(acc + bias, 0.0)


def conv3x3_s2_relu(x_nhwc, w, bias):
    bsz, h, wdt, cin = x_nhwc.shape
    cout = w.shape[-1]
    assert h % 2 == 0 and wdt % 2 == 0
    ho, wo = h // 2, wdt // 2
    hq, wq = ho + 1, wo + 1
    # pad=1 then space-to-depth parity split: pure layout plumbing, ~1x HBM traffic
    xp = jnp.pad(x_nhwc, ((0, 0), (1, 1), (1, 1), (0, 0)))
    xs = (xp.reshape(bsz, hq, 2, wq, 2, cin)
            .transpose(0, 2, 4, 1, 3, 5)
            .reshape(bsz, 4, hq, wq, cin))
    w9 = w.reshape(9, cin, cout)
    b2 = bias.reshape(1, cout)

    kernel = functools.partial(_conv3x3_s2_kernel, ho_n=ho, wo_n=wo)
    out = pl.pallas_call(
        kernel,
        out_shape=jax.ShapeDtypeStruct((bsz, ho * wo, cout), jnp.float32),
        grid=(bsz,),
        in_specs=[
            pl.BlockSpec((None, 4, hq, wq, cin), lambda i: (i, 0, 0, 0, 0)),
            pl.BlockSpec((9, cin, cout), lambda i: (0, 0, 0)),
            pl.BlockSpec((1, cout), lambda i: (0, 0)),
        ],
        out_specs=pl.BlockSpec((None, ho * wo, cout), lambda i: (i, 0, 0)),
        compiler_params=pltpu.CompilerParams(
            dimension_semantics=("parallel",)),
    )(xs, w9, b2)
    return out.reshape(bsz, ho, wo, cout)


# =============================================================================
# Pallas kernel 2: fused global-average-pool + embed linear + ResidualMADE
# forward + GMM log-prob (all weights packed into 3 refs).
# =============================================================================
def _tail_kernel(state_ref, y_ref, wp_ref, bp_ref, wg_ref, o_ref, *,
                 s2, c_feat, e_dim, d_dim, h_dim, n_blocks, k_mix, min_scale):
    # ---- global average pool over the flattened spatial axis ---------------
    feat = jnp.sum(y_ref[...], axis=1) * (1.0 / s2)          # (TB, C)

    # ---- static row offsets inside the packed weight buffer ----------------
    o_fc = 0
    o_in = o_fc + c_feat
    o_cond = o_in + d_dim
    o_blk = o_cond + e_dim

    # ---- mask-embed linear ---------------------------------------------------
    fc_w = wp_ref[o_fc:o_fc + c_feat, 0:e_dim]                # (C, E)
    fc_b = bp_ref[0:1, 0:e_dim]                               # (1, E)
    embed = jnp.dot(feat, fc_w, preferred_element_type=jnp.float32) + fc_b

    # ---- ResidualMADE (masks already baked into the packed weights) ---------
    state = state_ref[...]                                    # (TB, D)
    h = (jnp.dot(state, wp_ref[o_in:o_in + d_dim, :],
                 preferred_element_type=jnp.float32)
         + jnp.dot(embed, wp_ref[o_cond:o_cond + e_dim, :],
                   preferred_element_type=jnp.float32)
         + bp_ref[1:2, :])
    for blk in range(n_blocks):
        oa = o_blk + 2 * blk * h_dim
        ob = oa + h_dim
        t = jnp.maximum(h, 0.0)
        t = jnp.dot(t, wp_ref[oa:oa + h_dim, :],
                    preferred_element_type=jnp.float32) + bp_ref[2 + 2 * blk:3 + 2 * blk, :]
        t = jnp.maximum(t, 0.0)
        t = jnp.dot(t, wp_ref[ob:ob + h_dim, :],
                    preferred_element_type=jnp.float32) + bp_ref[3 + 2 * blk:4 + 2 * blk, :]
        h = h + t
    h = jnp.maximum(h, 0.0)

    # ---- ONE dot for all mixture heads ([logits|locs|raw], K-major columns) -
    g = (jnp.dot(h, wg_ref[0:h_dim, :], preferred_element_type=jnp.float32)
         + wg_ref[h_dim:h_dim + 1, :])                        # (TB, 3*K*D)

    kd = k_mix * d_dim
    logits = g[:, 0:kd]
    locs = g[:, kd:2 * kd]
    raw = g[:, 2 * kd:3 * kd]

    # stable softplus + min scale, computed full width (TB, K*D)
    sc = min_scale + (jnp.maximum(raw, 0.0)
                      + jnp.log(1.0 + jnp.exp(-jnp.abs(raw))))
    inv = pl.reciprocal(sc)                                   # EUP reciprocal
    log_sc = jnp.log(sc)
    log2pi = jnp.float32(np.log(2.0 * np.pi))

    # logsumexp over K components: K-major packing => K static lane slices,
    # elementwise max / exp / sum (no per-dimension loop, no tiny reductions).
    lg_k, pre_k = [], []
    for k in range(k_mix):
        sl = slice(k * d_dim, (k + 1) * d_dim)
        z = (state - locs[:, sl]) * inv[:, sl]
        lg_k.append(logits[:, sl])
        pre_k.append(logits[:, sl] - 0.5 * z * z - log_sc[:, sl] - 0.5 * log2pi)
    m_w = lg_k[0]
    m_s = pre_k[0]
    for k in range(1, k_mix):
        m_w = jnp.maximum(m_w, lg_k[k])
        m_s = jnp.maximum(m_s, pre_k[k])
    sum_w = jnp.zeros_like(m_w)
    sum_s = jnp.zeros_like(m_s)
    for k in range(k_mix):
        sum_w = sum_w + jnp.exp(lg_k[k] - m_w)
        sum_s = sum_s + jnp.exp(pre_k[k] - m_s)
    # logsumexp_k(logits + lognorm) - logsumexp_k(logits) == logsumexp_k(logw + lognorm)
    mix = (m_s + jnp.log(sum_s)) - (m_w + jnp.log(sum_w))     # (TB, D)
    o_ref[...] = jnp.sum(mix, axis=-1, keepdims=True)         # (TB, 1)


def _pack_tail_params(params):
    """Pack ~20 tiny MADE/fc weight & bias tensors into 3 concatenated buffers."""
    h, e, c, d, k = (MADE_HIDDEN_DIM, MASK_EMBED_DIM, CONV_HIDDEN_CH,
                     STATE_DIM, N_COMPONENTS)
    # weight rows, all width H (fc_w zero-padded from E to H)
    rows = [jnp.pad(params["fc_w"], ((0, 0), (0, h - e))),
            params["w_in"], params["w_cond"]]
    for blk in params["blocks"]:
        rows += [blk["w_a"], blk["w_b"]]
    wp = jnp.concatenate(rows, axis=0)                        # (C+D+E+2*nb*H, H)

    b_rows = [jnp.pad(params["fc_b"], (0, h - e))[None, :],
              (params["b_in"] + params["b_cond"])[None, :]]
    for blk in params["blocks"]:
        b_rows += [blk["b_a"][None, :], blk["b_b"][None, :]]
    bp = jnp.concatenate(b_rows, axis=0)                      # (2+2*nb, H)

    # regroup the masked output head K-major: column k*D+d <- (d, head, k)
    w_r = params["w_out"].reshape(h, d, 3 * k)
    b_r = params["b_out"].reshape(d, 3 * k)

    def km_w(a):   # (H, D, K) -> (H, K*D)
        return jnp.transpose(a, (0, 2, 1)).reshape(h, k * d)

    def km_b(a):   # (D, K) -> (K*D,)
        return jnp.transpose(a, (1, 0)).reshape(k * d)

    w_gmm = jnp.concatenate(
        [km_w(w_r[:, :, :k]), km_w(w_r[:, :, k:2 * k]), km_w(w_r[:, :, 2 * k:])],
        axis=1)
    b_gmm = jnp.concatenate(
        [km_b(b_r[:, :k]), km_b(b_r[:, k:2 * k]), km_b(b_r[:, 2 * k:])], axis=0)
    wg = jnp.concatenate([w_gmm, b_gmm[None, :]], axis=0)     # (H+1, 3*K*D)
    return wp, bp, wg


def tail_forward(state, conv_feat, params):
    # conv_feat: (B, S2, C) last conv-layer activations (spatial flattened)
    bsz = state.shape[0]
    s2 = conv_feat.shape[1]
    wp, bp, wg = _pack_tail_params(params)
    kernel = functools.partial(
        _tail_kernel, s2=s2, c_feat=CONV_HIDDEN_CH, e_dim=MASK_EMBED_DIM,
        d_dim=STATE_DIM, h_dim=MADE_HIDDEN_DIM, n_blocks=len(params["blocks"]),
        k_mix=N_COMPONENTS, min_scale=GAUSSIAN_MIN_SCALE)
    tb = bsz   # whole (small) batch per program; becomes a real tile for large B
    out = pl.pallas_call(
        kernel,
        out_shape=jax.ShapeDtypeStruct((bsz, 1), jnp.float32),
        grid=(bsz // tb,),
        in_specs=[
            pl.BlockSpec((tb, STATE_DIM), lambda i: (i, 0)),
            pl.BlockSpec((tb, s2, CONV_HIDDEN_CH), lambda i: (i, 0, 0)),
            pl.BlockSpec(wp.shape, lambda i: (0, 0)),
            pl.BlockSpec(bp.shape, lambda i: (0, 0)),
            pl.BlockSpec(wg.shape, lambda i: (0, 0)),
        ],
        out_specs=pl.BlockSpec((tb, 1), lambda i: (i, 0)),
        compiler_params=pltpu.CompilerParams(
            dimension_semantics=("parallel",)),
    )(state, conv_feat, wp, bp, wg)
    return out[:, 0]


def dose_forward(state, mask_nchw, params):
    x = jnp.transpose(mask_nchw, (0, 2, 3, 1))   # NCHW -> NHWC (layout plumbing)
    for (w, b) in params["conv"]:
        x = conv3x3_s2_relu(x, w, b)
    conv_feat = x.reshape(x.shape[0], x.shape[1] * x.shape[2], x.shape[3])
    return tail_forward(state, conv_feat, params)


# =============================================================================
# deterministic parameter init (MADE masks baked into weights)
# =============================================================================
def init_params(key):
    keys = iter(jax.random.split(key, 64))

    def w_init(shape, fan_in):
        return (jax.random.normal(next(keys), shape, jnp.float32)
                / np.sqrt(float(fan_in)))

    d, h, k = STATE_DIM, MADE_HIDDEN_DIM, N_COMPONENTS
    in_deg = np.arange(1, d + 1)
    hid_deg = (np.arange(h) % (d - 1)) + 1
    out_deg = np.repeat(np.arange(1, d + 1), 3 * k)
    mask_in = (hid_deg[None, :] >= in_deg[:, None]).astype(np.float32)     # (D,H)
    mask_hh = (hid_deg[None, :] >= hid_deg[:, None]).astype(np.float32)    # (H,H)
    mask_out = (out_deg[None, :] > hid_deg[:, None]).astype(np.float32)    # (H,D*3K)

    params = {}
    conv = []
    in_c = 1
    for _ in range(MASK_EMBED_LAYERS):
        w = w_init((3, 3, in_c, CONV_HIDDEN_CH), 9 * in_c)
        b = jnp.zeros((CONV_HIDDEN_CH,), jnp.float32)
        conv.append((w, b))
        in_c = CONV_HIDDEN_CH
    params["conv"] = conv
    params["fc_w"] = w_init((CONV_HIDDEN_CH, MASK_EMBED_DIM), CONV_HIDDEN_CH)
    params["fc_b"] = jnp.zeros((MASK_EMBED_DIM,), jnp.float32)

    params["w_in"] = w_init((d, h), d) * jnp.asarray(mask_in)
    params["b_in"] = jnp.zeros((h,), jnp.float32)
    params["w_cond"] = w_init((MASK_EMBED_DIM, h), MASK_EMBED_DIM)
    params["b_cond"] = jnp.zeros((h,), jnp.float32)
    blocks = []
    for _ in range(MADE_RESIDUAL_BLOCKS):
        blocks.append({
            "w_a": w_init((h, h), h) * jnp.asarray(mask_hh),
            "b_a": jnp.zeros((h,), jnp.float32),
            "w_b": w_init((h, h), h) * jnp.asarray(mask_hh),
            "b_b": jnp.zeros((h,), jnp.float32),
        })
    params["blocks"] = blocks
    params["w_out"] = w_init((h, d * 3 * k), h) * jnp.asarray(mask_out)
    params["b_out"] = jnp.zeros((d * 3 * k,), jnp.float32)
    return params


# =============================================================================
# pure-JAX reference (mirrors the PyTorch forward)
# =============================================================================
def ref_forward(state, mask_nchw, params):
    x = jnp.transpose(mask_nchw, (0, 2, 3, 1))
    for (w, b) in params["conv"]:
        x = lax.conv_general_dilated(
            x, w, window_strides=(2, 2), padding=((1, 1), (1, 1)),
            dimension_numbers=("NHWC", "HWIO", "NHWC"))
        x = jax.nn.relu(x + b)
    feat = jnp.mean(x, axis=(1, 2))
    embed = feat @ params["fc_w"] + params["fc_b"]

    h = (state @ params["w_in"] + params["b_in"]
         + embed @ params["w_cond"] + params["b_cond"])
    for blk in params["blocks"]:
        t = jax.nn.relu(h)
        t = t @ blk["w_a"] + blk["b_a"]
        t = jax.nn.relu(t)
        t = t @ blk["w_b"] + blk["b_b"]
        h = h + t
    h = jax.nn.relu(h)
    made_out = h @ params["w_out"] + params["b_out"]
    made_out = made_out.reshape(-1, STATE_DIM, 3 * N_COMPONENTS)
    logits = made_out[..., :N_COMPONENTS]
    locs = made_out[..., N_COMPONENTS:2 * N_COMPONENTS]
    scales = GAUSSIAN_MIN_SCALE + jax.nn.softplus(made_out[..., 2 * N_COMPONENTS:])
    logw = jax.nn.log_softmax(logits, axis=-1)
    z = (state[..., None] - locs) / scales
    lognorm = -0.5 * z * z - jnp.log(scales) - 0.5 * jnp.log(2.0 * jnp.pi)
    return jax.scipy.special.logsumexp(logw + lognorm, axis=-1).sum(axis=-1)


if __name__ == "__main__":
    key = jax.random.PRNGKey(0)
    kp, ks, kmask = jax.random.split(key, 3)
    params = init_params(kp)

    batch = 2
    state = jax.random.normal(ks, (batch, STATE_DIM), jnp.float32)
    mask = (jax.random.uniform(kmask, (batch, 1, 16, 16)) > 0.5).astype(jnp.float32)

    fwd = jax.jit(dose_forward)
    logp = jax.block_until_ready(fwd(state, mask, params))

    ref = ref_forward(state, mask, params)
    # default (non-'highest') MXU matmul precision per perf review -> 1e-2 tolerance
    np.testing.assert_allclose(np.asarray(logp), np.asarray(ref),
                               rtol=1e-2, atol=1e-2)
    print("KERNEL_OK")
</pallas_src>

<mosaic_0001>
module attributes {stable_mosaic.version = 11 : i64} {
  func.func @_conv3x3_s2_kernel(%arg0: i32, %arg1: memref<1x4x9x9x1xf32, #tpu.memory_space<vmem>>, %arg2: memref<9x1x16xf32, #tpu.memory_space<vmem>>, %arg3: memref<1x16xf32, #tpu.memory_space<vmem>>, %arg4: memref<1x64x16xf32, #tpu.memory_space<vmem>>) attributes {dimension_semantics = [#tpu.dimension_semantics<parallel>], iteration_bounds = array<i64: 2>, scalar_prefetch = 0 : i64, scratch_operands = 0 : i64, tpu.core_type = #tpu.core_type<tc>, window_params = [{transform_indices = @transform_0, window_bounds = array<i64: 1, 4, 9, 9, 1>}, {pipeline_mode = #tpu.pipeline_mode<synchronous>, transform_indices = @transform_1, window_bounds = array<i64: 9, 1, 16>}, {pipeline_mode = #tpu.pipeline_mode<synchronous>, transform_indices = @transform_2, window_bounds = array<i64: 1, 16>}, {transform_indices = @transform_3, window_bounds = array<i64: 1, 64, 16>}]} {
    %c0 = arith.constant 0 : index
    %c0_0 = arith.constant 0 : index
    %0 = vector.load %arg3[%c0, %c0_0] : memref<1x16xf32, #tpu.memory_space<vmem>>, vector<1x16xf32>
    %cst = arith.constant 0.000000e+00 : f32
    %1 = vector.broadcast %cst : f32 to vector<8x16xf32>
    %c0_1 = arith.constant 0 : index
    %c0_2 = arith.constant 0 : index
    %c0_3 = arith.constant 0 : index
    %c0_4 = arith.constant 0 : index
    %c0_5 = arith.constant 0 : index
    %2 = vector.load %arg1[%c0_1, %c0_2, %c0_3, %c0_4, %c0_5] : memref<1x4x9x9x1xf32, #tpu.memory_space<vmem>>, vector<1x1x1x8x1xf32>
    %3 = vector.shape_cast %2 : vector<1x1x1x8x1xf32> to vector<8x1xf32>
    %c0_6 = arith.constant 0 : index
    %c0_7 = arith.constant 0 : index
    %c0_8 = arith.constant 0 : index
    %4 = vector.load %arg2[%c0_6, %c0_7, %c0_8] : memref<9x1x16xf32, #tpu.memory_space<vmem>>, vector<1x1x16xf32>
    %5 = vector.shape_cast %4 : vector<1x1x16xf32> to vector<1x16xf32>
    %6 = vector.broadcast %3 : vector<8x1xf32> to vector<8x16xf32>
    %7 = vector.broadcast %5 : vector<1x16xf32> to vector<8x16xf32>
    %8 = arith.mulf %6, %7 : vector<8x16xf32>
    %9 = arith.addf %1, %8 : vector<8x16xf32>
    %c0_9 = arith.constant 0 : index
    %c1 = arith.constant 1 : index
    %c0_10 = arith.constant 0 : index
    %c0_11 = arith.constant 0 : index
    %c0_12 = arith.constant 0 : index
    %10 = vector.load %arg1[%c0_9, %c1, %c0_10, %c0_11, %c0_12] : memref<1x4x9x9x1xf32, #tpu.memory_space<vmem>>, vector<1x1x1x8x1xf32>
    %11 = vector.shape_cast %10 : vector<1x1x1x8x1xf32> to vector<8x1xf32>
    %c1_13 = arith.constant 1 : index
    %c0_14 = arith.constant 0 : index
    %c0_15 = arith.constant 0 : index
    %12 = vector.load %arg2[%c1_13, %c0_14, %c0_15] : memref<9x1x16xf32, #tpu.memory_space<vmem>>, vector<1x1x16xf32>
    %13 = vector.shape_cast %12 : vector<1x1x16xf32> to vector<1x16xf32>
    %14 = vector.broadcast %11 : vector<8x1xf32> to vector<8x16xf32>
    %15 = vector.broadcast %13 : vector<1x16xf32> to vector<8x16xf32>
    %16 = arith.mulf %14, %15 : vector<8x16xf32>
    %17 = arith.addf %9, %16 : vector<8x16xf32>
    %c0_16 = arith.constant 0 : index
    %c0_17 = arith.constant 0 : index
    %c0_18 = arith.constant 0 : index
    %c1_19 = arith.constant 1 : index
    %c0_20 = arith.constant 0 : index
    %18 = vector.load %arg1[%c0_16, %c0_17, %c0_18, %c1_19, %c0_20] : memref<1x4x9x9x1xf32, #tpu.memory_space<vmem>>, vector<1x1x1x8x1xf32>
    %19 = vector.shape_cast %18 : vector<1x1x1x8x1xf32> to vector<8x1xf32>
    %c2 = arith.constant 2 : index
    %c0_21 = arith.constant 0 : index
    %c0_22 = arith.constant 0 : index
    %20 = vector.load %arg2[%c2, %c0_21, %c0_22] : memref<9x1x16xf32, #tpu.memory_space<vmem>>, vector<1x1x16xf32>
    %21 = vector.shape_cast %20 : vector<1x1x16xf32> to vector<1x16xf32>
    %22 = vector.broadcast %19 : vector<8x1xf32> to vector<8x16xf32>
    %23 = vector.broadcast %21 : vector<1x16xf32> to vector<8x16xf32>
    %24 = arith.mulf %22, %23 : vector<8x16xf32>
    %25 = arith.addf %17, %24 : vector<8x16xf32>
    %c0_23 = arith.constant 0 : index
    %c2_24 = arith.constant 2 : index
    %c0_25 = arith.constant 0 : index
    %c0_26 = arith.constant 0 : index
    %c0_27 = arith.constant 0 : index
    %26 = vector.load %arg1[%c0_23, %c2_24, %c0_25, %c0_26, %c0_27] : memref<1x4x9x9x1xf32, #tpu.memory_space<vmem>>, vector<1x1x1x8x1xf32>
    %27 = vector.shape_cast %26 : vector<1x1x1x8x1xf32> to vector<8x1xf32>
    %c3 = arith.constant 3 : index
    %c0_28 = arith.constant 0 : index
    %c0_29 = arith.constant 0 : index
    %28 = vector.load %arg2[%c3, %c0_28, %c0_29] : memref<9x1x16xf32, #tpu.memory_space<vmem>>, vector<1x1x16xf32>
    %29 = vector.shape_cast %28 : vector<1x1x16xf32> to vector<1x16xf32>
    %30 = vector.broadcast %27 : vector<8x1xf32> to vector<8x16xf32>
    %31 = vector.broadcast %29 : vector<1x16xf32> to vector<8x16xf32>
    %32 = arith.mulf %30, %31 : vector<8x16xf32>
    %33 = arith.addf %25, %32 : vector<8x16xf32>
    %c0_30 = arith.constant 0 : index
    %c3_31 = arith.constant 3 : index
    %c0_32 = arith.constant 0 : index
    %c0_33 = arith.constant 0 : index
    %c0_34 = arith.constant 0 : index
    %34 = vector.load %arg1[%c0_30, %c3_31, %c0_32, %c0_33, %c0_34] : memref<1x4x9x9x1xf32, #tpu.memory_space<vmem>>, vector<1x1x1x8x1xf32>
    %35 = vector.shape_cast %34 : vector<1x1x1x8x1xf32> to vector<8x1xf32>
    %c4 = arith.constant 4 : index
    %c0_35 = arith.constant 0 : index
    %c0_36 = arith.constant 0 : index
    %36 = vector.load %arg2[%c4, %c0_35, %c0_36] : memref<9x1x16xf32, #tpu.memory_space<vmem>>, vector<1x1x16xf32>
    %37 = vector.shape_cast %36 : vector<1x1x16xf32> to vector<1x16xf32>
    %38 = vector.broadcast %35 : vector<8x1xf32> to vector<8x16xf32>
    %39 = vector.broadcast %37 : vector<1x16xf32> to vector<8x16xf32>
    %40 = arith.mulf %38, %39 : vector<8x16xf32>
    %41 = arith.addf %33, %40 : vector<8x16xf32>
    %c0_37 = arith.constant 0 : index
    %c2_38 = arith.constant 2 : index
    %c0_39 = arith.constant 0 : index
    %c1_40 = arith.constant 1 : index
    %c0_41 = arith.constant 0 : index
    %42 = vector.load %arg1[%c0_37, %c2_38, %c0_39, %c1_40, %c0_41] : memref<1x4x9x9x1xf32, #tpu.memory_space<vmem>>, vector<1x1x1x8x1xf32>
    %43 = vector.shape_cast %42 : vector<1x1x1x8x1xf32> to vector<8x1xf32>
    %c5 = arith.constant 5 : index
    %c0_42 = arith.constant 0 : index
    %c0_43 = arith.constant 0 : index
    %44 = vector.load %arg2[%c5, %c0_42, %c0_43] : memref<9x1x16xf32, #tpu.memory_space<vmem>>, vector<1x1x16xf32>
    %45 = vector.shape_cast %44 : vector<1x1x16xf32> to vector<1x16xf32>
    %46 = vector.broadcast %43 : vector<8x1xf32> to vector<8x16xf32>
    %47 = vector.broadcast %45 : vector<1x16xf32> to vector<8x16xf32>
    %48 = arith.mulf %46, %47 : vector<8x16xf32>
    %49 = arith.addf %41, %48 : vector<8x16xf32>
    %c0_44 = arith.constant 0 : index
    %c0_45 = arith.constant 0 : index
    %c1_46 = arith.constant 1 : index
    %c0_47 = arith.constant 0 : index
    %c0_48 = arith.constant 0 : index
    %50 = vector.load %arg1[%c0_44, %c0_45, %c1_46, %c0_47, %c0_48] : memref<1x4x9x9x1xf32, #tpu.memory_space<vmem>>, vector<1x1x1x8x1xf32>
    %51 = vector.shape_cast %50 : vector<1x1x1x8x1xf32> to vector<8x1xf32>
    %c6 = arith.constant 6 : index
    %c0_49 = arith.constant 0 : index
    %c0_50 = arith.constant 0 : index
    %52 = vector.load %arg2[%c6, %c0_49, %c0_50] : memref<9x1x16xf32, #tpu.memory_space<vmem>>, vector<1x1x16xf32>
    %53 = vector.shape_cast %52 : vector<1x1x16xf32> to vector<1x16xf32>
    %54 = vector.broadcast %51 : vector<8x1xf32> to vector<8x16xf32>
    %55 = vector.broadcast %53 : vector<1x16xf32> to vector<8x16xf32>
    %56 = arith.mulf %54, %55 : vector<8x16xf32>
    %57 = arith.addf %49, %56 : vector<8x16xf32>
    %c0_51 = arith.constant 0 : index
    %c1_52 = arith.constant 1 : index
    %c1_53 = arith.constant 1 : index
    %c0_54 = arith.constant 0 : index
    %c0_55 = arith.constant 0 : index
    %58 = vector.load %arg1[%c0_51, %c1_52, %c1_53, %c0_54, %c0_55] : memref<1x4x9x9x1xf32, #tpu.memory_space<vmem>>, vector<1x1x1x8x1xf32>
    %59 = vector.shape_cast %58 : vector<1x1x1x8x1xf32> to vector<8x1xf32>
    %c7 = arith.constant 7 : index
    %c0_56 = arith.constant 0 : index
    %c0_57 = arith.constant 0 : index
    %60 = vector.load %arg2[%c7, %c0_56, %c0_57] : memref<9x1x16xf32, #tpu.memory_space<vmem>>, vector<1x1x16xf32>
    %61 = vector.shape_cast %60 : vector<1x1x16xf32> to vector<1x16xf32>
    %62 = vector.broadcast %59 : vector<8x1xf32> to vector<8x16xf32>
    %63 = vector.broadcast %61 : vector<1x16xf32> to vector<8x16xf32>
    %64 = arith.mulf %62, %63 : vector<8x16xf32>
    %65 = arith.addf %57, %64 : vector<8x16xf32>
    %c0_58 = arith.constant 0 : index
    %c0_59 = arith.constant 0 : index
    %c1_60 = arith.constant 1 : index
    %c1_61 = arith.constant 1 : index
    %c0_62 = arith.constant 0 : index
    %66 = vector.load %arg1[%c0_58, %c0_59, %c1_60, %c1_61, %c0_62] : memref<1x4x9x9x1xf32, #tpu.memory_space<vmem>>, vector<1x1x1x8x1xf32>
    %67 = vector.shape_cast %66 : vector<1x1x1x8x1xf32> to vector<8x1xf32>
    %c8 = arith.constant 8 : index
    %c0_63 = arith.constant 0 : index
    %c0_64 = arith.constant 0 : index
    %68 = vector.load %arg2[%c8, %c0_63, %c0_64] : memref<9x1x16xf32, #tpu.memory_space<vmem>>, vector<1x1x16xf32>
    %69 = vector.shape_cast %68 : vector<1x1x16xf32> to vector<1x16xf32>
    %70 = vector.broadcast %67 : vector<8x1xf32> to vector<8x16xf32>
    %71 = vector.broadcast %69 : vector<1x16xf32> to vector<8x16xf32>
    %72 = arith.mulf %70, %71 : vector<8x16xf32>
    %73 = arith.addf %65, %72 : vector<8x16xf32>
    %74 = vector.broadcast %0 : vector<1x16xf32> to vector<8x16xf32>
    %75 = arith.addf %73, %74 : vector<8x16xf32>
    %cst_65 = arith.constant 0.000000e+00 : f32
    %76 = vector.broadcast %cst_65 : f32 to vector<8x16xf32>
    %77 = arith.maximumf %75, %76 : vector<8x16xf32>
    %c0_66 = arith.constant 0 : index
    %c0_67 = arith.constant 0 : index
    %c0_68 = arith.constant 0 : index
    %78 = vector.load %arg4[%c0_66, %c0_67, %c0_68] : memref<1x64x16xf32, #tpu.memory_space<vmem>>, vector<1x8x16xf32>
    %79 = vector.shape_cast %78 : vector<1x8x16xf32> to vector<8x16xf32>
    %80 = vector.shape_cast %77 : vector<8x16xf32> to vector<1x8x16xf32>
    tpu.vector_store %arg4[%c0_66, %c0_67, %c0_68], %80 {strides = array<i32>} : memref<1x64x16xf32, #tpu.memory_space<vmem>>, vector<1x8x16xf32>,
    %cst_69 = arith.constant 0.000000e+00 : f32
    %81 = vector.broadcast %cst_69 : f32 to vector<8x16xf32>
    %c0_70 = arith.constant 0 : index
    %c0_71 = arith.constant 0 : index
    %c1_72 = arith.constant 1 : index
    %c0_73 = arith.constant 0 : index
    %c0_74 = arith.constant 0 : index
    %82 = vector.load %arg1[%c0_70, %c0_71, %c1_72, %c0_73, %c0_74] : memref<1x4x9x9x1xf32, #tpu.memory_space<vmem>>, vector<1x1x1x8x1xf32>
    %83 = vector.shape_cast %82 : vector<1x1x1x8x1xf32> to vector<8x1xf32>
    %c0_75 = arith.constant 0 : index
    %c0_76 = arith.constant 0 : index
    %c0_77 = arith.constant 0 : index
    %84 = vector.load %arg2[%c0_75, %c0_76, %c0_77] : memref<9x1x16xf32, #tpu.memory_space<vmem>>, vector<1x1x16xf32>
    %85 = vector.shape_cast %84 : vector<1x1x16xf32> to vector<1x16xf32>
    %86 = vector.broadcast %83 : vector<8x1xf32> to vector<8x16xf32>
    %87 = vector.broadcast %85 : vector<1x16xf32> to vector<8x16xf32>
    %88 = arith.mulf %86, %87 : vector<8x16xf32>
    %89 = arith.addf %81, %88 : vector<8x16xf32>
    %c0_78 = arith.constant 0 : index
    %c1_79 = arith.constant 1 : index
    %c1_80 = arith.constant 1 : index
    %c0_81 = arith.constant 0 : index
    %c0_82 = arith.constant 0 : index
    %90 = vector.load %arg1[%c0_78, %c1_79, %c1_80, %c0_81, %c0_82] : memref<1x4x9x9x1xf32, #tpu.memory_space<vmem>>, vector<1x1x1x8x1xf32>
    %91 = vector.shape_cast %90 : vector<1x1x1x8x1xf32> to vector<8x1xf32>
    %c1_83 = arith.constant 1 : index
    %c0_84 = arith.constant 0 : index
    %c0_85 = arith.constant 0 : index
    %92 = vector.load %arg2[%c1_83, %c0_84, %c0_85] : memref<9x1x16xf32, #tpu.memory_space<vmem>>, vector<1x1x16xf32>
    %93 = vector.shape_cast %92 : vector<1x1x16xf32> to vector<1x16xf32>
    %94 = vector.broadcast %91 : vector<8x1xf32> to vector<8x16xf32>
    %95 = vector.broadcast %93 : vector<1x16xf32> to vector<8x16xf32>
    %96 = arith.mulf %94, %95 : vector<8x16xf32>
    %97 = arith.addf %89, %96 : vector<8x16xf32>
    %c0_86 = arith.constant 0 : index
    %c0_87 = arith.constant 0 : index
    %c1_88 = arith.constant 1 : index
    %c1_89 = arith.constant 1 : index
    %c0_90 = arith.constant 0 : index
    %98 = vector.load %arg1[%c0_86, %c0_87, %c1_88, %c1_89, %c0_90] : memref<1x4x9x9x1xf32, #tpu.memory_space<vmem>>, vector<1x1x1x8x1xf32>
    %99 = vector.shape_cast %98 : vector<1x1x1x8x1xf32> to vector<8x1xf32>
    %c2_91 = arith.constant 2 : index
    %c0_92 = arith.constant 0 : index
    %c0_93 = arith.constant 0 : index
    %100 = vector.load %arg2[%c2_91, %c0_92, %c0_93] : memref<9x1x16xf32, #tpu.memory_space<vmem>>, vector<1x1x16xf32>
    %101 = vector.shape_cast %100 : vector<1x1x16xf32> to vector<1x16xf32>
    %102 = vector.broadcast %99 : vector<8x1xf32> to vector<8x16xf32>
    %103 = vector.broadcast %101 : vector<1x16xf32> to vector<8x16xf32>
    %104 = arith.mulf %102, %103 : vector<8x16xf32>
    %105 = arith.addf %97, %104 : vector<8x16xf32>
    %c0_94 = arith.constant 0 : index
    %c2_95 = arith.constant 2 : index
    %c1_96 = arith.constant 1 : index
    %c0_97 = arith.constant 0 : index
    %c0_98 = arith.constant 0 : index
    %106 = vector.load %arg1[%c0_94, %c2_95, %c1_96, %c0_97, %c0_98] : memref<1x4x9x9x1xf32, #tpu.memory_space<vmem>>, vector<1x1x1x8x1xf32>
    %107 = vector.shape_cast %106 : vector<1x1x1x8x1xf32> to vector<8x1xf32>
    %c3_99 = arith.constant 3 : index
    %c0_100 = arith.constant 0 : index
    %c0_101 = arith.constant 0 : index
    %108 = vector.load %arg2[%c3_99, %c0_100, %c0_101] : memref<9x1x16xf32, #tpu.memory_space<vmem>>, vector<1x1x16xf32>
    %109 = vector.shape_cast %108 : vector<1x1x16xf32> to vector<1x16xf32>
    %110 = vector.broadcast %107 : vector<8x1xf32> to vector<8x16xf32>
    %111 = vector.broadcast %109 : vector<1x16xf32> to vector<8x16xf32>
    %112 = arith.mulf %110, %111 : vector<8x16xf32>
    %113 = arith.addf %105, %112 : vector<8x16xf32>
    %c0_102 = arith.constant 0 : index
    %c3_103 = arith.constant 3 : index
    %c1_104 = arith.constant 1 : index
    %c0_105 = arith.constant 0 : index
    %c0_106 = arith.constant 0 : index
    %114 = vector.load %arg1[%c0_102, %c3_103, %c1_104, %c0_105, %c0_106] : memref<1x4x9x9x1xf32, #tpu.memory_space<vmem>>, vector<1x1x1x8x1xf32>
    %115 = vector.shape_cast %114 : vector<1x1x1x8x1xf32> to vector<8x1xf32>
    %c4_107 = arith.constant 4 : index
    %c0_108 = arith.constant 0 : index
    %c0_109 = arith.constant 0 : index
    %116 = vector.load %arg2[%c4_107, %c0_108, %c0_109] : memref<9x1x16xf32, #tpu.memory_space<vmem>>, vector<1x1x16xf32>
    %117 = vector.shape_cast %116 : vector<1x1x16xf32> to vector<1x16xf32>
    %118 = vector.broadcast %115 : vector<8x1xf32> to vector<8x16xf32>
    %119 = vector.broadcast %117 : vector<1x16xf32> to vector<8x16xf32>
    %120 = arith.mulf %118, %119 : vector<8x16xf32>
    %121 = arith.addf %113, %120 : vector<8x16xf32>
    %c0_110 = arith.constant 0 : index
    %c2_111 = arith.constant 2 : index
    %c1_112 = arith.constant 1 : index
    %c1_113 = arith.constant 1 : index
    %c0_114 = arith.constant 0 : index
    %122 = vector.load %arg1[%c0_110, %c2_111, %c1_112, %c1_113, %c0_114] : memref<1x4x9x9x1xf32, #tpu.memory_space<vmem>>, vector<1x1x1x8x1xf32>
    %123 = vector.shape_cast %122 : vector<1x1x1x8x1xf32> to vector<8x1xf32>
    %c5_115 = arith.constant 5 : index
    %c0_116 = arith.constant 0 : index
    %c0_117 = arith.constant 0 : index
    %124 = vector.load %arg2[%c5_115, %c0_116, %c0_117] : memref<9x1x16xf32, #tpu.memory_space<vmem>>, vector<1x1x16xf32>
    %125 = vector.shape_cast %124 : vector<1x1x16xf32> to vector<1x16xf32>
    %126 = vector.broadcast %123 : vector<8x1xf32> to vector<8x16xf32>
    %127 = vector.broadcast %125 : vector<1x16xf32> to vector<8x16xf32>
    %128 = arith.mulf %126, %127 : vector<8x16xf32>
    %129 = arith.addf %121, %128 : vector<8x16xf32>
    %c0_118 = arith.constant 0 : index
    %c0_119 = arith.constant 0 : index
    %c2_120 = arith.constant 2 : index
    %c0_121 = arith.constant 0 : index
    %c0_122 = arith.constant 0 : index
    %130 = vector.load %arg1[%c0_118, %c0_119, %c2_120, %c0_121, %c0_122] : memref<1x4x9x9x1xf32, #tpu.memory_space<vmem>>, vector<1x1x1x8x1xf32>
    %131 = vector.shape_cast %130 : vector<1x1x1x8x1xf32> to vector<8x1xf32>
    %c6_123 = arith.constant 6 : index
    %c0_124 = arith.constant 0 : index
    %c0_125 = arith.constant 0 : index
    %132 = vector.load %arg2[%c6_123, %c0_124, %c0_125] : memref<9x1x16xf32, #tpu.memory_space<vmem>>, vector<1x1x16xf32>
    %133 = vector.shape_cast %132 : vector<1x1x16xf32> to vector<1x16xf32>
    %134 = vector.broadcast %131 : vector<8x1xf32> to vector<8x16xf32>
    %135 = vector.broadcast %133 : vector<1x16xf32> to vector<8x16xf32>
    %136 = arith.mulf %134, %135 : vector<8x16xf32>
    %137 = arith.addf %129, %136 : vector<8x16xf32>
    %c0_126 = arith.constant 0 : index
    %c1_127 = arith.constant 1 : index
    %c2_128 = arith.constant 2 : index
    %c0_129 = arith.constant 0 : index
    %c0_130 = arith.constant 0 : index
    %138 = vector.load %arg1[%c0_126, %c1_127, %c2_128, %c0_129, %c0_130] : memref<1x4x9x9x1xf32, #tpu.memory_space<vmem>>, vector<1x1x1x8x1xf32>
    %139 = vector.shape_cast %138 : vector<1x1x1x8x1xf32> to vector<8x1xf32>
    %c7_131 = arith.constant 7 : index
    %c0_132 = arith.constant 0 : index
    %c0_133 = arith.constant 0 : index
    %140 = vector.load %arg2[%c7_131, %c0_132, %c0_133] : memref<9x1x16xf32, #tpu.memory_space<vmem>>, vector<1x1x16xf32>
    %141 = vector.shape_cast %140 : vector<1x1x16xf32> to vector<1x16xf32>
    %142 = vector.broadcast %139 : vector<8x1xf32> to vector<8x16xf32>
    %143 = vector.broadcast %141 : vector<1x16xf32> to vector<8x16xf32>
    %144 = arith.mulf %142, %143 : vector<8x16xf32>
    %145 = arith.addf %137, %144 : vector<8x16xf32>
    %c0_134 = arith.constant 0 : index
    %c0_135 = arith.constant 0 : index
    %c2_136 = arith.constant 2 : index
    %c1_137 = arith.constant 1 : index
    %c0_138 = arith.constant 0 : index
    %146 = vector.load %arg1[%c0_134, %c0_135, %c2_136, %c1_137, %c0_138] : memref<1x4x9x9x1xf32, #tpu.memory_space<vmem>>, vector<1x1x1x8x1xf32>
    %147 = vector.shape_cast %146 : vector<1x1x1x8x1xf32> to vector<8x1xf32>
    %c8_139 = arith.constant 8 : index
    %c0_140 = arith.constant 0 : index
    %c0_141 = arith.constant 0 : index
    %148 = vector.load %arg2[%c8_139, %c0_140, %c0_141] : memref<9x1x16xf32, #tpu.memory_space<vmem>>, vector<1x1x16xf32>
    %149 = vector.shape_cast %148 : vector<1x1x16xf32> to vector<1x16xf32>
    %150 = vector.broadcast %147 : vector<8x1xf32> to vector<8x16xf32>
    %151 = vector.broadcast %149 : vector<1x16xf32> to vector<8x16xf32>
    %152 = arith.mulf %150, %151 : vector<8x16xf32>
    %153 = arith.addf %145, %152 : vector<8x16xf32>
    %154 = vector.broadcast %0 : vector<1x16xf32> to vector<8x16xf32>
    %155 = arith.addf %153, %154 : vector<8x16xf32>
    %cst_142 = arith.constant 0.000000e+00 : f32
    %156 = vector.broadcast %cst_142 : f32 to vector<8x16xf32>
    %157 = arith.maximumf %155, %156 : vector<8x16xf32>
    %c0_143 = arith.constant 0 : index
    %c8_144 = arith.constant 8 : index
    %c0_145 = arith.constant 0 : index
    %158 = vector.load %arg4[%c0_143, %c8_144, %c0_145] : memref<1x64x16xf32, #tpu.memory_space<vmem>>, vector<1x8x16xf32>
    %159 = vector.shape_cast %158 : vector<1x8x16xf32> to vector<8x16xf32>
    %160 = vector.shape_cast %157 : vector<8x16xf32> to vector<1x8x16xf32>
    tpu.vector_store %arg4[%c0_143, %c8_144, %c0_145], %160 {strides = array<i32>} : memref<1x64x16xf32, #tpu.memory_space<vmem>>, vector<1x8x16xf32>,
    %cst_146 = arith.constant 0.000000e+00 : f32
    %161 = vector.broadcast %cst_146 : f32 to vector<8x16xf32>
    %c0_147 = arith.constant 0 : index
    %c0_148 = arith.constant 0 : index
    %c2_149 = arith.constant 2 : index
    %c0_150 = arith.constant 0 : index
    %c0_151 = arith.constant 0 : index
    %162 = vector.load %arg1[%c0_147, %c0_148, %c2_149, %c0_150, %c0_151] : memref<1x4x9x9x1xf32, #tpu.memory_space<vmem>>, vector<1x1x1x8x1xf32>
    %163 = vector.shape_cast %162 : vector<1x1x1x8x1xf32> to vector<8x1xf32>
    %c0_152 = arith.constant 0 : index
    %c0_153 = arith.constant 0 : index
    %c0_154 = arith.constant 0 : index
    %164 = vector.load %arg2[%c0_152, %c0_153, %c0_154] : memref<9x1x16xf32, #tpu.memory_space<vmem>>, vector<1x1x16xf32>
    %165 = vector.shape_cast %164 : vector<1x1x16xf32> to vector<1x16xf32>
    %166 = vector.broadcast %163 : vector<8x1xf32> to vector<8x16xf32>
    %167 = vector.broadcast %165 : vector<1x16xf32> to vector<8x16xf32>
    %168 = arith.mulf %166, %167 : vector<8x16xf32>
    %169 = arith.addf %161, %168 : vector<8x16xf32>
    %c0_155 = arith.constant 0 : index
    %c1_156 = arith.constant 1 : index
    %c2_157 = arith.constant 2 : index
    %c0_158 = arith.constant 0 : index
    %c0_159 = arith.constant 0 : index
    %170 = vector.load %arg1[%c0_155, %c1_156, %c2_157, %c0_158, %c0_159] : memref<1x4x9x9x1xf32, #tpu.memory_space<vmem>>, vector<1x1x1x8x1xf32>
    %171 = vector.shape_cast %170 : vector<1x1x1x8x1xf32> to vector<8x1xf32>
    %c1_160 = arith.constant 1 : index
    %c0_161 = arith.constant 0 : index
    %c0_162 = arith.constant 0 : index
    %172 = vector.load %arg2[%c1_160, %c0_161, %c0_162] : memref<9x1x16xf32, #tpu.memory_space<vmem>>, vector<1x1x16xf32>
    %173 = vector.shape_cast %172 : vector<1x1x16xf32> to vector<1x16xf32>
    %174 = vector.broadcast %171 : vector<8x1xf32> to vector<8x16xf32>
    %175 = vector.broadcast %173 : vector<1x16xf32> to vector<8x16xf32>
    %176 = arith.mulf %174, %175 : vector<8x16xf32>
    %177 = arith.addf %169, %176 : vector<8x16xf32>
    %c0_163 = arith.constant 0 : index
    %c0_164 = arith.constant 0 : index
    %c2_165 = arith.constant 2 : index
    %c1_166 = arith.constant 1 : index
    %c0_167 = arith.constant 0 : index
    %178 = vector.load %arg1[%c0_163, %c0_164, %c2_165, %c1_166, %c0_167] : memref<1x4x9x9x1xf32, #tpu.memory_space<vmem>>, vector<1x1x1x8x1xf32>
    %179 = vector.shape_cast %178 : vector<1x1x1x8x1xf32> to vector<8x1xf32>
    %c2_168 = arith.constant 2 : index
    %c0_169 = arith.constant 0 : index
    %c0_170 = arith.constant 0 : index
    %180 = vector.load %arg2[%c2_168, %c0_169, %c0_170] : memref<9x1x16xf32, #tpu.memory_space<vmem>>, vector<1x1x16xf32>
    %181 = vector.shape_cast %180 : vector<1x1x16xf32> to vector<1x16xf32>
    %182 = vector.broadcast %179 : vector<8x1xf32> to vector<8x16xf32>
    %183 = vector.broadcast %181 : vector<1x16xf32> to vector<8x16xf32>
    %184 = arith.mulf %182, %183 : vector<8x16xf32>
    %185 = arith.addf %177, %184 : vector<8x16xf32>
    %c0_171 = arith.constant 0 : index
    %c2_172 = arith.constant 2 : index
    %c2_173 = arith.constant 2 : index
    %c0_174 = arith.constant 0 : index
    %c0_175 = arith.constant 0 : index
    %186 = vector.load %arg1[%c0_171, %c2_172, %c2_173, %c0_174, %c0_175] : memref<1x4x9x9x1xf32, #tpu.memory_space<vmem>>, vector<1x1x1x8x1xf32>
    %187 = vector.shape_cast %186 : vector<1x1x1x8x1xf32> to vector<8x1xf32>
    %c3_176 = arith.constant 3 : index
    %c0_177 = arith.constant 0 : index
    %c0_178 = arith.constant 0 : index
    %188 = vector.load %arg2[%c3_176, %c0_177, %c0_178] : memref<9x1x16xf32, #tpu.memory_space<vmem>>, vector<1x1x16xf32>
    %189 = vector.shape_cast %188 : vector<1x1x16xf32> to vector<1x16xf32>
    %190 = vector.broadcast %187 : vector<8x1xf32> to vector<8x16xf32>
    %191 = vector.broadcast %189 : vector<1x16xf32> to vector<8x16xf32>
    %192 = arith.mulf %190, %191 : vector<8x16xf32>
    %193 = arith.addf %185, %192 : vector<8x16xf32>
    %c0_179 = arith.constant 0 : index
    %c3_180 = arith.constant 3 : index
    %c2_181 = arith.constant 2 : index
    %c0_182 = arith.constant 0 : index
    %c0_183 = arith.constant 0 : index
    %194 = vector.load %arg1[%c0_179, %c3_180, %c2_181, %c0_182, %c0_183] : memref<1x4x9x9x1xf32, #tpu.memory_space<vmem>>, vector<1x1x1x8x1xf32>
    %195 = vector.shape_cast %194 : vector<1x1x1x8x1xf32> to vector<8x1xf32>
    %c4_184 = arith.constant 4 : index
    %c0_185 = arith.constant 0 : index
    %c0_186 = arith.constant 0 : index
    %196 = vector.load %arg2[%c4_184, %c0_185, %c0_186] : memref<9x1x16xf32, #tpu.memory_space<vmem>>, vector<1x1x16xf32>
    %197 = vector.shape_cast %196 : vector<1x1x16xf32> to vector<1x16xf32>
    %198 = vector.broadcast %195 : vector<8x1xf32> to vector<8x16xf32>
    %199 = vector.broadcast %197 : vector<1x16xf32> to vector<8x16xf32>
    %200 = arith.mulf %198, %199 : vector<8x16xf32>
    %201 = arith.addf %193, %200 : vector<8x16xf32>
    %c0_187 = arith.constant 0 : index
    %c2_188 = arith.constant 2 : index
    %c2_189 = arith.constant 2 : index
    %c1_190 = arith.constant 1 : index
    %c0_191 = arith.constant 0 : index
    %202 = vector.load %arg1[%c0_187, %c2_188, %c2_189, %c1_190, %c0_191] : memref<1x4x9x9x1xf32, #tpu.memory_space<vmem>>, vector<1x1x1x8x1xf32>
    %203 = vector.shape_cast %202 : vector<1x1x1x8x1xf32> to vector<8x1xf32>
    %c5_192 = arith.constant 5 : index
    %c0_193 = arith.constant 0 : index
    %c0_194 = arith.constant 0 : index
    %204 = vector.load %arg2[%c5_192, %c0_193, %c0_194] : memref<9x1x16xf32, #tpu.memory_space<vmem>>, vector<1x1x16xf32>
    %205 = vector.shape_cast %204 : vector<1x1x16xf32> to vector<1x16xf32>
    %206 = vector.broadcast %203 : vector<8x1xf32> to vector<8x16xf32>
    %207 = vector.broadcast %205 : vector<1x16xf32> to vector<8x16xf32>
    %208 = arith.mulf %206, %207 : vector<8x16xf32>
    %209 = arith.addf %201, %208 : vector<8x16xf32>
    %c0_195 = arith.constant 0 : index
    %c0_196 = arith.constant 0 : index
    %c3_197 = arith.constant 3 : index
    %c0_198 = arith.constant 0 : index
    %c0_199 = arith.constant 0 : index
    %210 = vector.load %arg1[%c0_195, %c0_196, %c3_197, %c0_198, %c0_199] : memref<1x4x9x9x1xf32, #tpu.memory_space<vmem>>, vector<1x1x1x8x1xf32>
    %211 = vector.shape_cast %210 : vector<1x1x1x8x1xf32> to vector<8x1xf32>
    %c6_200 = arith.constant 6 : index
    %c0_201 = arith.constant 0 : index
    %c0_202 = arith.constant 0 : index
    %212 = vector.load %arg2[%c6_200, %c0_201, %c0_202] : memref<9x1x16xf32, #tpu.memory_space<vmem>>, vector<1x1x16xf32>
    %213 = vector.shape_cast %212 : vector<1x1x16xf32> to vector<1x16xf32>
    %214 = vector.broadcast %211 : vector<8x1xf32> to vector<8x16xf32>
    %215 = vector.broadcast %213 : vector<1x16xf32> to vector<8x16xf32>
    %216 = arith.mulf %214, %215 : vector<8x16xf32>
    %217 = arith.addf %209, %216 : vector<8x16xf32>
    %c0_203 = arith.constant 0 : index
    %c1_204 = arith.constant 1 : index
    %c3_205 = arith.constant 3 : index
    %c0_206 = arith.constant 0 : index
    %c0_207 = arith.constant 0 : index
    %218 = vector.load %arg1[%c0_203, %c1_204, %c3_205, %c0_206, %c0_207] : memref<1x4x9x9x1xf32, #tpu.memory_space<vmem>>, vector<1x1x1x8x1xf32>
    %219 = vector.shape_cast %218 : vector<1x1x1x8x1xf32> to vector<8x1xf32>
    %c7_208 = arith.constant 7 : index
    %c0_209 = arith.constant 0 : index
    %c0_210 = arith.constant 0 : index
    %220 = vector.load %arg2[%c7_208, %c0_209, %c0_210] : memref<9x1x16xf32, #tpu.memory_space<vmem>>, vector<1x1x16xf32>
    %221 = vector.shape_cast %220 : vector<1x1x16xf32> to vector<1x16xf32>
    %222 = vector.broadcast %219 : vector<8x1xf32> to vector<8x16xf32>
    %223 = vector.broadcast %221 : vector<1x16xf32> to vector<8x16xf32>
    %224 = arith.mulf %222, %223 : vector<8x16xf32>
    %225 = arith.addf %217, %224 : vector<8x16xf32>
    %c0_211 = arith.constant 0 : index
    %c0_212 = arith.constant 0 : index
    %c3_213 = arith.constant 3 : index
    %c1_214 = arith.constant 1 : index
    %c0_215 = arith.constant 0 : index
    %226 = vector.load %arg1[%c0_211, %c0_212, %c3_213, %c1_214, %c0_215] : memref<1x4x9x9x1xf32, #tpu.memory_space<vmem>>, vector<1x1x1x8x1xf32>
    %227 = vector.shape_cast %226 : vector<1x1x1x8x1xf32> to vector<8x1xf32>
    %c8_216 = arith.constant 8 : index
    %c0_217 = arith.constant 0 : index
    %c0_218 = arith.constant 0 : index
    %228 = vector.load %arg2[%c8_216, %c0_217, %c0_218] : memref<9x1x16xf32, #tpu.memory_space<vmem>>, vector<1x1x16xf32>
    %229 = vector.shape_cast %228 : vector<1x1x16xf32> to vector<1x16xf32>
    %230 = vector.broadcast %227 : vector<8x1xf32> to vector<8x16xf32>
    %231 = vector.broadcast %229 : vector<1x16xf32> to vector<8x16xf32>
    %232 = arith.mulf %230, %231 : vector<8x16xf32>
    %233 = arith.addf %225, %232 : vector<8x16xf32>
    %234 = vector.broadcast %0 : vector<1x16xf32> to vector<8x16xf32>
    %235 = arith.addf %233, %234 : vector<8x16xf32>
    %cst_219 = arith.constant 0.000000e+00 : f32
    %236 = vector.broadcast %cst_219 : f32 to vector<8x16xf32>
    %237 = arith.maximumf %235, %236 : vector<8x16xf32>
    %c0_220 = arith.constant 0 : index
    %c16 = arith.constant 16 : index
    %c0_221 = arith.constant 0 : index
    %238 = vector.load %arg4[%c0_220, %c16, %c0_221] : memref<1x64x16xf32, #tpu.memory_space<vmem>>, vector<1x8x16xf32>
    %239 = vector.shape_cast %238 : vector<1x8x16xf32> to vector<8x16xf32>
    %240 = vector.shape_cast %237 : vector<8x16xf32> to vector<1x8x16xf32>
    tpu.vector_store %arg4[%c0_220, %c16, %c0_221], %240 {strides = array<i32>} : memref<1x64x16xf32, #tpu.memory_space<vmem>>, vector<1x8x16xf32>,
    %cst_222 = arith.constant 0.000000e+00 : f32
    %241 = vector.broadcast %cst_222 : f32 to vector<8x16xf32>
    %c0_223 = arith.constant 0 : index
    %c0_224 = arith.constant 0 : index
    %c3_225 = arith.constant 3 : index
    %c0_226 = arith.constant 0 : index
    %c0_227 = arith.constant 0 : index
    %242 = vector.load %arg1[%c0_223, %c0_224, %c3_225, %c0_226, %c0_227] : memref<1x4x9x9x1xf32, #tpu.memory_space<vmem>>, vector<1x1x1x8x1xf32>
    %243 = vector.shape_cast %242 : vector<1x1x1x8x1xf32> to vector<8x1xf32>
    %c0_228 = arith.constant 0 : index
    %c0_229 = arith.constant 0 : index
    %c0_230 = arith.constant 0 : index
    %244 = vector.load %arg2[%c0_228, %c0_229, %c0_230] : memref<9x1x16xf32, #tpu.memory_space<vmem>>, vector<1x1x16xf32>
    %245 = vector.shape_cast %244 : vector<1x1x16xf32> to vector<1x16xf32>
    %246 = vector.broadcast %243 : vector<8x1xf32> to vector<8x16xf32>
    %247 = vector.broadcast %245 : vector<1x16xf32> to vector<8x16xf32>
    %248 = arith.mulf %246, %247 : vector<8x16xf32>
    %249 = arith.addf %241, %248 : vector<8x16xf32>
    %c0_231 = arith.constant 0 : index
    %c1_232 = arith.constant 1 : index
    %c3_233 = arith.constant 3 : index
    %c0_234 = arith.constant 0 : index
    %c0_235 = arith.constant 0 : index
    %250 = vector.load %arg1[%c0_231, %c1_232, %c3_233, %c0_234, %c0_235] : memref<1x4x9x9x1xf32, #tpu.memory_space<vmem>>, vector<1x1x1x8x1xf32>
    %251 = vector.shape_cast %250 : vector<1x1x1x8x1xf32> to vector<8x1xf32>
    %c1_236 = arith.constant 1 : index
    %c0_237 = arith.constant 0 : index
    %c0_238 = arith.constant 0 : index
    %252 = vector.load %arg2[%c1_236, %c0_237, %c0_238] : memref<9x1x16xf32, #tpu.memory_space<vmem>>, vector<1x1x16xf32>
    %253 = vector.shape_cast %252 : vector<1x1x16xf32> to vector<1x16xf32>
    %254 = vector.broadcast %251 : vector<8x1xf32> to vector<8x16xf32>
    %255 = vector.broadcast %253 : vector<1x16xf32> to vector<8x16xf32>
    %256 = arith.mulf %254, %255 : vector<8x16xf32>
    %257 = arith.addf %249, %256 : vector<8x16xf32>
    %c0_239 = arith.constant 0 : index
    %c0_240 = arith.constant 0 : index
    %c3_241 = arith.constant 3 : index
    %c1_242 = arith.constant 1 : index
    %c0_243 = arith.constant 0 : index
    %258 = vector.load %arg1[%c0_239, %c0_240, %c3_241, %c1_242, %c0_243] : memref<1x4x9x9x1xf32, #tpu.memory_space<vmem>>, vector<1x1x1x8x1xf32>
    %259 = vector.shape_cast %258 : vector<1x1x1x8x1xf32> to vector<8x1xf32>
    %c2_244 = arith.constant 2 : index
    %c0_245 = arith.constant 0 : index
    %c0_246 = arith.constant 0 : index
    %260 = vector.load %arg2[%c2_244, %c0_245, %c0_246] : memref<9x1x16xf32, #tpu.memory_space<vmem>>, vector<1x1x16xf32>
    %261 = vector.shape_cast %260 : vector<1x1x16xf32> to vector<1x16xf32>
    %262 = vector.broadcast %259 : vector<8x1xf32> to vector<8x16xf32>
    %263 = vector.broadcast %261 : vector<1x16xf32> to vector<8x16xf32>
    %264 = arith.mulf %262, %263 : vector<8x16xf32>
    %265 = arith.addf %257, %264 : vector<8x16xf32>
    %c0_247 = arith.constant 0 : index
    %c2_248 = arith.constant 2 : index
    %c3_249 = arith.constant 3 : index
    %c0_250 = arith.constant 0 : index
    %c0_251 = arith.constant 0 : index
    %266 = vector.load %arg1[%c0_247, %c2_248, %c3_249, %c0_250, %c0_251] : memref<1x4x9x9x1xf32, #tpu.memory_space<vmem>>, vector<1x1x1x8x1xf32>
    %267 = vector.shape_cast %266 : vector<1x1x1x8x1xf32> to vector<8x1xf32>
    %c3_252 = arith.constant 3 : index
    %c0_253 = arith.constant 0 : index
    %c0_254 = arith.constant 0 : index
    %268 = vector.load %arg2[%c3_252, %c0_253, %c0_254] : memref<9x1x16xf32, #tpu.memory_space<vmem>>, vector<1x1x16xf32>
    %269 = vector.shape_cast %268 : vector<1x1x16xf32> to vector<1x16xf32>
    %270 = vector.broadcast %267 : vector<8x1xf32> to vector<8x16xf32>
    %271 = vector.broadcast %269 : vector<1x16xf32> to vector<8x16xf32>
    %272 = arith.mulf %270, %271 : vector<8x16xf32>
    %273 = arith.addf %265, %272 : vector<8x16xf32>
    %c0_255 = arith.constant 0 : index
    %c3_256 = arith.constant 3 : index
    %c3_257 = arith.constant 3 : index
    %c0_258 = arith.constant 0 : index
    %c0_259 = arith.constant 0 : index
    %274 = vector.load %arg1[%c0_255, %c3_256, %c3_257, %c0_258, %c0_259] : memref<1x4x9x9x1xf32, #tpu.memory_space<vmem>>, vector<1x1x1x8x1xf32>
    %275 = vector.shape_cast %274 : vector<1x1x1x8x1xf32> to vector<8x1xf32>
    %c4_260 = arith.constant 4 : index
    %c0_261 = arith.constant 0 : index
    %c0_262 = arith.constant 0 : index
    %276 = vector.load %arg2[%c4_260, %c0_261, %c0_262] : memref<9x1x16xf32, #tpu.memory_space<vmem>>, vector<1x1x16xf32>
    %277 = vector.shape_cast %276 : vector<1x1x16xf32> to vector<1x16xf32>
    %278 = vector.broadcast %275 : vector<8x1xf32> to vector<8x16xf32>
    %279 = vector.broadcast %277 : vector<1x16xf32> to vector<8x16xf32>
    %280 = arith.mulf %278, %279 : vector<8x16xf32>
    %281 = arith.addf %273, %280 : vector<8x16xf32>
    %c0_263 = arith.constant 0 : index
    %c2_264 = arith.constant 2 : index
    %c3_265 = arith.constant 3 : index
    %c1_266 = arith.constant 1 : index
    %c0_267 = arith.constant 0 : index
    %282 = vector.load %arg1[%c0_263, %c2_264, %c3_265, %c1_266, %c0_267] : memref<1x4x9x9x1xf32, #tpu.memory_space<vmem>>, vector<1x1x1x8x1xf32>
    %283 = vector.shape_cast %282 : vector<1x1x1x8x1xf32> to vector<8x1xf32>
    %c5_268 = arith.constant 5 : index
    %c0_269 = arith.constant 0 : index
    %c0_270 = arith.constant 0 : index
    %284 = vector.load %arg2[%c5_268, %c0_269, %c0_270] : memref<9x1x16xf32, #tpu.memory_space<vmem>>, vector<1x1x16xf32>
    %285 = vector.shape_cast %284 : vector<1x1x16xf32> to vector<1x16xf32>
    %286 = vector.broadcast %283 : vector<8x1xf32> to vector<8x16xf32>
    %287 = vector.broadcast %285 : vector<1x16xf32> to vector<8x16xf32>
    %288 = arith.mulf %286, %287 : vector<8x16xf32>
    %289 = arith.addf %281, %288 : vector<8x16xf32>
    %c0_271 = arith.constant 0 : index
    %c0_272 = arith.constant 0 : index
    %c4_273 = arith.constant 4 : index
    %c0_274 = arith.constant 0 : index
    %c0_275 = arith.constant 0 : index
    %290 = vector.load %arg1[%c0_271, %c0_272, %c4_273, %c0_274, %c0_275] : memref<1x4x9x9x1xf32, #tpu.memory_space<vmem>>, vector<1x1x1x8x1xf32>
    %291 = vector.shape_cast %290 : vector<1x1x1x8x1xf32> to vector<8x1xf32>
    %c6_276 = arith.constant 6 : index
    %c0_277 = arith.constant 0 : index
    %c0_278 = arith.constant 0 : index
    %292 = vector.load %arg2[%c6_276, %c0_277, %c0_278] : memref<9x1x16xf32, #tpu.memory_space<vmem>>, vector<1x1x16xf32>
    %293 = vector.shape_cast %292 : vector<1x1x16xf32> to vector<1x16xf32>
    %294 = vector.broadcast %291 : vector<8x1xf32> to vector<8x16xf32>
    %295 = vector.broadcast %293 : vector<1x16xf32> to vector<8x16xf32>
    %296 = arith.mulf %294, %295 : vector<8x16xf32>
    %297 = arith.addf %289, %296 : vector<8x16xf32>
    %c0_279 = arith.constant 0 : index
    %c1_280 = arith.constant 1 : index
    %c4_281 = arith.constant 4 : index
    %c0_282 = arith.constant 0 : index
    %c0_283 = arith.constant 0 : index
    %298 = vector.load %arg1[%c0_279, %c1_280, %c4_281, %c0_282, %c0_283] : memref<1x4x9x9x1xf32, #tpu.memory_space<vmem>>, vector<1x1x1x8x1xf32>
    %299 = vector.shape_cast %298 : vector<1x1x1x8x1xf32> to vector<8x1xf32>
    %c7_284 = arith.constant 7 : index
    %c0_285 = arith.constant 0 : index
    %c0_286 = arith.constant 0 : index
    %300 = vector.load %arg2[%c7_284, %c0_285, %c0_286] : memref<9x1x16xf32, #tpu.memory_space<vmem>>, vector<1x1x16xf32>
    %301 = vector.shape_cast %300 : vector<1x1x16xf32> to vector<1x16xf32>
    %302 = vector.broadcast %299 : vector<8x1xf32> to vector<8x16xf32>
    %303 = vector.broadcast %301 : vector<1x16xf32> to vector<8x16xf32>
    %304 = arith.mulf %302, %303 : vector<8x16xf32>
    %305 = arith.addf %297, %304 : vector<8x16xf32>
    %c0_287 = arith.constant 0 : index
    %c0_288 = arith.constant 0 : index
    %c4_289 = arith.constant 4 : index
    %c1_290 = arith.constant 1 : index
    %c0_291 = arith.constant 0 : index
    %306 = vector.load %arg1[%c0_287, %c0_288, %c4_289, %c1_290, %c0_291] : memref<1x4x9x9x1xf32, #tpu.memory_space<vmem>>, vector<1x1x1x8x1xf32>
    %307 = vector.shape_cast %306 : vector<1x1x1x8x1xf32> to vector<8x1xf32>
    %c8_292 = arith.constant 8 : index
    %c0_293 = arith.constant 0 : index
    %c0_294 = arith.constant 0 : index
    %308 = vector.load %arg2[%c8_292, %c0_293, %c0_294] : memref<9x1x16xf32, #tpu.memory_space<vmem>>, vector<1x1x16xf32>
    %309 = vector.shape_cast %308 : vector<1x1x16xf32> to vector<1x16xf32>
    %310 = vector.broadcast %307 : vector<8x1xf32> to vector<8x16xf32>
    %311 = vector.broadcast %309 : vector<1x16xf32> to vector<8x16xf32>
    %312 = arith.mulf %310, %311 : vector<8x16xf32>
    %313 = arith.addf %305, %312 : vector<8x16xf32>
    %314 = vector.broadcast %0 : vector<1x16xf32> to vector<8x16xf32>
    %315 = arith.addf %313, %314 : vector<8x16xf32>
    %cst_295 = arith.constant 0.000000e+00 : f32
    %316 = vector.broadcast %cst_295 : f32 to vector<8x16xf32>
    %317 = arith.maximumf %315, %316 : vector<8x16xf32>
    %c0_296 = arith.constant 0 : index
    %c24 = arith.constant 24 : index
    %c0_297 = arith.constant 0 : index
    %318 = vector.load %arg4[%c0_296, %c24, %c0_297] : memref<1x64x16xf32, #tpu.memory_space<vmem>>, vector<1x8x16xf32>
    %319 = vector.shape_cast %318 : vector<1x8x16xf32> to vector<8x16xf32>
    %320 = vector.shape_cast %317 : vector<8x16xf32> to vector<1x8x16xf32>
    tpu.vector_store %arg4[%c0_296, %c24, %c0_297], %320 {strides = array<i32>} : memref<1x64x16xf32, #tpu.memory_space<vmem>>, vector<1x8x16xf32>,
    %cst_298 = arith.constant 0.000000e+00 : f32
    %321 = vector.broadcast %cst_298 : f32 to vector<8x16xf32>
    %c0_299 = arith.constant 0 : index
    %c0_300 = arith.constant 0 : index
    %c4_301 = arith.constant 4 : index
    %c0_302 = arith.constant 0 : index
    %c0_303 = arith.constant 0 : index
    %322 = vector.load %arg1[%c0_299, %c0_300, %c4_301, %c0_302, %c0_303] : memref<1x4x9x9x1xf32, #tpu.memory_space<vmem>>, vector<1x1x1x8x1xf32>
    %323 = vector.shape_cast %322 : vector<1x1x1x8x1xf32> to vector<8x1xf32>
    %c0_304 = arith.constant 0 : index
    %c0_305 = arith.constant 0 : index
    %c0_306 = arith.constant 0 : index
    %324 = vector.load %arg2[%c0_304, %c0_305, %c0_306] : memref<9x1x16xf32, #tpu.memory_space<vmem>>, vector<1x1x16xf32>
    %325 = vector.shape_cast %324 : vector<1x1x16xf32> to vector<1x16xf32>
    %326 = vector.broadcast %323 : vector<8x1xf32> to vector<8x16xf32>
    %327 = vector.broadcast %325 : vector<1x16xf32> to vector<8x16xf32>
    %328 = arith.mulf %326, %327 : vector<8x16xf32>
    %329 = arith.addf %321, %328 : vector<8x16xf32>
    %c0_307 = arith.constant 0 : index
    %c1_308 = arith.constant 1 : index
    %c4_309 = arith.constant 4 : index
    %c0_310 = arith.constant 0 : index
    %c0_311 = arith.constant 0 : index
    %330 = vector.load %arg1[%c0_307, %c1_308, %c4_309, %c0_310, %c0_311] : memref<1x4x9x9x1xf32, #tpu.memory_space<vmem>>, vector<1x1x1x8x1xf32>
    %331 = vector.shape_cast %330 : vector<1x1x1x8x1xf32> to vector<8x1xf32>
    %c1_312 = arith.constant 1 : index
    %c0_313 = arith.constant 0 : index
    %c0_314 = arith.constant 0 : index
    %332 = vector.load %arg2[%c1_312, %c0_313, %c0_314] : memref<9x1x16xf32, #tpu.memory_space<vmem>>, vector<1x1x16xf32>
    %333 = vector.shape_cast %332 : vector<1x1x16xf32> to vector<1x16xf32>
    %334 = vector.broadcast %331 : vector<8x1xf32> to vector<8x16xf32>
    %335 = vector.broadcast %333 : vector<1x16xf32> to vector<8x16xf32>
    %336 = arith.mulf %334, %335 : vector<8x16xf32>
    %337 = arith.addf %329, %336 : vector<8x16xf32>
    %c0_315 = arith.constant 0 : index
    %c0_316 = arith.constant 0 : index
    %c4_317 = arith.constant 4 : index
    %c1_318 = arith.constant 1 : index
    %c0_319 = arith.constant 0 : index
    %338 = vector.load %arg1[%c0_315, %c0_316, %c4_317, %c1_318, %c0_319] : memref<1x4x9x9x1xf32, #tpu.memory_space<vmem>>, vector<1x1x1x8x1xf32>
    %339 = vector.shape_cast %338 : vector<1x1x1x8x1xf32> to vector<8x1xf32>
    %c2_320 = arith.constant 2 : index
    %c0_321 = arith.constant 0 : index
    %c0_322 = arith.constant 0 : index
    %340 = vector.load %arg2[%c2_320, %c0_321, %c0_322] : memref<9x1x16xf32, #tpu.memory_space<vmem>>, vector<1x1x16xf32>
    %341 = vector.shape_cast %340 : vector<1x1x16xf32> to vector<1x16xf32>
    %342 = vector.broadcast %339 : vector<8x1xf32> to vector<8x16xf32>
    %343 = vector.broadcast %341 : vector<1x16xf32> to vector<8x16xf32>
    %344 = arith.mulf %342, %343 : vector<8x16xf32>
    %345 = arith.addf %337, %344 : vector<8x16xf32>
    %c0_323 = arith.constant 0 : index
    %c2_324 = arith.constant 2 : index
    %c4_325 = arith.constant 4 : index
    %c0_326 = arith.constant 0 : index
    %c0_327 = arith.constant 0 : index
    %346 = vector.load %arg1[%c0_323, %c2_324, %c4_325, %c0_326, %c0_327] : memref<1x4x9x9x1xf32, #tpu.memory_space<vmem>>, vector<1x1x1x8x1xf32>
    %347 = vector.shape_cast %346 : vector<1x1x1x8x1xf32> to vector<8x1xf32>
    %c3_328 = arith.constant 3 : index
    %c0_329 = arith.constant 0 : index
    %c0_330 = arith.constant 0 : index
    %348 = vector.load %arg2[%c3_328, %c0_329, %c0_330] : memref<9x1x16xf32, #tpu.memory_space<vmem>>, vector<1x1x16xf32>
    %349 = vector.shape_cast %348 : vector<1x1x16xf32> to vector<1x16xf32>
    %350 = vector.broadcast %347 : vector<8x1xf32> to vector<8x16xf32>
    %351 = vector.broadcast %349 : vector<1x16xf32> to vector<8x16xf32>
    %352 = arith.mulf %350, %351 : vector<8x16xf32>
    %353 = arith.addf %345, %352 : vector<8x16xf32>
    %c0_331 = arith.constant 0 : index
    %c3_332 = arith.constant 3 : index
    %c4_333 = arith.constant 4 : index
    %c0_334 = arith.constant 0 : index
    %c0_335 = arith.constant 0 : index
    %354 = vector.load %arg1[%c0_331, %c3_332, %c4_333, %c0_334, %c0_335] : memref<1x4x9x9x1xf32, #tpu.memory_space<vmem>>, vector<1x1x1x8x1xf32>
    %355 = vector.shape_cast %354 : vector<1x1x1x8x1xf32> to vector<8x1xf32>
    %c4_336 = arith.constant 4 : index
    %c0_337 = arith.constant 0 : index
    %c0_338 = arith.constant 0 : index
    %356 = vector.load %arg2[%c4_336, %c0_337, %c0_338] : memref<9x1x16xf32, #tpu.memory_space<vmem>>, vector<1x1x16xf32>
    %357 = vector.shape_cast %356 : vector<1x1x16xf32> to vector<1x16xf32>
    %358 = vector.broadcast %355 : vector<8x1xf32> to vector<8x16xf32>
    %359 = vector.broadcast %357 : vector<1x16xf32> to vector<8x16xf32>
    %360 = arith.mulf %358, %359 : vector<8x16xf32>
    %361 = arith.addf %353, %360 : vector<8x16xf32>
    %c0_339 = arith.constant 0 : index
    %c2_340 = arith.constant 2 : index
    %c4_341 = arith.constant 4 : index
    %c1_342 = arith.constant 1 : index
    %c0_343 = arith.constant 0 : index
    %362 = vector.load %arg1[%c0_339, %c2_340, %c4_341, %c1_342, %c0_343] : memref<1x4x9x9x1xf32, #tpu.memory_space<vmem>>, vector<1x1x1x8x1xf32>
    %363 = vector.shape_cast %362 : vector<1x1x1x8x1xf32> to vector<8x1xf32>
    %c5_344 = arith.constant 5 : index
    %c0_345 = arith.constant 0 : index
    %c0_346 = arith.constant 0 : index
    %364 = vector.load %arg2[%c5_344, %c0_345, %c0_346] : memref<9x1x16xf32, #tpu.memory_space<vmem>>, vector<1x1x16xf32>
    %365 = vector.shape_cast %364 : vector<1x1x16xf32> to vector<1x16xf32>
    %366 = vector.broadcast %363 : vector<8x1xf32> to vector<8x16xf32>
    %367 = vector.broadcast %365 : vector<1x16xf32> to vector<8x16xf32>
    %368 = arith.mulf %366, %367 : vector<8x16xf32>
    %369 = arith.addf %361, %368 : vector<8x16xf32>
    %c0_347 = arith.constant 0 : index
    %c0_348 = arith.constant 0 : index
    %c5_349 = arith.constant 5 : index
    %c0_350 = arith.constant 0 : index
    %c0_351 = arith.constant 0 : index
    %370 = vector.load %arg1[%c0_347, %c0_348, %c5_349, %c0_350, %c0_351] : memref<1x4x9x9x1xf32, #tpu.memory_space<vmem>>, vector<1x1x1x8x1xf32>
    %371 = vector.shape_cast %370 : vector<1x1x1x8x1xf32> to vector<8x1xf32>
    %c6_352 = arith.constant 6 : index
    %c0_353 = arith.constant 0 : index
    %c0_354 = arith.constant 0 : index
    %372 = vector.load %arg2[%c6_352, %c0_353, %c0_354] : memref<9x1x16xf32, #tpu.memory_space<vmem>>, vector<1x1x16xf32>
    %373 = vector.shape_cast %372 : vector<1x1x16xf32> to vector<1x16xf32>
    %374 = vector.broadcast %371 : vector<8x1xf32> to vector<8x16xf32>
    %375 = vector.broadcast %373 : vector<1x16xf32> to vector<8x16xf32>
    %376 = arith.mulf %374, %375 : vector<8x16xf32>
    %377 = arith.addf %369, %376 : vector<8x16xf32>
    %c0_355 = arith.constant 0 : index
    %c1_356 = arith.constant 1 : index
    %c5_357 = arith.constant 5 : index
    %c0_358 = arith.constant 0 : index
    %c0_359 = arith.constant 0 : index
    %378 = vector.load %arg1[%c0_355, %c1_356, %c5_357, %c0_358, %c0_359] : memref<1x4x9x9x1xf32, #tpu.memory_space<vmem>>, vector<1x1x1x8x1xf32>
    %379 = vector.shape_cast %378 : vector<1x1x1x8x1xf32> to vector<8x1xf32>
    %c7_360 = arith.constant 7 : index
    %c0_361 = arith.constant 0 : index
    %c0_362 = arith.constant 0 : index
    %380 = vector.load %arg2[%c7_360, %c0_361, %c0_362] : memref<9x1x16xf32, #tpu.memory_space<vmem>>, vector<1x1x16xf32>
    %381 = vector.shape_cast %380 : vector<1x1x16xf32> to vector<1x16xf32>
    %382 = vector.broadcast %379 : vector<8x1xf32> to vector<8x16xf32>
    %383 = vector.broadcast %381 : vector<1x16xf32> to vector<8x16xf32>
    %384 = arith.mulf %382, %383 : vector<8x16xf32>
    %385 = arith.addf %377, %384 : vector<8x16xf32>
    %c0_363 = arith.constant 0 : index
    %c0_364 = arith.constant 0 : index
    %c5_365 = arith.constant 5 : index
    %c1_366 = arith.constant 1 : index
    %c0_367 = arith.constant 0 : index
    %386 = vector.load %arg1[%c0_363, %c0_364, %c5_365, %c1_366, %c0_367] : memref<1x4x9x9x1xf32, #tpu.memory_space<vmem>>, vector<1x1x1x8x1xf32>
    %387 = vector.shape_cast %386 : vector<1x1x1x8x1xf32> to vector<8x1xf32>
    %c8_368 = arith.constant 8 : index
    %c0_369 = arith.constant 0 : index
    %c0_370 = arith.constant 0 : index
    %388 = vector.load %arg2[%c8_368, %c0_369, %c0_370] : memref<9x1x16xf32, #tpu.memory_space<vmem>>, vector<1x1x16xf32>
    %389 = vector.shape_cast %388 : vector<1x1x16xf32> to vector<1x16xf32>
    %390 = vector.broadcast %387 : vector<8x1xf32> to vector<8x16xf32>
    %391 = vector.broadcast %389 : vector<1x16xf32> to vector<8x16xf32>
    %392 = arith.mulf %390, %391 : vector<8x16xf32>
    %393 = arith.addf %385, %392 : vector<8x16xf32>
    %394 = vector.broadcast %0 : vector<1x16xf32> to vector<8x16xf32>
    %395 = arith.addf %393, %394 : vector<8x16xf32>
    %cst_371 = arith.constant 0.000000e+00 : f32
    %396 = vector.broadcast %cst_371 : f32 to vector<8x16xf32>
    %397 = arith.maximumf %395, %396 : vector<8x16xf32>
    %c0_372 = arith.constant 0 : index
    %c32 = arith.constant 32 : index
    %c0_373 = arith.constant 0 : index
    %398 = vector.load %arg4[%c0_372, %c32, %c0_373] : memref<1x64x16xf32, #tpu.memory_space<vmem>>, vector<1x8x16xf32>
    %399 = vector.shape_cast %398 : vector<1x8x16xf32> to vector<8x16xf32>
    %400 = vector.shape_cast %397 : vector<8x16xf32> to vector<1x8x16xf32>
    tpu.vector_store %arg4[%c0_372, %c32, %c0_373], %400 {strides = array<i32>} : memref<1x64x16xf32, #tpu.memory_space<vmem>>, vector<1x8x16xf32>,
    %cst_374 = arith.constant 0.000000e+00 : f32
    %401 = vector.broadcast %cst_374 : f32 to vector<8x16xf32>
    %c0_375 = arith.constant 0 : index
    %c0_376 = arith.constant 0 : index
    %c5_377 = arith.constant 5 : index
    %c0_378 = arith.constant 0 : index
    %c0_379 = arith.constant 0 : index
    %402 = vector.load %arg1[%c0_375, %c0_376, %c5_377, %c0_378, %c0_379] : memref<1x4x9x9x1xf32, #tpu.memory_space<vmem>>, vector<1x1x1x8x1xf32>
    %403 = vector.shape_cast %402 : vector<1x1x1x8x1xf32> to vector<8x1xf32>
    %c0_380 = arith.constant 0 : index
    %c0_381 = arith.constant 0 : index
    %c0_382 = arith.constant 0 : index
    %404 = vector.load %arg2[%c0_380, %c0_381, %c0_382] : memref<9x1x16xf32, #tpu.memory_space<vmem>>, vector<1x1x16xf32>
    %405 = vector.shape_cast %404 : vector<1x1x16xf32> to vector<1x16xf32>
    %406 = vector.broadcast %403 : vector<8x1xf32> to vector<8x16xf32>
    %407 = vector.broadcast %405 : vector<1x16xf32> to vector<8x16xf32>
    %408 = arith.mulf %406, %407 : vector<8x16xf32>
    %409 = arith.addf %401, %408 : vector<8x16xf32>
    %c0_383 = arith.constant 0 : index
    %c1_384 = arith.constant 1 : index
    %c5_385 = arith.constant 5 : index
    %c0_386 = arith.constant 0 : index
    %c0_387 = arith.constant 0 : index
    %410 = vector.load %arg1[%c0_383, %c1_384, %c5_385, %c0_386, %c0_387] : memref<1x4x9x9x1xf32, #tpu.memory_space<vmem>>, vector<1x1x1x8x1xf32>
    %411 = vector.shape_cast %410 : vector<1x1x1x8x1xf32> to vector<8x1xf32>
    %c1_388 = arith.constant 1 : index
    %c0_389 = arith.constant 0 : index
    %c0_390 = arith.constant 0 : index
    %412 = vector.load %arg2[%c1_388, %c0_389, %c0_390] : memref<9x1x16xf32, #tpu.memory_space<vmem>>, vector<1x1x16xf32>
    %413 = vector.shape_cast %412 : vector<1x1x16xf32> to vector<1x16xf32>
    %414 = vector.broadcast %411 : vector<8x1xf32> to vector<8x16xf32>
    %415 = vector.broadcast %413 : vector<1x16xf32> to vector<8x16xf32>
    %416 = arith.mulf %414, %415 : vector<8x16xf32>
    %417 = arith.addf %409, %416 : vector<8x16xf32>
    %c0_391 = arith.constant 0 : index
    %c0_392 = arith.constant 0 : index
    %c5_393 = arith.constant 5 : index
    %c1_394 = arith.constant 1 : index
    %c0_395 = arith.constant 0 : index
    %418 = vector.load %arg1[%c0_391, %c0_392, %c5_393, %c1_394, %c0_395] : memref<1x4x9x9x1xf32, #tpu.memory_space<vmem>>, vector<1x1x1x8x1xf32>
    %419 = vector.shape_cast %418 : vector<1x1x1x8x1xf32> to vector<8x1xf32>
    %c2_396 = arith.constant 2 : index
    %c0_397 = arith.constant 0 : index
    %c0_398 = arith.constant 0 : index
    %420 = vector.load %arg2[%c2_396, %c0_397, %c0_398] : memref<9x1x16xf32, #tpu.memory_space<vmem>>, vector<1x1x16xf32>
    %421 = vector.shape_cast %420 : vector<1x1x16xf32> to vector<1x16xf32>
    %422 = vector.broadcast %419 : vector<8x1xf32> to vector<8x16xf32>
    %423 = vector.broadcast %421 : vector<1x16xf32> to vector<8x16xf32>
    %424 = arith.mulf %422, %423 : vector<8x16xf32>
    %425 = arith.addf %417, %424 : vector<8x16xf32>
    %c0_399 = arith.constant 0 : index
    %c2_400 = arith.constant 2 : index
    %c5_401 = arith.constant 5 : index
    %c0_402 = arith.constant 0 : index
    %c0_403 = arith.constant 0 : index
    %426 = vector.load %arg1[%c0_399, %c2_400, %c5_401, %c0_402, %c0_403] : memref<1x4x9x9x1xf32, #tpu.memory_space<vmem>>, vector<1x1x1x8x1xf32>
    %427 = vector.shape_cast %426 : vector<1x1x1x8x1xf32> to vector<8x1xf32>
    %c3_404 = arith.constant 3 : index
    %c0_405 = arith.constant 0 : index
    %c0_406 = arith.constant 0 : index
    %428 = vector.load %arg2[%c3_404, %c0_405, %c0_406] : memref<9x1x16xf32, #tpu.memory_space<vmem>>, vector<1x1x16xf32>
    %429 = vector.shape_cast %428 : vector<1x1x16xf32> to vector<1x16xf32>
    %430 = vector.broadcast %427 : vector<8x1xf32> to vector<8x16xf32>
    %431 = vector.broadcast %429 : vector<1x16xf32> to vector<8x16xf32>
    %432 = arith.mulf %430, %431 : vector<8x16xf32>
    %433 = arith.addf %425, %432 : vector<8x16xf32>
    %c0_407 = arith.constant 0 : index
    %c3_408 = arith.constant 3 : index
    %c5_409 = arith.constant 5 : index
    %c0_410 = arith.constant 0 : index
    %c0_411 = arith.constant 0 : index
    %434 = vector.load %arg1[%c0_407, %c3_408, %c5_409, %c0_410, %c0_411] : memref<1x4x9x9x1xf32, #tpu.memory_space<vmem>>, vector<1x1x1x8x1xf32>
    %435 = vector.shape_cast %434 : vector<1x1x1x8x1xf32> to vector<8x1xf32>
    %c4_412 = arith.constant 4 : index
    %c0_413 = arith.constant 0 : index
    %c0_414 = arith.constant 0 : index
    %436 = vector.load %arg2[%c4_412, %c0_413, %c0_414] : memref<9x1x16xf32, #tpu.memory_space<vmem>>, vector<1x1x16xf32>
    %437 = vector.shape_cast %436 : vector<1x1x16xf32> to vector<1x16xf32>
    %438 = vector.broadcast %435 : vector<8x1xf32> to vector<8x16xf32>
    %439 = vector.broadcast %437 : vector<1x16xf32> to vector<8x16xf32>
    %440 = arith.mulf %438, %439 : vector<8x16xf32>
    %441 = arith.addf %433, %440 : vector<8x16xf32>
    %c0_415 = arith.constant 0 : index
    %c2_416 = arith.constant 2 : index
    %c5_417 = arith.constant 5 : index
    %c1_418 = arith.constant 1 : index
    %c0_419 = arith.constant 0 : index
    %442 = vector.load %arg1[%c0_415, %c2_416, %c5_417, %c1_418, %c0_419] : memref<1x4x9x9x1xf32, #tpu.memory_space<vmem>>, vector<1x1x1x8x1xf32>
    %443 = vector.shape_cast %442 : vector<1x1x1x8x1xf32> to vector<8x1xf32>
    %c5_420 = arith.constant 5 : index
    %c0_421 = arith.constant 0 : index
    %c0_422 = arith.constant 0 : index
    %444 = vector.load %arg2[%c5_420, %c0_421, %c0_422] : memref<9x1x16xf32, #tpu.memory_space<vmem>>, vector<1x1x16xf32>
    %445 = vector.shape_cast %444 : vector<1x1x16xf32> to vector<1x16xf32>
    %446 = vector.broadcast %443 : vector<8x1xf32> to vector<8x16xf32>
    %447 = vector.broadcast %445 : vector<1x16xf32> to vector<8x16xf32>
    %448 = arith.mulf %446, %447 : vector<8x16xf32>
    %449 = arith.addf %441, %448 : vector<8x16xf32>
    %c0_423 = arith.constant 0 : index
    %c0_424 = arith.constant 0 : index
    %c6_425 = arith.constant 6 : index
    %c0_426 = arith.constant 0 : index
    %c0_427 = arith.constant 0 : index
    %450 = vector.load %arg1[%c0_423, %c0_424, %c6_425, %c0_426, %c0_427] : memref<1x4x9x9x1xf32, #tpu.memory_space<vmem>>, vector<1x1x1x8x1xf32>
    %451 = vector.shape_cast %450 : vector<1x1x1x8x1xf32> to vector<8x1xf32>
    %c6_428 = arith.constant 6 : index
    %c0_429 = arith.constant 0 : index
    %c0_430 = arith.constant 0 : index
    %452 = vector.load %arg2[%c6_428, %c0_429, %c0_430] : memref<9x1x16xf32, #tpu.memory_space<vmem>>, vector<1x1x16xf32>
    %453 = vector.shape_cast %452 : vector<1x1x16xf32> to vector<1x16xf32>
    %454 = vector.broadcast %451 : vector<8x1xf32> to vector<8x16xf32>
    %455 = vector.broadcast %453 : vector<1x16xf32> to vector<8x16xf32>
    %456 = arith.mulf %454, %455 : vector<8x16xf32>
    %457 = arith.addf %449, %456 : vector<8x16xf32>
    %c0_431 = arith.constant 0 : index
    %c1_432 = arith.constant 1 : index
    %c6_433 = arith.constant 6 : index
    %c0_434 = arith.constant 0 : index
    %c0_435 = arith.constant 0 : index
    %458 = vector.load %arg1[%c0_431, %c1_432, %c6_433, %c0_434, %c0_435] : memref<1x4x9x9x1xf32, #tpu.memory_space<vmem>>, vector<1x1x1x8x1xf32>
    %459 = vector.shape_cast %458 : vector<1x1x1x8x1xf32> to vector<8x1xf32>
    %c7_436 = arith.constant 7 : index
    %c0_437 = arith.constant 0 : index
    %c0_438 = arith.constant 0 : index
    %460 = vector.load %arg2[%c7_436, %c0_437, %c0_438] : memref<9x1x16xf32, #tpu.memory_space<vmem>>, vector<1x1x16xf32>
    %461 = vector.shape_cast %460 : vector<1x1x16xf32> to vector<1x16xf32>
    %462 = vector.broadcast %459 : vector<8x1xf32> to vector<8x16xf32>
    %463 = vector.broadcast %461 : vector<1x16xf32> to vector<8x16xf32>
    %464 = arith.mulf %462, %463 : vector<8x16xf32>
    %465 = arith.addf %457, %464 : vector<8x16xf32>
    %c0_439 = arith.constant 0 : index
    %c0_440 = arith.constant 0 : index
    %c6_441 = arith.constant 6 : index
    %c1_442 = arith.constant 1 : index
    %c0_443 = arith.constant 0 : index
    %466 = vector.load %arg1[%c0_439, %c0_440, %c6_441, %c1_442, %c0_443] : memref<1x4x9x9x1xf32, #tpu.memory_space<vmem>>, vector<1x1x1x8x1xf32>
    %467 = vector.shape_cast %466 : vector<1x1x1x8x1xf32> to vector<8x1xf32>
    %c8_444 = arith.constant 8 : index
    %c0_445 = arith.constant 0 : index
    %c0_446 = arith.constant 0 : index
    %468 = vector.load %arg2[%c8_444, %c0_445, %c0_446] : memref<9x1x16xf32, #tpu.memory_space<vmem>>, vector<1x1x16xf32>
    %469 = vector.shape_cast %468 : vector<1x1x16xf32> to vector<1x16xf32>
    %470 = vector.broadcast %467 : vector<8x1xf32> to vector<8x16xf32>
    %471 = vector.broadcast %469 : vector<1x16xf32> to vector<8x16xf32>
    %472 = arith.mulf %470, %471 : vector<8x16xf32>
    %473 = arith.addf %465, %472 : vector<8x16xf32>
    %474 = vector.broadcast %0 : vector<1x16xf32> to vector<8x16xf32>
    %475 = arith.addf %473, %474 : vector<8x16xf32>
    %cst_447 = arith.constant 0.000000e+00 : f32
    %476 = vector.broadcast %cst_447 : f32 to vector<8x16xf32>
    %477 = arith.maximumf %475, %476 : vector<8x16xf32>
    %c0_448 = arith.constant 0 : index
    %c40 = arith.constant 40 : index
    %c0_449 = arith.constant 0 : index
    %478 = vector.load %arg4[%c0_448, %c40, %c0_449] : memref<1x64x16xf32, #tpu.memory_space<vmem>>, vector<1x8x16xf32>
    %479 = vector.shape_cast %478 : vector<1x8x16xf32> to vector<8x16xf32>
    %480 = vector.shape_cast %477 : vector<8x16xf32> to vector<1x8x16xf32>
    tpu.vector_store %arg4[%c0_448, %c40, %c0_449], %480 {strides = array<i32>} : memref<1x64x16xf32, #tpu.memory_space<vmem>>, vector<1x8x16xf32>,
    %cst_450 = arith.constant 0.000000e+00 : f32
    %481 = vector.broadcast %cst_450 : f32 to vector<8x16xf32>
    %c0_451 = arith.constant 0 : index
    %c0_452 = arith.constant 0 : index
    %c6_453 = arith.constant 6 : index
    %c0_454 = arith.constant 0 : index
    %c0_455 = arith.constant 0 : index
    %482 = vector.load %arg1[%c0_451, %c0_452, %c6_453, %c0_454, %c0_455] : memref<1x4x9x9x1xf32, #tpu.memory_space<vmem>>, vector<1x1x1x8x1xf32>
    %483 = vector.shape_cast %482 : vector<1x1x1x8x1xf32> to vector<8x1xf32>
    %c0_456 = arith.constant 0 : index
    %c0_457 = arith.constant 0 : index
    %c0_458 = arith.constant 0 : index
    %484 = vector.load %arg2[%c0_456, %c0_457, %c0_458] : memref<9x1x16xf32, #tpu.memory_space<vmem>>, vector<1x1x16xf32>
    %485 = vector.shape_cast %484 : vector<1x1x16xf32> to vector<1x16xf32>
    %486 = vector.broadcast %483 : vector<8x1xf32> to vector<8x16xf32>
    %487 = vector.broadcast %485 : vector<1x16xf32> to vector<8x16xf32>
    %488 = arith.mulf %486, %487 : vector<8x16xf32>
    %489 = arith.addf %481, %488 : vector<8x16xf32>
    %c0_459 = arith.constant 0 : index
    %c1_460 = arith.constant 1 : index
    %c6_461 = arith.constant 6 : index
    %c0_462 = arith.constant 0 : index
    %c0_463 = arith.constant 0 : index
    %490 = vector.load %arg1[%c0_459, %c1_460, %c6_461, %c0_462, %c0_463] : memref<1x4x9x9x1xf32, #tpu.memory_space<vmem>>, vector<1x1x1x8x1xf32>
    %491 = vector.shape_cast %490 : vector<1x1x1x8x1xf32> to vector<8x1xf32>
    %c1_464 = arith.constant 1 : index
    %c0_465 = arith.constant 0 : index
    %c0_466 = arith.constant 0 : index
    %492 = vector.load %arg2[%c1_464, %c0_465, %c0_466] : memref<9x1x16xf32, #tpu.memory_space<vmem>>, vector<1x1x16xf32>
    %493 = vector.shape_cast %492 : vector<1x1x16xf32> to vector<1x16xf32>
    %494 = vector.broadcast %491 : vector<8x1xf32> to vector<8x16xf32>
    %495 = vector.broadcast %493 : vector<1x16xf32> to vector<8x16xf32>
    %496 = arith.mulf %494, %495 : vector<8x16xf32>
    %497 = arith.addf %489, %496 : vector<8x16xf32>
    %c0_467 = arith.constant 0 : index
    %c0_468 = arith.constant 0 : index
    %c6_469 = arith.constant 6 : index
    %c1_470 = arith.constant 1 : index
    %c0_471 = arith.constant 0 : index
    %498 = vector.load %arg1[%c0_467, %c0_468, %c6_469, %c1_470, %c0_471] : memref<1x4x9x9x1xf32, #tpu.memory_space<vmem>>, vector<1x1x1x8x1xf32>
    %499 = vector.shape_cast %498 : vector<1x1x1x8x1xf32> to vector<8x1xf32>
    %c2_472 = arith.constant 2 : index
    %c0_473 = arith.constant 0 : index
    %c0_474 = arith.constant 0 : index
    %500 = vector.load %arg2[%c2_472, %c0_473, %c0_474] : memref<9x1x16xf32, #tpu.memory_space<vmem>>, vector<1x1x16xf32>
    %501 = vector.shape_cast %500 : vector<1x1x16xf32> to vector<1x16xf32>
    %502 = vector.broadcast %499 : vector<8x1xf32> to vector<8x16xf32>
    %503 = vector.broadcast %501 : vector<1x16xf32> to vector<8x16xf32>
    %504 = arith.mulf %502, %503 : vector<8x16xf32>
    %505 = arith.addf %497, %504 : vector<8x16xf32>
    %c0_475 = arith.constant 0 : index
    %c2_476 = arith.constant 2 : index
    %c6_477 = arith.constant 6 : index
    %c0_478 = arith.constant 0 : index
    %c0_479 = arith.constant 0 : index
    %506 = vector.load %arg1[%c0_475, %c2_476, %c6_477, %c0_478, %c0_479] : memref<1x4x9x9x1xf32, #tpu.memory_space<vmem>>, vector<1x1x1x8x1xf32>
    %507 = vector.shape_cast %506 : vector<1x1x1x8x1xf32> to vector<8x1xf32>
    %c3_480 = arith.constant 3 : index
    %c0_481 = arith.constant 0 : index
    %c0_482 = arith.constant 0 : index
    %508 = vector.load %arg2[%c3_480, %c0_481, %c0_482] : memref<9x1x16xf32, #tpu.memory_space<vmem>>, vector<1x1x16xf32>
    %509 = vector.shape_cast %508 : vector<1x1x16xf32> to vector<1x16xf32>
    %510 = vector.broadcast %507 : vector<8x1xf32> to vector<8x16xf32>
    %511 = vector.broadcast %509 : vector<1x16xf32> to vector<8x16xf32>
    %512 = arith.mulf %510, %511 : vector<8x16xf32>
    %513 = arith.addf %505, %512 : vector<8x16xf32>
    %c0_483 = arith.constant 0 : index
    %c3_484 = arith.constant 3 : index
    %c6_485 = arith.constant 6 : index
    %c0_486 = arith.constant 0 : index
    %c0_487 = arith.constant 0 : index
    %514 = vector.load %arg1[%c0_483, %c3_484, %c6_485, %c0_486, %c0_487] : memref<1x4x9x9x1xf32, #tpu.memory_space<vmem>>, vector<1x1x1x8x1xf32>
    %515 = vector.shape_cast %514 : vector<1x1x1x8x1xf32> to vector<8x1xf32>
    %c4_488 = arith.constant 4 : index
    %c0_489 = arith.constant 0 : index
    %c0_490 = arith.constant 0 : index
    %516 = vector.load %arg2[%c4_488, %c0_489, %c0_490] : memref<9x1x16xf32, #tpu.memory_space<vmem>>, vector<1x1x16xf32>
    %517 = vector.shape_cast %516 : vector<1x1x16xf32> to vector<1x16xf32>
    %518 = vector.broadcast %515 : vector<8x1xf32> to vector<8x16xf32>
    %519 = vector.broadcast %517 : vector<1x16xf32> to vector<8x16xf32>
    %520 = arith.mulf %518, %519 : vector<8x16xf32>
    %521 = arith.addf %513, %520 : vector<8x16xf32>
    %c0_491 = arith.constant 0 : index
    %c2_492 = arith.constant 2 : index
    %c6_493 = arith.constant 6 : index
    %c1_494 = arith.constant 1 : index
    %c0_495 = arith.constant 0 : index
    %522 = vector.load %arg1[%c0_491, %c2_492, %c6_493, %c1_494, %c0_495] : memref<1x4x9x9x1xf32, #tpu.memory_space<vmem>>, vector<1x1x1x8x1xf32>
    %523 = vector.shape_cast %522 : vector<1x1x1x8x1xf32> to vector<8x1xf32>
    %c5_496 = arith.constant 5 : index
    %c0_497 = arith.constant 0 : index
    %c0_498 = arith.constant 0 : index
    %524 = vector.load %arg2[%c5_496, %c0_497, %c0_498] : memref<9x1x16xf32, #tpu.memory_space<vmem>>, vector<1x1x16xf32>
    %525 = vector.shape_cast %524 : vector<1x1x16xf32> to vector<1x16xf32>
    %526 = vector.broadcast %523 : vector<8x1xf32> to vector<8x16xf32>
    %527 = vector.broadcast %525 : vector<1x16xf32> to vector<8x16xf32>
    %528 = arith.mulf %526, %527 : vector<8x16xf32>
    %529 = arith.addf %521, %528 : vector<8x16xf32>
    %c0_499 = arith.constant 0 : index
    %c0_500 = arith.constant 0 : index
    %c7_501 = arith.constant 7 : index
    %c0_502 = arith.constant 0 : index
    %c0_503 = arith.constant 0 : index
    %530 = vector.load %arg1[%c0_499, %c0_500, %c7_501, %c0_502, %c0_503] : memref<1x4x9x9x1xf32, #tpu.memory_space<vmem>>, vector<1x1x1x8x1xf32>
    %531 = vector.shape_cast %530 : vector<1x1x1x8x1xf32> to vector<8x1xf32>
    %c6_504 = arith.constant 6 : index
    %c0_505 = arith.constant 0 : index
    %c0_506 = arith.constant 0 : index
    %532 = vector.load %arg2[%c6_504, %c0_505, %c0_506] : memref<9x1x16xf32, #tpu.memory_space<vmem>>, vector<1x1x16xf32>
    %533 = vector.shape_cast %532 : vector<1x1x16xf32> to vector<1x16xf32>
    %534 = vector.broadcast %531 : vector<8x1xf32> to vector<8x16xf32>
    %535 = vector.broadcast %533 : vector<1x16xf32> to vector<8x16xf32>
    %536 = arith.mulf %534, %535 : vector<8x16xf32>
    %537 = arith.addf %529, %536 : vector<8x16xf32>
    %c0_507 = arith.constant 0 : index
    %c1_508 = arith.constant 1 : index
    %c7_509 = arith.constant 7 : index
    %c0_510 = arith.constant 0 : index
    %c0_511 = arith.constant 0 : index
    %538 = vector.load %arg1[%c0_507, %c1_508, %c7_509, %c0_510, %c0_511] : memref<1x4x9x9x1xf32, #tpu.memory_space<vmem>>, vector<1x1x1x8x1xf32>
    %539 = vector.shape_cast %538 : vector<1x1x1x8x1xf32> to vector<8x1xf32>
    %c7_512 = arith.constant 7 : index
    %c0_513 = arith.constant 0 : index
    %c0_514 = arith.constant 0 : index
    %540 = vector.load %arg2[%c7_512, %c0_513, %c0_514] : memref<9x1x16xf32, #tpu.memory_space<vmem>>, vector<1x1x16xf32>
    %541 = vector.shape_cast %540 : vector<1x1x16xf32> to vector<1x16xf32>
    %542 = vector.broadcast %539 : vector<8x1xf32> to vector<8x16xf32>
    %543 = vector.broadcast %541 : vector<1x16xf32> to vector<8x16xf32>
    %544 = arith.mulf %542, %543 : vector<8x16xf32>
    %545 = arith.addf %537, %544 : vector<8x16xf32>
    %c0_515 = arith.constant 0 : index
    %c0_516 = arith.constant 0 : index
    %c7_517 = arith.constant 7 : index
    %c1_518 = arith.constant 1 : index
    %c0_519 = arith.constant 0 : index
    %546 = vector.load %arg1[%c0_515, %c0_516, %c7_517, %c1_518, %c0_519] : memref<1x4x9x9x1xf32, #tpu.memory_space<vmem>>, vector<1x1x1x8x1xf32>
    %547 = vector.shape_cast %546 : vector<1x1x1x8x1xf32> to vector<8x1xf32>
    %c8_520 = arith.constant 8 : index
    %c0_521 = arith.constant 0 : index
    %c0_522 = arith.constant 0 : index
    %548 = vector.load %arg2[%c8_520, %c0_521, %c0_522] : memref<9x1x16xf32, #tpu.memory_space<vmem>>, vector<1x1x16xf32>
    %549 = vector.shape_cast %548 : vector<1x1x16xf32> to vector<1x16xf32>
    %550 = vector.broadcast %547 : vector<8x1xf32> to vector<8x16xf32>
    %551 = vector.broadcast %549 : vector<1x16xf32> to vector<8x16xf32>
    %552 = arith.mulf %550, %551 : vector<8x16xf32>
    %553 = arith.addf %545, %552 : vector<8x16xf32>
    %554 = vector.broadcast %0 : vector<1x16xf32> to vector<8x16xf32>
    %555 = arith.addf %553, %554 : vector<8x16xf32>
    %cst_523 = arith.constant 0.000000e+00 : f32
    %556 = vector.broadcast %cst_523 : f32 to vector<8x16xf32>
    %557 = arith.maximumf %555, %556 : vector<8x16xf32>
    %c0_524 = arith.constant 0 : index
    %c48 = arith.constant 48 : index
    %c0_525 = arith.constant 0 : index
    %558 = vector.load %arg4[%c0_524, %c48, %c0_525] : memref<1x64x16xf32, #tpu.memory_space<vmem>>, vector<1x8x16xf32>
    %559 = vector.shape_cast %558 : vector<1x8x16xf32> to vector<8x16xf32>
    %560 = vector.shape_cast %557 : vector<8x16xf32> to vector<1x8x16xf32>
    tpu.vector_store %arg4[%c0_524, %c48, %c0_525], %560 {strides = array<i32>} : memref<1x64x16xf32, #tpu.memory_space<vmem>>, vector<1x8x16xf32>,
    %cst_526 = arith.constant 0.000000e+00 : f32
    %561 = vector.broadcast %cst_526 : f32 to vector<8x16xf32>
    %c0_527 = arith.constant 0 : index
    %c0_528 = arith.constant 0 : index
    %c7_529 = arith.constant 7 : index
    %c0_530 = arith.constant 0 : index
    %c0_531 = arith.constant 0 : index
    %562 = vector.load %arg1[%c0_527, %c0_528, %c7_529, %c0_530, %c0_531] : memref<1x4x9x9x1xf32, #tpu.memory_space<vmem>>, vector<1x1x1x8x1xf32>
    %563 = vector.shape_cast %562 : vector<1x1x1x8x1xf32> to vector<8x1xf32>
    %c0_532 = arith.constant 0 : index
    %c0_533 = arith.constant 0 : index
    %c0_534 = arith.constant 0 : index
    %564 = vector.load %arg2[%c0_532, %c0_533, %c0_534] : memref<9x1x16xf32, #tpu.memory_space<vmem>>, vector<1x1x16xf32>
    %565 = vector.shape_cast %564 : vector<1x1x16xf32> to vector<1x16xf32>
    %566 = vector.broadcast %563 : vector<8x1xf32> to vector<8x16xf32>
    %567 = vector.broadcast %565 : vector<1x16xf32> to vector<8x16xf32>
    %568 = arith.mulf %566, %567 : vector<8x16xf32>
    %569 = arith.addf %561, %568 : vector<8x16xf32>
    %c0_535 = arith.constant 0 : index
    %c1_536 = arith.constant 1 : index
    %c7_537 = arith.constant 7 : index
    %c0_538 = arith.constant 0 : index
    %c0_539 = arith.constant 0 : index
    %570 = vector.load %arg1[%c0_535, %c1_536, %c7_537, %c0_538, %c0_539] : memref<1x4x9x9x1xf32, #tpu.memory_space<vmem>>, vector<1x1x1x8x1xf32>
    %571 = vector.shape_cast %570 : vector<1x1x1x8x1xf32> to vector<8x1xf32>
    %c1_540 = arith.constant 1 : index
    %c0_541 = arith.constant 0 : index
    %c0_542 = arith.constant 0 : index
    %572 = vector.load %arg2[%c1_540, %c0_541, %c0_542] : memref<9x1x16xf32, #tpu.memory_space<vmem>>, vector<1x1x16xf32>
    %573 = vector.shape_cast %572 : vector<1x1x16xf32> to vector<1x16xf32>
    %574 = vector.broadcast %571 : vector<8x1xf32> to vector<8x16xf32>
    %575 = vector.broadcast %573 : vector<1x16xf32> to vector<8x16xf32>
    %576 = arith.mulf %574, %575 : vector<8x16xf32>
    %577 = arith.addf %569, %576 : vector<8x16xf32>
    %c0_543 = arith.constant 0 : index
    %c0_544 = arith.constant 0 : index
    %c7_545 = arith.constant 7 : index
    %c1_546 = arith.constant 1 : index
    %c0_547 = arith.constant 0 : index
    %578 = vector.load %arg1[%c0_543, %c0_544, %c7_545, %c1_546, %c0_547] : memref<1x4x9x9x1xf32, #tpu.memory_space<vmem>>, vector<1x1x1x8x1xf32>
    %579 = vector.shape_cast %578 : vector<1x1x1x8x1xf32> to vector<8x1xf32>
    %c2_548 = arith.constant 2 : index
    %c0_549 = arith.constant 0 : index
    %c0_550 = arith.constant 0 : index
    %580 = vector.load %arg2[%c2_548, %c0_549, %c0_550] : memref<9x1x16xf32, #tpu.memory_space<vmem>>, vector<1x1x16xf32>
    %581 = vector.shape_cast %580 : vector<1x1x16xf32> to vector<1x16xf32>
    %582 = vector.broadcast %579 : vector<8x1xf32> to vector<8x16xf32>
    %583 = vector.broadcast %581 : vector<1x16xf32> to vector<8x16xf32>
    %584 = arith.mulf %582, %583 : vector<8x16xf32>
    %585 = arith.addf %577, %584 : vector<8x16xf32>
    %c0_551 = arith.constant 0 : index
    %c2_552 = arith.constant 2 : index
    %c7_553 = arith.constant 7 : index
    %c0_554 = arith.constant 0 : index
    %c0_555 = arith.constant 0 : index
    %586 = vector.load %arg1[%c0_551, %c2_552, %c7_553, %c0_554, %c0_555] : memref<1x4x9x9x1xf32, #tpu.memory_space<vmem>>, vector<1x1x1x8x1xf32>
    %587 = vector.shape_cast %586 : vector<1x1x1x8x1xf32> to vector<8x1xf32>
    %c3_556 = arith.constant 3 : index
    %c0_557 = arith.constant 0 : index
    %c0_558 = arith.constant 0 : index
    %588 = vector.load %arg2[%c3_556, %c0_557, %c0_558] : memref<9x1x16xf32, #tpu.memory_space<vmem>>, vector<1x1x16xf32>
    %589 = vector.shape_cast %588 : vector<1x1x16xf32> to vector<1x16xf32>
    %590 = vector.broadcast %587 : vector<8x1xf32> to vector<8x16xf32>
    %591 = vector.broadcast %589 : vector<1x16xf32> to vector<8x16xf32>
    %592 = arith.mulf %590, %591 : vector<8x16xf32>
    %593 = arith.addf %585, %592 : vector<8x16xf32>
    %c0_559 = arith.constant 0 : index
    %c3_560 = arith.constant 3 : index
    %c7_561 = arith.constant 7 : index
    %c0_562 = arith.constant 0 : index
    %c0_563 = arith.constant 0 : index
    %594 = vector.load %arg1[%c0_559, %c3_560, %c7_561, %c0_562, %c0_563] : memref<1x4x9x9x1xf32, #tpu.memory_space<vmem>>, vector<1x1x1x8x1xf32>
    %595 = vector.shape_cast %594 : vector<1x1x1x8x1xf32> to vector<8x1xf32>
    %c4_564 = arith.constant 4 : index
    %c0_565 = arith.constant 0 : index
    %c0_566 = arith.constant 0 : index
    %596 = vector.load %arg2[%c4_564, %c0_565, %c0_566] : memref<9x1x16xf32, #tpu.memory_space<vmem>>, vector<1x1x16xf32>
    %597 = vector.shape_cast %596 : vector<1x1x16xf32> to vector<1x16xf32>
    %598 = vector.broadcast %595 : vector<8x1xf32> to vector<8x16xf32>
    %599 = vector.broadcast %597 : vector<1x16xf32> to vector<8x16xf32>
    %600 = arith.mulf %598, %599 : vector<8x16xf32>
    %601 = arith.addf %593, %600 : vector<8x16xf32>
    %c0_567 = arith.constant 0 : index
    %c2_568 = arith.constant 2 : index
    %c7_569 = arith.constant 7 : index
    %c1_570 = arith.constant 1 : index
    %c0_571 = arith.constant 0 : index
    %602 = vector.load %arg1[%c0_567, %c2_568, %c7_569, %c1_570, %c0_571] : memref<1x4x9x9x1xf32, #tpu.memory_space<vmem>>, vector<1x1x1x8x1xf32>
    %603 = vector.shape_cast %602 : vector<1x1x1x8x1xf32> to vector<8x1xf32>
    %c5_572 = arith.constant 5 : index
    %c0_573 = arith.constant 0 : index
    %c0_574 = arith.constant 0 : index
    %604 = vector.load %arg2[%c5_572, %c0_573, %c0_574] : memref<9x1x16xf32, #tpu.memory_space<vmem>>, vector<1x1x16xf32>
    %605 = vector.shape_cast %604 : vector<1x1x16xf32> to vector<1x16xf32>
    %606 = vector.broadcast %603 : vector<8x1xf32> to vector<8x16xf32>
    %607 = vector.broadcast %605 : vector<1x16xf32> to vector<8x16xf32>
    %608 = arith.mulf %606, %607 : vector<8x16xf32>
    %609 = arith.addf %601, %608 : vector<8x16xf32>
    %c0_575 = arith.constant 0 : index
    %c0_576 = arith.constant 0 : index
    %c8_577 = arith.constant 8 : index
    %c0_578 = arith.constant 0 : index
    %c0_579 = arith.constant 0 : index
    %610 = vector.load %arg1[%c0_575, %c0_576, %c8_577, %c0_578, %c0_579] : memref<1x4x9x9x1xf32, #tpu.memory_space<vmem>>, vector<1x1x1x8x1xf32>
    %611 = vector.shape_cast %610 : vector<1x1x1x8x1xf32> to vector<8x1xf32>
    %c6_580 = arith.constant 6 : index
    %c0_581 = arith.constant 0 : index
    %c0_582 = arith.constant 0 : index
    %612 = vector.load %arg2[%c6_580, %c0_581, %c0_582] : memref<9x1x16xf32, #tpu.memory_space<vmem>>, vector<1x1x16xf32>
    %613 = vector.shape_cast %612 : vector<1x1x16xf32> to vector<1x16xf32>
    %614 = vector.broadcast %611 : vector<8x1xf32> to vector<8x16xf32>
    %615 = vector.broadcast %613 : vector<1x16xf32> to vector<8x16xf32>
    %616 = arith.mulf %614, %615 : vector<8x16xf32>
    %617 = arith.addf %609, %616 : vector<8x16xf32>
    %c0_583 = arith.constant 0 : index
    %c1_584 = arith.constant 1 : index
    %c8_585 = arith.constant 8 : index
    %c0_586 = arith.constant 0 : index
    %c0_587 = arith.constant 0 : index
    %618 = vector.load %arg1[%c0_583, %c1_584, %c8_585, %c0_586, %c0_587] : memref<1x4x9x9x1xf32, #tpu.memory_space<vmem>>, vector<1x1x1x8x1xf32>
    %619 = vector.shape_cast %618 : vector<1x1x1x8x1xf32> to vector<8x1xf32>
    %c7_588 = arith.constant 7 : index
    %c0_589 = arith.constant 0 : index
    %c0_590 = arith.constant 0 : index
    %620 = vector.load %arg2[%c7_588, %c0_589, %c0_590] : memref<9x1x16xf32, #tpu.memory_space<vmem>>, vector<1x1x16xf32>
    %621 = vector.shape_cast %620 : vector<1x1x16xf32> to vector<1x16xf32>
    %622 = vector.broadcast %619 : vector<8x1xf32> to vector<8x16xf32>
    %623 = vector.broadcast %621 : vector<1x16xf32> to vector<8x16xf32>
    %624 = arith.mulf %622, %623 : vector<8x16xf32>
    %625 = arith.addf %617, %624 : vector<8x16xf32>
    %c0_591 = arith.constant 0 : index
    %c0_592 = arith.constant 0 : index
    %c8_593 = arith.constant 8 : index
    %c1_594 = arith.constant 1 : index
    %c0_595 = arith.constant 0 : index
    %626 = vector.load %arg1[%c0_591, %c0_592, %c8_593, %c1_594, %c0_595] : memref<1x4x9x9x1xf32, #tpu.memory_space<vmem>>, vector<1x1x1x8x1xf32>
    %627 = vector.shape_cast %626 : vector<1x1x1x8x1xf32> to vector<8x1xf32>
    %c8_596 = arith.constant 8 : index
    %c0_597 = arith.constant 0 : index
    %c0_598 = arith.constant 0 : index
    %628 = vector.load %arg2[%c8_596, %c0_597, %c0_598] : memref<9x1x16xf32, #tpu.memory_space<vmem>>, vector<1x1x16xf32>
    %629 = vector.shape_cast %628 : vector<1x1x16xf32> to vector<1x16xf32>
    %630 = vector.broadcast %627 : vector<8x1xf32> to vector<8x16xf32>
    %631 = vector.broadcast %629 : vector<1x16xf32> to vector<8x16xf32>
    %632 = arith.mulf %630, %631 : vector<8x16xf32>
    %633 = arith.addf %625, %632 : vector<8x16xf32>
    %634 = vector.broadcast %0 : vector<1x16xf32> to vector<8x16xf32>
    %635 = arith.addf %633, %634 : vector<8x16xf32>
    %cst_599 = arith.constant 0.000000e+00 : f32
    %636 = vector.broadcast %cst_599 : f32 to vector<8x16xf32>
    %637 = arith.maximumf %635, %636 : vector<8x16xf32>
    %c0_600 = arith.constant 0 : index
    %c56 = arith.constant 56 : index
    %c0_601 = arith.constant 0 : index
    %638 = vector.load %arg4[%c0_600, %c56, %c0_601] : memref<1x64x16xf32, #tpu.memory_space<vmem>>, vector<1x8x16xf32>
    %639 = vector.shape_cast %638 : vector<1x8x16xf32> to vector<8x16xf32>
    %640 = vector.shape_cast %637 : vector<8x16xf32> to vector<1x8x16xf32>
    tpu.vector_store %arg4[%c0_600, %c56, %c0_601], %640 {strides = array<i32>} : memref<1x64x16xf32, #tpu.memory_space<vmem>>, vector<1x8x16xf32>,
    return
  }
  func.func @transform_0(%arg0: i32) -> (i32, i32, i32, i32, i32) {
    %c0_i32 = arith.constant 0 : i32
    %c0_i32_0 = arith.constant 0 : i32
    %c0_i32_1 = arith.constant 0 : i32
    %c0_i32_2 = arith.constant 0 : i32
    %c0_i32_3 = arith.constant 0 : i32
    return %arg0, %c0_i32, %c0_i32_0, %c0_i32_1, %c0_i32_2 : i32, i32, i32, i32, i32
  }
  func.func @transform_1(%arg0: i32) -> (i32, i32, i32) {
    %c0_i32 = arith.constant 0 : i32
    %c0_i32_0 = arith.constant 0 : i32
    %c0_i32_1 = arith.constant 0 : i32
    %c0_i32_2 = arith.constant 0 : i32
    return %c0_i32, %c0_i32_0, %c0_i32_1 : i32, i32, i32
  }
  func.func @transform_2(%arg0: i32) -> (i32, i32) {
    %c0_i32 = arith.constant 0 : i32
    %c0_i32_0 = arith.constant 0 : i32
    %c0_i32_1 = arith.constant 0 : i32
    return %c0_i32, %c0_i32_0 : i32, i32
  }
  func.func @transform_3(%arg0: i32) -> (i32, i32, i32) {
    %c0_i32 = arith.constant 0 : i32
    %c0_i32_0 = arith.constant 0 : i32
    %c0_i32_1 = arith.constant 0 : i32
    return %arg0, %c0_i32, %c0_i32_0 : i32, i32, i32
  }
}

module attributes {stable_mosaic.version = 11 : i64} {
  func.func @_conv3x3_s2_kernel(%arg0: i32, %arg1: memref<1x4x5x5x16xf32, #tpu.memory_space<vmem>>, %arg2: memref<9x16x16xf32, #tpu.memory_space<vmem>>, %arg3: memref<1x16xf32, #tpu.memory_space<vmem>>, %arg4: memref<1x16x16xf32, #tpu.memory_space<vmem>>) attributes {dimension_semantics = [#tpu.dimension_semantics<parallel>], iteration_bounds = array<i64: 2>, scalar_prefetch = 0 : i64, scratch_operands = 0 : i64, tpu.core_type = #tpu.core_type<tc>, window_params = [{transform_indices = @transform_0, window_bounds = array<i64: 1, 4, 5, 5, 16>}, {pipeline_mode = #tpu.pipeline_mode<synchronous>, transform_indices = @transform_1, window_bounds = array<i64: 9, 16, 16>}, {pipeline_mode = #tpu.pipeline_mode<synchronous>, transform_indices = @transform_2, window_bounds = array<i64: 1, 16>}, {transform_indices = @transform_3, window_bounds = array<i64: 1, 16, 16>}]} {
    %c0 = arith.constant 0 : index
    %c0_0 = arith.constant 0 : index
    %0 = vector.load %arg3[%c0, %c0_0] : memref<1x16xf32, #tpu.memory_space<vmem>>, vector<1x16xf32>
    %cst = arith.constant 0.000000e+00 : f32
    %1 = vector.broadcast %cst : f32 to vector<4x16xf32>
    %c0_1 = arith.constant 0 : index
    %c0_2 = arith.constant 0 : index
    %c0_3 = arith.constant 0 : index
    %c0_4 = arith.constant 0 : index
    %c0_5 = arith.constant 0 : index
    %2 = vector.load %arg1[%c0_1, %c0_2, %c0_3, %c0_4, %c0_5] : memref<1x4x5x5x16xf32, #tpu.memory_space<vmem>>, vector<1x1x1x4x16xf32>
    %3 = vector.shape_cast %2 : vector<1x1x1x4x16xf32> to vector<4x16xf32>
    %c0_6 = arith.constant 0 : index
    %c0_7 = arith.constant 0 : index
    %c0_8 = arith.constant 0 : index
    %4 = vector.load %arg2[%c0_6, %c0_7, %c0_8] : memref<9x16x16xf32, #tpu.memory_space<vmem>>, vector<1x16x16xf32>
    %5 = vector.shape_cast %4 : vector<1x16x16xf32> to vector<16x16xf32>
    %cst_9 = arith.constant dense<0.000000e+00> : vector<4x16xf32>
    %6 = tpu.matmul %3, %5, %cst_9 {dimension_numbers = #tpu.dot_dimension_numbers<[1], [0], [0], [1], [0, 0, 1, 1], [], []>} : vector<4x16xf32>, vector<16x16xf32>, vector<4x16xf32> -> vector<4x16xf32>
    %7 = arith.addf %1, %6 : vector<4x16xf32>
    %c0_10 = arith.constant 0 : index
    %c1 = arith.constant 1 : index
    %c0_11 = arith.constant 0 : index
    %c0_12 = arith.constant 0 : index
    %c0_13 = arith.constant 0 : index
    %8 = vector.load %arg1[%c0_10, %c1, %c0_11, %c0_12, %c0_13] : memref<1x4x5x5x16xf32, #tpu.memory_space<vmem>>, vector<1x1x1x4x16xf32>
    %9 = vector.shape_cast %8 : vector<1x1x1x4x16xf32> to vector<4x16xf32>
    %c1_14 = arith.constant 1 : index
    %c0_15 = arith.constant 0 : index
    %c0_16 = arith.constant 0 : index
    %10 = vector.load %arg2[%c1_14, %c0_15, %c0_16] : memref<9x16x16xf32, #tpu.memory_space<vmem>>, vector<1x16x16xf32>
    %11 = vector.shape_cast %10 : vector<1x16x16xf32> to vector<16x16xf32>
    %cst_17 = arith.constant dense<0.000000e+00> : vector<4x16xf32>
    %12 = tpu.matmul %9, %11, %cst_17 {dimension_numbers = #tpu.dot_dimension_numbers<[1], [0], [0], [1], [0, 0, 1, 1], [], []>} : vector<4x16xf32>, vector<16x16xf32>, vector<4x16xf32> -> vector<4x16xf32>
    %13 = arith.addf %7, %12 : vector<4x16xf32>
    %c0_18 = arith.constant 0 : index
    %c0_19 = arith.constant 0 : index
    %c0_20 = arith.constant 0 : index
    %c1_21 = arith.constant 1 : index
    %c0_22 = arith.constant 0 : index
    %14 = vector.load %arg1[%c0_18, %c0_19, %c0_20, %c1_21, %c0_22] : memref<1x4x5x5x16xf32, #tpu.memory_space<vmem>>, vector<1x1x1x4x16xf32>
    %15 = vector.shape_cast %14 : vector<1x1x1x4x16xf32> to vector<4x16xf32>
    %c2 = arith.constant 2 : index
    %c0_23 = arith.constant 0 : index
    %c0_24 = arith.constant 0 : index
    %16 = vector.load %arg2[%c2, %c0_23, %c0_24] : memref<9x16x16xf32, #tpu.memory_space<vmem>>, vector<1x16x16xf32>
    %17 = vector.shape_cast %16 : vector<1x16x16xf32> to vector<16x16xf32>
    %cst_25 = arith.constant dense<0.000000e+00> : vector<4x16xf32>
    %18 = tpu.matmul %15, %17, %cst_25 {dimension_numbers = #tpu.dot_dimension_numbers<[1], [0], [0], [1], [0, 0, 1, 1], [], []>} : vector<4x16xf32>, vector<16x16xf32>, vector<4x16xf32> -> vector<4x16xf32>
    %19 = arith.addf %13, %18 : vector<4x16xf32>
    %c0_26 = arith.constant 0 : index
    %c2_27 = arith.constant 2 : index
    %c0_28 = arith.constant 0 : index
    %c0_29 = arith.constant 0 : index
    %c0_30 = arith.constant 0 : index
    %20 = vector.load %arg1[%c0_26, %c2_27, %c0_28, %c0_29, %c0_30] : memref<1x4x5x5x16xf32, #tpu.memory_space<vmem>>, vector<1x1x1x4x16xf32>
    %21 = vector.shape_cast %20 : vector<1x1x1x4x16xf32> to vector<4x16xf32>
    %c3 = arith.constant 3 : index
    %c0_31 = arith.constant 0 : index
    %c0_32 = arith.constant 0 : index
    %22 = vector.load %arg2[%c3, %c0_31, %c0_32] : memref<9x16x16xf32, #tpu.memory_space<vmem>>, vector<1x16x16xf32>
    %23 = vector.shape_cast %22 : vector<1x16x16xf32> to vector<16x16xf32>
    %cst_33 = arith.constant dense<0.000000e+00> : vector<4x16xf32>
    %24 = tpu.matmul %21, %23, %cst_33 {dimension_numbers = #tpu.dot_dimension_numbers<[1], [0], [0], [1], [0, 0, 1, 1], [], []>} : vector<4x16xf32>, vector<16x16xf32>, vector<4x16xf32> -> vector<4x16xf32>
    %25 = arith.addf %19, %24 : vector<4x16xf32>
    %c0_34 = arith.constant 0 : index
    %c3_35 = arith.constant 3 : index
    %c0_36 = arith.constant 0 : index
    %c0_37 = arith.constant 0 : index
    %c0_38 = arith.constant 0 : index
    %26 = vector.load %arg1[%c0_34, %c3_35, %c0_36, %c0_37, %c0_38] : memref<1x4x5x5x16xf32, #tpu.memory_space<vmem>>, vector<1x1x1x4x16xf32>
    %27 = vector.shape_cast %26 : vector<1x1x1x4x16xf32> to vector<4x16xf32>
    %c4 = arith.constant 4 : index
    %c0_39 = arith.constant 0 : index
    %c0_40 = arith.constant 0 : index
    %28 = vector.load %arg2[%c4, %c0_39, %c0_40] : memref<9x16x16xf32, #tpu.memory_space<vmem>>, vector<1x16x16xf32>
    %29 = vector.shape_cast %28 : vector<1x16x16xf32> to vector<16x16xf32>
    %cst_41 = arith.constant dense<0.000000e+00> : vector<4x16xf32>
    %30 = tpu.matmul %27, %29, %cst_41 {dimension_numbers = #tpu.dot_dimension_numbers<[1], [0], [0], [1], [0, 0, 1, 1], [], []>} : vector<4x16xf32>, vector<16x16xf32>, vector<4x16xf32> -> vector<4x16xf32>
    %31 = arith.addf %25, %30 : vector<4x16xf32>
    %c0_42 = arith.constant 0 : index
    %c2_43 = arith.constant 2 : index
    %c0_44 = arith.constant 0 : index
    %c1_45 = arith.constant 1 : index
    %c0_46 = arith.constant 0 : index
    %32 = vector.load %arg1[%c0_42, %c2_43, %c0_44, %c1_45, %c0_46] : memref<1x4x5x5x16xf32, #tpu.memory_space<vmem>>, vector<1x1x1x4x16xf32>
    %33 = vector.shape_cast %32 : vector<1x1x1x4x16xf32> to vector<4x16xf32>
    %c5 = arith.constant 5 : index
    %c0_47 = arith.constant 0 : index
    %c0_48 = arith.constant 0 : index
    %34 = vector.load %arg2[%c5, %c0_47, %c0_48] : memref<9x16x16xf32, #tpu.memory_space<vmem>>, vector<1x16x16xf32>
    %35 = vector.shape_cast %34 : vector<1x16x16xf32> to vector<16x16xf32>
    %cst_49 = arith.constant dense<0.000000e+00> : vector<4x16xf32>
    %36 = tpu.matmul %33, %35, %cst_49 {dimension_numbers = #tpu.dot_dimension_numbers<[1], [0], [0], [1], [0, 0, 1, 1], [], []>} : vector<4x16xf32>, vector<16x16xf32>, vector<4x16xf32> -> vector<4x16xf32>
    %37 = arith.addf %31, %36 : vector<4x16xf32>
    %c0_50 = arith.constant 0 : index
    %c0_51 = arith.constant 0 : index
    %c1_52 = arith.constant 1 : index
    %c0_53 = arith.constant 0 : index
    %c0_54 = arith.constant 0 : index
    %38 = vector.load %arg1[%c0_50, %c0_51, %c1_52, %c0_53, %c0_54] : memref<1x4x5x5x16xf32, #tpu.memory_space<vmem>>, vector<1x1x1x4x16xf32>
    %39 = vector.shape_cast %38 : vector<1x1x1x4x16xf32> to vector<4x16xf32>
    %c6 = arith.constant 6 : index
    %c0_55 = arith.constant 0 : index
    %c0_56 = arith.constant 0 : index
    %40 = vector.load %arg2[%c6, %c0_55, %c0_56] : memref<9x16x16xf32, #tpu.memory_space<vmem>>, vector<1x16x16xf32>
    %41 = vector.shape_cast %40 : vector<1x16x16xf32> to vector<16x16xf32>
    %cst_57 = arith.constant dense<0.000000e+00> : vector<4x16xf32>
    %42 = tpu.matmul %39, %41, %cst_57 {dimension_numbers = #tpu.dot_dimension_numbers<[1], [0], [0], [1], [0, 0, 1, 1], [], []>} : vector<4x16xf32>, vector<16x16xf32>, vector<4x16xf32> -> vector<4x16xf32>
    %43 = arith.addf %37, %42 : vector<4x16xf32>
    %c0_58 = arith.constant 0 : index
    %c1_59 = arith.constant 1 : index
    %c1_60 = arith.constant 1 : index
    %c0_61 = arith.constant 0 : index
    %c0_62 = arith.constant 0 : index
    %44 = vector.load %arg1[%c0_58, %c1_59, %c1_60, %c0_61, %c0_62] : memref<1x4x5x5x16xf32, #tpu.memory_space<vmem>>, vector<1x1x1x4x16xf32>
    %45 = vector.shape_cast %44 : vector<1x1x1x4x16xf32> to vector<4x16xf32>
    %c7 = arith.constant 7 : index
    %c0_63 = arith.constant 0 : index
    %c0_64 = arith.constant 0 : index
    %46 = vector.load %arg2[%c7, %c0_63, %c0_64] : memref<9x16x16xf32, #tpu.memory_space<vmem>>, vector<1x16x16xf32>
    %47 = vector.shape_cast %46 : vector<1x16x16xf32> to vector<16x16xf32>
    %cst_65 = arith.constant dense<0.000000e+00> : vector<4x16xf32>
    %48 = tpu.matmul %45, %47, %cst_65 {dimension_numbers = #tpu.dot_dimension_numbers<[1], [0], [0], [1], [0, 0, 1, 1], [], []>} : vector<4x16xf32>, vector<16x16xf32>, vector<4x16xf32> -> vector<4x16xf32>
    %49 = arith.addf %43, %48 : vector<4x16xf32>
    %c0_66 = arith.constant 0 : index
    %c0_67 = arith.constant 0 : index
    %c1_68 = arith.constant 1 : index
    %c1_69 = arith.constant 1 : index
    %c0_70 = arith.constant 0 : index
    %50 = vector.load %arg1[%c0_66, %c0_67, %c1_68, %c1_69, %c0_70] : memref<1x4x5x5x16xf32, #tpu.memory_space<vmem>>, vector<1x1x1x4x16xf32>
    %51 = vector.shape_cast %50 : vector<1x1x1x4x16xf32> to vector<4x16xf32>
    %c8 = arith.constant 8 : index
    %c0_71 = arith.constant 0 : index
    %c0_72 = arith.constant 0 : index
    %52 = vector.load %arg2[%c8, %c0_71, %c0_72] : memref<9x16x16xf32, #tpu.memory_space<vmem>>, vector<1x16x16xf32>
    %53 = vector.shape_cast %52 : vector<1x16x16xf32> to vector<16x16xf32>
    %cst_73 = arith.constant dense<0.000000e+00> : vector<4x16xf32>
    %54 = tpu.matmul %51, %53, %cst_73 {dimension_numbers = #tpu.dot_dimension_numbers<[1], [0], [0], [1], [0, 0, 1, 1], [], []>} : vector<4x16xf32>, vector<16x16xf32>, vector<4x16xf32> -> vector<4x16xf32>
    %55 = arith.addf %49, %54 : vector<4x16xf32>
    %56 = vector.broadcast %0 : vector<1x16xf32> to vector<4x16xf32>
    %57 = arith.addf %55, %56 : vector<4x16xf32>
    %cst_74 = arith.constant 0.000000e+00 : f32
    %58 = vector.broadcast %cst_74 : f32 to vector<4x16xf32>
    %59 = arith.maximumf %57, %58 : vector<4x16xf32>
    %c0_75 = arith.constant 0 : index
    %c0_76 = arith.constant 0 : index
    %c0_77 = arith.constant 0 : index
    %60 = vector.load %arg4[%c0_75, %c0_76, %c0_77] : memref<1x16x16xf32, #tpu.memory_space<vmem>>, vector<1x4x16xf32>
    %61 = vector.shape_cast %60 : vector<1x4x16xf32> to vector<4x16xf32>
    %62 = vector.shape_cast %59 : vector<4x16xf32> to vector<1x4x16xf32>
    tpu.vector_store %arg4[%c0_75, %c0_76, %c0_77], %62 {strides = array<i32>} : memref<1x16x16xf32, #tpu.memory_space<vmem>>, vector<1x4x16xf32>,
    %cst_78 = arith.constant 0.000000e+00 : f32
    %63 = vector.broadcast %cst_78 : f32 to vector<4x16xf32>
    %c0_79 = arith.constant 0 : index
    %c0_80 = arith.constant 0 : index
    %c1_81 = arith.constant 1 : index
    %c0_82 = arith.constant 0 : index
    %c0_83 = arith.constant 0 : index
    %64 = vector.load %arg1[%c0_79, %c0_80, %c1_81, %c0_82, %c0_83] : memref<1x4x5x5x16xf32, #tpu.memory_space<vmem>>, vector<1x1x1x4x16xf32>
    %65 = vector.shape_cast %64 : vector<1x1x1x4x16xf32> to vector<4x16xf32>
    %c0_84 = arith.constant 0 : index
    %c0_85 = arith.constant 0 : index
    %c0_86 = arith.constant 0 : index
    %66 = vector.load %arg2[%c0_84, %c0_85, %c0_86] : memref<9x16x16xf32, #tpu.memory_space<vmem>>, vector<1x16x16xf32>
    %67 = vector.shape_cast %66 : vector<1x16x16xf32> to vector<16x16xf32>
    %cst_87 = arith.constant dense<0.000000e+00> : vector<4x16xf32>
    %68 = tpu.matmul %65, %67, %cst_87 {dimension_numbers = #tpu.dot_dimension_numbers<[1], [0], [0], [1], [0, 0, 1, 1], [], []>} : vector<4x16xf32>, vector<16x16xf32>, vector<4x16xf32> -> vector<4x16xf32>
    %69 = arith.addf %63, %68 : vector<4x16xf32>
    %c0_88 = arith.constant 0 : index
    %c1_89 = arith.constant 1 : index
    %c1_90 = arith.constant 1 : index
    %c0_91 = arith.constant 0 : index
    %c0_92 = arith.constant 0 : index
    %70 = vector.load %arg1[%c0_88, %c1_89, %c1_90, %c0_91, %c0_92] : memref<1x4x5x5x16xf32, #tpu.memory_space<vmem>>, vector<1x1x1x4x16xf32>
    %71 = vector.shape_cast %70 : vector<1x1x1x4x16xf32> to vector<4x16xf32>
    %c1_93 = arith.constant 1 : index
    %c0_94 = arith.constant 0 : index
    %c0_95 = arith.constant 0 : index
    %72 = vector.load %arg2[%c1_93, %c0_94, %c0_95] : memref<9x16x16xf32, #tpu.memory_space<vmem>>, vector<1x16x16xf32>
    %73 = vector.shape_cast %72 : vector<1x16x16xf32> to vector<16x16xf32>
    %cst_96 = arith.constant dense<0.000000e+00> : vector<4x16xf32>
    %74 = tpu.matmul %71, %73, %cst_96 {dimension_numbers = #tpu.dot_dimension_numbers<[1], [0], [0], [1], [0, 0, 1, 1], [], []>} : vector<4x16xf32>, vector<16x16xf32>, vector<4x16xf32> -> vector<4x16xf32>
    %75 = arith.addf %69, %74 : vector<4x16xf32>
    %c0_97 = arith.constant 0 : index
    %c0_98 = arith.constant 0 : index
    %c1_99 = arith.constant 1 : index
    %c1_100 = arith.constant 1 : index
    %c0_101 = arith.constant 0 : index
    %76 = vector.load %arg1[%c0_97, %c0_98, %c1_99, %c1_100, %c0_101] : memref<1x4x5x5x16xf32, #tpu.memory_space<vmem>>, vector<1x1x1x4x16xf32>
    %77 = vector.shape_cast %76 : vector<1x1x1x4x16xf32> to vector<4x16xf32>
    %c2_102 = arith.constant 2 : index
    %c0_103 = arith.constant 0 : index
    %c0_104 = arith.constant 0 : index
    %78 = vector.load %arg2[%c2_102, %c0_103, %c0_104] : memref<9x16x16xf32, #tpu.memory_space<vmem>>, vector<1x16x16xf32>
    %79 = vector.shape_cast %78 : vector<1x16x16xf32> to vector<16x16xf32>
    %cst_105 = arith.constant dense<0.000000e+00> : vector<4x16xf32>
    %80 = tpu.matmul %77, %79, %cst_105 {dimension_numbers = #tpu.dot_dimension_numbers<[1], [0], [0], [1], [0, 0, 1, 1], [], []>} : vector<4x16xf32>, vector<16x16xf32>, vector<4x16xf32> -> vector<4x16xf32>
    %81 = arith.addf %75, %80 : vector<4x16xf32>
    %c0_106 = arith.constant 0 : index
    %c2_107 = arith.constant 2 : index
    %c1_108 = arith.constant 1 : index
    %c0_109 = arith.constant 0 : index
    %c0_110 = arith.constant 0 : index
    %82 = vector.load %arg1[%c0_106, %c2_107, %c1_108, %c0_109, %c0_110] : memref<1x4x5x5x16xf32, #tpu.memory_space<vmem>>, vector<1x1x1x4x16xf32>
    %83 = vector.shape_cast %82 : vector<1x1x1x4x16xf32> to vector<4x16xf32>
    %c3_111 = arith.constant 3 : index
    %c0_112 = arith.constant 0 : index
    %c0_113 = arith.constant 0 : index
    %84 = vector.load %arg2[%c3_111, %c0_112, %c0_113] : memref<9x16x16xf32, #tpu.memory_space<vmem>>, vector<1x16x16xf32>
    %85 = vector.shape_cast %84 : vector<1x16x16xf32> to vector<16x16xf32>
    %cst_114 = arith.constant dense<0.000000e+00> : vector<4x16xf32>
    %86 = tpu.matmul %83, %85, %cst_114 {dimension_numbers = #tpu.dot_dimension_numbers<[1], [0], [0], [1], [0, 0, 1, 1], [], []>} : vector<4x16xf32>, vector<16x16xf32>, vector<4x16xf32> -> vector<4x16xf32>
    %87 = arith.addf %81, %86 : vector<4x16xf32>
    %c0_115 = arith.constant 0 : index
    %c3_116 = arith.constant 3 : index
    %c1_117 = arith.constant 1 : index
    %c0_118 = arith.constant 0 : index
    %c0_119 = arith.constant 0 : index
    %88 = vector.load %arg1[%c0_115, %c3_116, %c1_117, %c0_118, %c0_119] : memref<1x4x5x5x16xf32, #tpu.memory_space<vmem>>, vector<1x1x1x4x16xf32>
    %89 = vector.shape_cast %88 : vector<1x1x1x4x16xf32> to vector<4x16xf32>
    %c4_120 = arith.constant 4 : index
    %c0_121 = arith.constant 0 : index
    %c0_122 = arith.constant 0 : index
    %90 = vector.load %arg2[%c4_120, %c0_121, %c0_122] : memref<9x16x16xf32, #tpu.memory_space<vmem>>, vector<1x16x16xf32>
    %91 = vector.shape_cast %90 : vector<1x16x16xf32> to vector<16x16xf32>
    %cst_123 = arith.constant dense<0.000000e+00> : vector<4x16xf32>
    %92 = tpu.matmul %89, %91, %cst_123 {dimension_numbers = #tpu.dot_dimension_numbers<[1], [0], [0], [1], [0, 0, 1, 1], [], []>} : vector<4x16xf32>, vector<16x16xf32>, vector<4x16xf32> -> vector<4x16xf32>
    %93 = arith.addf %87, %92 : vector<4x16xf32>
    %c0_124 = arith.constant 0 : index
    %c2_125 = arith.constant 2 : index
    %c1_126 = arith.constant 1 : index
    %c1_127 = arith.constant 1 : index
    %c0_128 = arith.constant 0 : index
    %94 = vector.load %arg1[%c0_124, %c2_125, %c1_126, %c1_127, %c0_128] : memref<1x4x5x5x16xf32, #tpu.memory_space<vmem>>, vector<1x1x1x4x16xf32>
    %95 = vector.shape_cast %94 : vector<1x1x1x4x16xf32> to vector<4x16xf32>
    %c5_129 = arith.constant 5 : index
    %c0_130 = arith.constant 0 : index
    %c0_131 = arith.constant 0 : index
    %96 = vector.load %arg2[%c5_129, %c0_130, %c0_131] : memref<9x16x16xf32, #tpu.memory_space<vmem>>, vector<1x16x16xf32>
    %97 = vector.shape_cast %96 : vector<1x16x16xf32> to vector<16x16xf32>
    %cst_132 = arith.constant dense<0.000000e+00> : vector<4x16xf32>
    %98 = tpu.matmul %95, %97, %cst_132 {dimension_numbers = #tpu.dot_dimension_numbers<[1], [0], [0], [1], [0, 0, 1, 1], [], []>} : vector<4x16xf32>, vector<16x16xf32>, vector<4x16xf32> -> vector<4x16xf32>
    %99 = arith.addf %93, %98 : vector<4x16xf32>
    %c0_133 = arith.constant 0 : index
    %c0_134 = arith.constant 0 : index
    %c2_135 = arith.constant 2 : index
    %c0_136 = arith.constant 0 : index
    %c0_137 = arith.constant 0 : index
    %100 = vector.load %arg1[%c0_133, %c0_134, %c2_135, %c0_136, %c0_137] : memref<1x4x5x5x16xf32, #tpu.memory_space<vmem>>, vector<1x1x1x4x16xf32>
    %101 = vector.shape_cast %100 : vector<1x1x1x4x16xf32> to vector<4x16xf32>
    %c6_138 = arith.constant 6 : index
    %c0_139 = arith.constant 0 : index
    %c0_140 = arith.constant 0 : index
    %102 = vector.load %arg2[%c6_138, %c0_139, %c0_140] : memref<9x16x16xf32, #tpu.memory_space<vmem>>, vector<1x16x16xf32>
    %103 = vector.shape_cast %102 : vector<1x16x16xf32> to vector<16x16xf32>
    %cst_141 = arith.constant dense<0.000000e+00> : vector<4x16xf32>
    %104 = tpu.matmul %101, %103, %cst_141 {dimension_numbers = #tpu.dot_dimension_numbers<[1], [0], [0], [1], [0, 0, 1, 1], [], []>} : vector<4x16xf32>, vector<16x16xf32>, vector<4x16xf32> -> vector<4x16xf32>
    %105 = arith.addf %99, %104 : vector<4x16xf32>
    %c0_142 = arith.constant 0 : index
    %c1_143 = arith.constant 1 : index
    %c2_144 = arith.constant 2 : index
    %c0_145 = arith.constant 0 : index
    %c0_146 = arith.constant 0 : index
    %106 = vector.load %arg1[%c0_142, %c1_143, %c2_144, %c0_145, %c0_146] : memref<1x4x5x5x16xf32, #tpu.memory_space<vmem>>, vector<1x1x1x4x16xf32>
    %107 = vector.shape_cast %106 : vector<1x1x1x4x16xf32> to vector<4x16xf32>
    %c7_147 = arith.constant 7 : index
    %c0_148 = arith.constant 0 : index
    %c0_149 = arith.constant 0 : index
    %108 = vector.load %arg2[%c7_147, %c0_148, %c0_149] : memref<9x16x16xf32, #tpu.memory_space<vmem>>, vector<1x16x16xf32>
    %109 = vector.shape_cast %108 : vector<1x16x16xf32> to vector<16x16xf32>
    %cst_150 = arith.constant dense<0.000000e+00> : vector<4x16xf32>
    %110 = tpu.matmul %107, %109, %cst_150 {dimension_numbers = #tpu.dot_dimension_numbers<[1], [0], [0], [1], [0, 0, 1, 1], [], []>} : vector<4x16xf32>, vector<16x16xf32>, vector<4x16xf32> -> vector<4x16xf32>
    %111 = arith.addf %105, %110 : vector<4x16xf32>
    %c0_151 = arith.constant 0 : index
    %c0_152 = arith.constant 0 : index
    %c2_153 = arith.constant 2 : index
    %c1_154 = arith.constant 1 : index
    %c0_155 = arith.constant 0 : index
    %112 = vector.load %arg1[%c0_151, %c0_152, %c2_153, %c1_154, %c0_155] : memref<1x4x5x5x16xf32, #tpu.memory_space<vmem>>, vector<1x1x1x4x16xf32>
    %113 = vector.shape_cast %112 : vector<1x1x1x4x16xf32> to vector<4x16xf32>
    %c8_156 = arith.constant 8 : index
    %c0_157 = arith.constant 0 : index
    %c0_158 = arith.constant 0 : index
    %114 = vector.load %arg2[%c8_156, %c0_157, %c0_158] : memref<9x16x16xf32, #tpu.memory_space<vmem>>, vector<1x16x16xf32>
    %115 = vector.shape_cast %114 : vector<1x16x16xf32> to vector<16x16xf32>
    %cst_159 = arith.constant dense<0.000000e+00> : vector<4x16xf32>
    %116 = tpu.matmul %113, %115, %cst_159 {dimension_numbers = #tpu.dot_dimension_numbers<[1], [0], [0], [1], [0, 0, 1, 1], [], []>} : vector<4x16xf32>, vector<16x16xf32>, vector<4x16xf32> -> vector<4x16xf32>
    %117 = arith.addf %111, %116 : vector<4x16xf32>
    %118 = vector.broadcast %0 : vector<1x16xf32> to vector<4x16xf32>
    %119 = arith.addf %117, %118 : vector<4x16xf32>
    %cst_160 = arith.constant 0.000000e+00 : f32
    %120 = vector.broadcast %cst_160 : f32 to vector<4x16xf32>
    %121 = arith.maximumf %119, %120 : vector<4x16xf32>
    %c0_161 = arith.constant 0 : index
    %c4_162 = arith.constant 4 : index
    %c0_163 = arith.constant 0 : index
    %122 = vector.load %arg4[%c0_161, %c4_162, %c0_163] : memref<1x16x16xf32, #tpu.memory_space<vmem>>, vector<1x4x16xf32>
    %123 = vector.shape_cast %122 : vector<1x4x16xf32> to vector<4x16xf32>
    %124 = vector.shape_cast %121 : vector<4x16xf32> to vector<1x4x16xf32>
    tpu.vector_store %arg4[%c0_161, %c4_162, %c0_163], %124 {strides = array<i32>} : memref<1x16x16xf32, #tpu.memory_space<vmem>>, vector<1x4x16xf32>,
    %cst_164 = arith.constant 0.000000e+00 : f32
    %125 = vector.broadcast %cst_164 : f32 to vector<4x16xf32>
    %c0_165 = arith.constant 0 : index
    %c0_166 = arith.constant 0 : index
    %c2_167 = arith.constant 2 : index
    %c0_168 = arith.constant 0 : index
    %c0_169 = arith.constant 0 : index
    %126 = vector.load %arg1[%c0_165, %c0_166, %c2_167, %c0_168, %c0_169] : memref<1x4x5x5x16xf32, #tpu.memory_space<vmem>>, vector<1x1x1x4x16xf32>
    %127 = vector.shape_cast %126 : vector<1x1x1x4x16xf32> to vector<4x16xf32>
    %c0_170 = arith.constant 0 : index
    %c0_171 = arith.constant 0 : index
    %c0_172 = arith.constant 0 : index
    %128 = vector.load %arg2[%c0_170, %c0_171, %c0_172] : memref<9x16x16xf32, #tpu.memory_space<vmem>>, vector<1x16x16xf32>
    %129 = vector.shape_cast %128 : vector<1x16x16xf32> to vector<16x16xf32>
    %cst_173 = arith.constant dense<0.000000e+00> : vector<4x16xf32>
    %130 = tpu.matmul %127, %129, %cst_173 {dimension_numbers = #tpu.dot_dimension_numbers<[1], [0], [0], [1], [0, 0, 1, 1], [], []>} : vector<4x16xf32>, vector<16x16xf32>, vector<4x16xf32> -> vector<4x16xf32>
    %131 = arith.addf %125, %130 : vector<4x16xf32>
    %c0_174 = arith.constant 0 : index
    %c1_175 = arith.constant 1 : index
    %c2_176 = arith.constant 2 : index
    %c0_177 = arith.constant 0 : index
    %c0_178 = arith.constant 0 : index
    %132 = vector.load %arg1[%c0_174, %c1_175, %c2_176, %c0_177, %c0_178] : memref<1x4x5x5x16xf32, #tpu.memory_space<vmem>>, vector<1x1x1x4x16xf32>
    %133 = vector.shape_cast %132 : vector<1x1x1x4x16xf32> to vector<4x16xf32>
    %c1_179 = arith.constant 1 : index
    %c0_180 = arith.constant 0 : index
    %c0_181 = arith.constant 0 : index
    %134 = vector.load %arg2[%c1_179, %c0_180, %c0_181] : memref<9x16x16xf32, #tpu.memory_space<vmem>>, vector<1x16x16xf32>
    %135 = vector.shape_cast %134 : vector<1x16x16xf32> to vector<16x16xf32>
    %cst_182 = arith.constant dense<0.000000e+00> : vector<4x16xf32>
    %136 = tpu.matmul %133, %135, %cst_182 {dimension_numbers = #tpu.dot_dimension_numbers<[1], [0], [0], [1], [0, 0, 1, 1], [], []>} : vector<4x16xf32>, vector<16x16xf32>, vector<4x16xf32> -> vector<4x16xf32>
    %137 = arith.addf %131, %136 : vector<4x16xf32>
    %c0_183 = arith.constant 0 : index
    %c0_184 = arith.constant 0 : index
    %c2_185 = arith.constant 2 : index
    %c1_186 = arith.constant 1 : index
    %c0_187 = arith.constant 0 : index
    %138 = vector.load %arg1[%c0_183, %c0_184, %c2_185, %c1_186, %c0_187] : memref<1x4x5x5x16xf32, #tpu.memory_space<vmem>>, vector<1x1x1x4x16xf32>
    %139 = vector.shape_cast %138 : vector<1x1x1x4x16xf32> to vector<4x16xf32>
    %c2_188 = arith.constant 2 : index
    %c0_189 = arith.constant 0 : index
    %c0_190 = arith.constant 0 : index
    %140 = vector.load %arg2[%c2_188, %c0_189, %c0_190] : memref<9x16x16xf32, #tpu.memory_space<vmem>>, vector<1x16x16xf32>
    %141 = vector.shape_cast %140 : vector<1x16x16xf32> to vector<16x16xf32>
    %cst_191 = arith.constant dense<0.000000e+00> : vector<4x16xf32>
    %142 = tpu.matmul %139, %141, %cst_191 {dimension_numbers = #tpu.dot_dimension_numbers<[1], [0], [0], [1], [0, 0, 1, 1], [], []>} : vector<4x16xf32>, vector<16x16xf32>, vector<4x16xf32> -> vector<4x16xf32>
    %143 = arith.addf %137, %142 : vector<4x16xf32>
    %c0_192 = arith.constant 0 : index
    %c2_193 = arith.constant 2 : index
    %c2_194 = arith.constant 2 : index
    %c0_195 = arith.constant 0 : index
    %c0_196 = arith.constant 0 : index
    %144 = vector.load %arg1[%c0_192, %c2_193, %c2_194, %c0_195, %c0_196] : memref<1x4x5x5x16xf32, #tpu.memory_space<vmem>>, vector<1x1x1x4x16xf32>
    %145 = vector.shape_cast %144 : vector<1x1x1x4x16xf32> to vector<4x16xf32>
    %c3_197 = arith.constant 3 : index
    %c0_198 = arith.constant 0 : index
    %c0_199 = arith.constant 0 : index
    %146 = vector.load %arg2[%c3_197, %c0_198, %c0_199] : memref<9x16x16xf32, #tpu.memory_space<vmem>>, vector<1x16x16xf32>
    %147 = vector.shape_cast %146 : vector<1x16x16xf32> to vector<16x16xf32>
    %cst_200 = arith.constant dense<0.000000e+00> : vector<4x16xf32>
    %148 = tpu.matmul %145, %147, %cst_200 {dimension_numbers = #tpu.dot_dimension_numbers<[1], [0], [0], [1], [0, 0, 1, 1], [], []>} : vector<4x16xf32>, vector<16x16xf32>, vector<4x16xf32> -> vector<4x16xf32>
    %149 = arith.addf %143, %148 : vector<4x16xf32>
    %c0_201 = arith.constant 0 : index
    %c3_202 = arith.constant 3 : index
    %c2_203 = arith.constant 2 : index
    %c0_204 = arith.constant 0 : index
    %c0_205 = arith.constant 0 : index
    %150 = vector.load %arg1[%c0_201, %c3_202, %c2_203, %c0_204, %c0_205] : memref<1x4x5x5x16xf32, #tpu.memory_space<vmem>>, vector<1x1x1x4x16xf32>
    %151 = vector.shape_cast %150 : vector<1x1x1x4x16xf32> to vector<4x16xf32>
    %c4_206 = arith.constant 4 : index
    %c0_207 = arith.constant 0 : index
    %c0_208 = arith.constant 0 : index
    %152 = vector.load %arg2[%c4_206, %c0_207, %c0_208] : memref<9x16x16xf32, #tpu.memory_space<vmem>>, vector<1x16x16xf32>
    %153 = vector.shape_cast %152 : vector<1x16x16xf32> to vector<16x16xf32>
    %cst_209 = arith.constant dense<0.000000e+00> : vector<4x16xf32>
    %154 = tpu.matmul %151, %153, %cst_209 {dimension_numbers = #tpu.dot_dimension_numbers<[1], [0], [0], [1], [0, 0, 1, 1], [], []>} : vector<4x16xf32>, vector<16x16xf32>, vector<4x16xf32> -> vector<4x16xf32>
    %155 = arith.addf %149, %154 : vector<4x16xf32>
    %c0_210 = arith.constant 0 : index
    %c2_211 = arith.constant 2 : index
    %c2_212 = arith.constant 2 : index
    %c1_213 = arith.constant 1 : index
    %c0_214 = arith.constant 0 : index
    %156 = vector.load %arg1[%c0_210, %c2_211, %c2_212, %c1_213, %c0_214] : memref<1x4x5x5x16xf32, #tpu.memory_space<vmem>>, vector<1x1x1x4x16xf32>
    %157 = vector.shape_cast %156 : vector<1x1x1x4x16xf32> to vector<4x16xf32>
    %c5_215 = arith.constant 5 : index
    %c0_216 = arith.constant 0 : index
    %c0_217 = arith.constant 0 : index
    %158 = vector.load %arg2[%c5_215, %c0_216, %c0_217] : memref<9x16x16xf32, #tpu.memory_space<vmem>>, vector<1x16x16xf32>
    %159 = vector.shape_cast %158 : vector<1x16x16xf32> to vector<16x16xf32>
    %cst_218 = arith.constant dense<0.000000e+00> : vector<4x16xf32>
    %160 = tpu.matmul %157, %159, %cst_218 {dimension_numbers = #tpu.dot_dimension_numbers<[1], [0], [0], [1], [0, 0, 1, 1], [], []>} : vector<4x16xf32>, vector<16x16xf32>, vector<4x16xf32> -> vector<4x16xf32>
    %161 = arith.addf %155, %160 : vector<4x16xf32>
    %c0_219 = arith.constant 0 : index
    %c0_220 = arith.constant 0 : index
    %c3_221 = arith.constant 3 : index
    %c0_222 = arith.constant 0 : index
    %c0_223 = arith.constant 0 : index
    %162 = vector.load %arg1[%c0_219, %c0_220, %c3_221, %c0_222, %c0_223] : memref<1x4x5x5x16xf32, #tpu.memory_space<vmem>>, vector<1x1x1x4x16xf32>
    %163 = vector.shape_cast %162 : vector<1x1x1x4x16xf32> to vector<4x16xf32>
    %c6_224 = arith.constant 6 : index
    %c0_225 = arith.constant 0 : index
    %c0_226 = arith.constant 0 : index
    %164 = vector.load %arg2[%c6_224, %c0_225, %c0_226] : memref<9x16x16xf32, #tpu.memory_space<vmem>>, vector<1x16x16xf32>
    %165 = vector.shape_cast %164 : vector<1x16x16xf32> to vector<16x16xf32>
    %cst_227 = arith.constant dense<0.000000e+00> : vector<4x16xf32>
    %166 = tpu.matmul %163, %165, %cst_227 {dimension_numbers = #tpu.dot_dimension_numbers<[1], [0], [0], [1], [0, 0, 1, 1], [], []>} : vector<4x16xf32>, vector<16x16xf32>, vector<4x16xf32> -> vector<4x16xf32>
    %167 = arith.addf %161, %166 : vector<4x16xf32>
    %c0_228 = arith.constant 0 : index
    %c1_229 = arith.constant 1 : index
    %c3_230 = arith.constant 3 : index
    %c0_231 = arith.constant 0 : index
    %c0_232 = arith.constant 0 : index
    %168 = vector.load %arg1[%c0_228, %c1_229, %c3_230, %c0_231, %c0_232] : memref<1x4x5x5x16xf32, #tpu.memory_space<vmem>>, vector<1x1x1x4x16xf32>
    %169 = vector.shape_cast %168 : vector<1x1x1x4x16xf32> to vector<4x16xf32>
    %c7_233 = arith.constant 7 : index
    %c0_234 = arith.constant 0 : index
    %c0_235 = arith.constant 0 : index
    %170 = vector.load %arg2[%c7_233, %c0_234, %c0_235] : memref<9x16x16xf32, #tpu.memory_space<vmem>>, vector<1x16x16xf32>
    %171 = vector.shape_cast %170 : vector<1x16x16xf32> to vector<16x16xf32>
    %cst_236 = arith.constant dense<0.000000e+00> : vector<4x16xf32>
    %172 = tpu.matmul %169, %171, %cst_236 {dimension_numbers = #tpu.dot_dimension_numbers<[1], [0], [0], [1], [0, 0, 1, 1], [], []>} : vector<4x16xf32>, vector<16x16xf32>, vector<4x16xf32> -> vector<4x16xf32>
    %173 = arith.addf %167, %172 : vector<4x16xf32>
    %c0_237 = arith.constant 0 : index
    %c0_238 = arith.constant 0 : index
    %c3_239 = arith.constant 3 : index
    %c1_240 = arith.constant 1 : index
    %c0_241 = arith.constant 0 : index
    %174 = vector.load %arg1[%c0_237, %c0_238, %c3_239, %c1_240, %c0_241] : memref<1x4x5x5x16xf32, #tpu.memory_space<vmem>>, vector<1x1x1x4x16xf32>
    %175 = vector.shape_cast %174 : vector<1x1x1x4x16xf32> to vector<4x16xf32>
    %c8_242 = arith.constant 8 : index
    %c0_243 = arith.constant 0 : index
    %c0_244 = arith.constant 0 : index
    %176 = vector.load %arg2[%c8_242, %c0_243, %c0_244] : memref<9x16x16xf32, #tpu.memory_space<vmem>>, vector<1x16x16xf32>
    %177 = vector.shape_cast %176 : vector<1x16x16xf32> to vector<16x16xf32>
    %cst_245 = arith.constant dense<0.000000e+00> : vector<4x16xf32>
    %178 = tpu.matmul %175, %177, %cst_245 {dimension_numbers = #tpu.dot_dimension_numbers<[1], [0], [0], [1], [0, 0, 1, 1], [], []>} : vector<4x16xf32>, vector<16x16xf32>, vector<4x16xf32> -> vector<4x16xf32>
    %179 = arith.addf %173, %178 : vector<4x16xf32>
    %180 = vector.broadcast %0 : vector<1x16xf32> to vector<4x16xf32>
    %181 = arith.addf %179, %180 : vector<4x16xf32>
    %cst_246 = arith.constant 0.000000e+00 : f32
    %182 = vector.broadcast %cst_246 : f32 to vector<4x16xf32>
    %183 = arith.maximumf %181, %182 : vector<4x16xf32>
    %c0_247 = arith.constant 0 : index
    %c8_248 = arith.constant 8 : index
    %c0_249 = arith.constant 0 : index
    %184 = vector.load %arg4[%c0_247, %c8_248, %c0_249] : memref<1x16x16xf32, #tpu.memory_space<vmem>>, vector<1x4x16xf32>
    %185 = vector.shape_cast %184 : vector<1x4x16xf32> to vector<4x16xf32>
    %186 = vector.shape_cast %183 : vector<4x16xf32> to vector<1x4x16xf32>
    tpu.vector_store %arg4[%c0_247, %c8_248, %c0_249], %186 {strides = array<i32>} : memref<1x16x16xf32, #tpu.memory_space<vmem>>, vector<1x4x16xf32>,
    %cst_250 = arith.constant 0.000000e+00 : f32
    %187 = vector.broadcast %cst_250 : f32 to vector<4x16xf32>
    %c0_251 = arith.constant 0 : index
    %c0_252 = arith.constant 0 : index
    %c3_253 = arith.constant 3 : index
    %c0_254 = arith.constant 0 : index
    %c0_255 = arith.constant 0 : index
    %188 = vector.load %arg1[%c0_251, %c0_252, %c3_253, %c0_254, %c0_255] : memref<1x4x5x5x16xf32, #tpu.memory_space<vmem>>, vector<1x1x1x4x16xf32>
    %189 = vector.shape_cast %188 : vector<1x1x1x4x16xf32> to vector<4x16xf32>
    %c0_256 = arith.constant 0 : index
    %c0_257 = arith.constant 0 : index
    %c0_258 = arith.constant 0 : index
    %190 = vector.load %arg2[%c0_256, %c0_257, %c0_258] : memref<9x16x16xf32, #tpu.memory_space<vmem>>, vector<1x16x16xf32>
    %191 = vector.shape_cast %190 : vector<1x16x16xf32> to vector<16x16xf32>
    %cst_259 = arith.constant dense<0.000000e+00> : vector<4x16xf32>
    %192 = tpu.matmul %189, %191, %cst_259 {dimension_numbers = #tpu.dot_dimension_numbers<[1], [0], [0], [1], [0, 0, 1, 1], [], []>} : vector<4x16xf32>, vector<16x16xf32>, vector<4x16xf32> -> vector<4x16xf32>
    %193 = arith.addf %187, %192 : vector<4x16xf32>
    %c0_260 = arith.constant 0 : index
    %c1_261 = arith.constant 1 : index
    %c3_262 = arith.constant 3 : index
    %c0_263 = arith.constant 0 : index
    %c0_264 = arith.constant 0 : index
    %194 = vector.load %arg1[%c0_260, %c1_261, %c3_262, %c0_263, %c0_264] : memref<1x4x5x5x16xf32, #tpu.memory_space<vmem>>, vector<1x1x1x4x16xf32>
    %195 = vector.shape_cast %194 : vector<1x1x1x4x16xf32> to vector<4x16xf32>
    %c1_265 = arith.constant 1 : index
    %c0_266 = arith.constant 0 : index
    %c0_267 = arith.constant 0 : index
    %196 = vector.load %arg2[%c1_265, %c0_266, %c0_267] : memref<9x16x16xf32, #tpu.memory_space<vmem>>, vector<1x16x16xf32>
    %197 = vector.shape_cast %196 : vector<1x16x16xf32> to vector<16x16xf32>
    %cst_268 = arith.constant dense<0.000000e+00> : vector<4x16xf32>
    %198 = tpu.matmul %195, %197, %cst_268 {dimension_numbers = #tpu.dot_dimension_numbers<[1], [0], [0], [1], [0, 0, 1, 1], [], []>} : vector<4x16xf32>, vector<16x16xf32>, vector<4x16xf32> -> vector<4x16xf32>
    %199 = arith.addf %193, %198 : vector<4x16xf32>
    %c0_269 = arith.constant 0 : index
    %c0_270 = arith.constant 0 : index
    %c3_271 = arith.constant 3 : index
    %c1_272 = arith.constant 1 : index
    %c0_273 = arith.constant 0 : index
    %200 = vector.load %arg1[%c0_269, %c0_270, %c3_271, %c1_272, %c0_273] : memref<1x4x5x5x16xf32, #tpu.memory_space<vmem>>, vector<1x1x1x4x16xf32>
    %201 = vector.shape_cast %200 : vector<1x1x1x4x16xf32> to vector<4x16xf32>
    %c2_274 = arith.constant 2 : index
    %c0_275 = arith.constant 0 : index
    %c0_276 = arith.constant 0 : index
    %202 = vector.load %arg2[%c2_274, %c0_275, %c0_276] : memref<9x16x16xf32, #tpu.memory_space<vmem>>, vector<1x16x16xf32>
    %203 = vector.shape_cast %202 : vector<1x16x16xf32> to vector<16x16xf32>
    %cst_277 = arith.constant dense<0.000000e+00> : vector<4x16xf32>
    %204 = tpu.matmul %201, %203, %cst_277 {dimension_numbers = #tpu.dot_dimension_numbers<[1], [0], [0], [1], [0, 0, 1, 1], [], []>} : vector<4x16xf32>, vector<16x16xf32>, vector<4x16xf32> -> vector<4x16xf32>
    %205 = arith.addf %199, %204 : vector<4x16xf32>
    %c0_278 = arith.constant 0 : index
    %c2_279 = arith.constant 2 : index
    %c3_280 = arith.constant 3 : index
    %c0_281 = arith.constant 0 : index
    %c0_282 = arith.constant 0 : index
    %206 = vector.load %arg1[%c0_278, %c2_279, %c3_280, %c0_281, %c0_282] : memref<1x4x5x5x16xf32, #tpu.memory_space<vmem>>, vector<1x1x1x4x16xf32>
    %207 = vector.shape_cast %206 : vector<1x1x1x4x16xf32> to vector<4x16xf32>
    %c3_283 = arith.constant 3 : index
    %c0_284 = arith.constant 0 : index
    %c0_285 = arith.constant 0 : index
    %208 = vector.load %arg2[%c3_283, %c0_284, %c0_285] : memref<9x16x16xf32, #tpu.memory_space<vmem>>, vector<1x16x16xf32>
    %209 = vector.shape_cast %208 : vector<1x16x16xf32> to vector<16x16xf32>
    %cst_286 = arith.constant dense<0.000000e+00> : vector<4x16xf32>
    %210 = tpu.matmul %207, %209, %cst_286 {dimension_numbers = #tpu.dot_dimension_numbers<[1], [0], [0], [1], [0, 0, 1, 1], [], []>} : vector<4x16xf32>, vector<16x16xf32>, vector<4x16xf32> -> vector<4x16xf32>
    %211 = arith.addf %205, %210 : vector<4x16xf32>
    %c0_287 = arith.constant 0 : index
    %c3_288 = arith.constant 3 : index
    %c3_289 = arith.constant 3 : index
    %c0_290 = arith.constant 0 : index
    %c0_291 = arith.constant 0 : index
    %212 = vector.load %arg1[%c0_287, %c3_288, %c3_289, %c0_290, %c0_291] : memref<1x4x5x5x16xf32, #tpu.memory_space<vmem>>, vector<1x1x1x4x16xf32>
    %213 = vector.shape_cast %212 : vector<1x1x1x4x16xf32> to vector<4x16xf32>
    %c4_292 = arith.constant 4 : index
    %c0_293 = arith.constant 0 : index
    %c0_294 = arith.constant 0 : index
    %214 = vector.load %arg2[%c4_292, %c0_293, %c0_294] : memref<9x16x16xf32, #tpu.memory_space<vmem>>, vector<1x16x16xf32>
    %215 = vector.shape_cast %214 : vector<1x16x16xf32> to vector<16x16xf32>
    %cst_295 = arith.constant dense<0.000000e+00> : vector<4x16xf32>
    %216 = tpu.matmul %213, %215, %cst_295 {dimension_numbers = #tpu.dot_dimension_numbers<[1], [0], [0], [1], [0, 0, 1, 1], [], []>} : vector<4x16xf32>, vector<16x16xf32>, vector<4x16xf32> -> vector<4x16xf32>
    %217 = arith.addf %211, %216 : vector<4x16xf32>
    %c0_296 = arith.constant 0 : index
    %c2_297 = arith.constant 2 : index
    %c3_298 = arith.constant 3 : index
    %c1_299 = arith.constant 1 : index
    %c0_300 = arith.constant 0 : index
    %218 = vector.load %arg1[%c0_296, %c2_297, %c3_298, %c1_299, %c0_300] : memref<1x4x5x5x16xf32, #tpu.memory_space<vmem>>, vector<1x1x1x4x16xf32>
    %219 = vector.shape_cast %218 : vector<1x1x1x4x16xf32> to vector<4x16xf32>
    %c5_301 = arith.constant 5 : index
    %c0_302 = arith.constant 0 : index
    %c0_303 = arith.constant 0 : index
    %220 = vector.load %arg2[%c5_301, %c0_302, %c0_303] : memref<9x16x16xf32, #tpu.memory_space<vmem>>, vector<1x16x16xf32>
    %221 = vector.shape_cast %220 : vector<1x16x16xf32> to vector<16x16xf32>
    %cst_304 = arith.constant dense<0.000000e+00> : vector<4x16xf32>
    %222 = tpu.matmul %219, %221, %cst_304 {dimension_numbers = #tpu.dot_dimension_numbers<[1], [0], [0], [1], [0, 0, 1, 1], [], []>} : vector<4x16xf32>, vector<16x16xf32>, vector<4x16xf32> -> vector<4x16xf32>
    %223 = arith.addf %217, %222 : vector<4x16xf32>
    %c0_305 = arith.constant 0 : index
    %c0_306 = arith.constant 0 : index
    %c4_307 = arith.constant 4 : index
    %c0_308 = arith.constant 0 : index
    %c0_309 = arith.constant 0 : index
    %224 = vector.load %arg1[%c0_305, %c0_306, %c4_307, %c0_308, %c0_309] : memref<1x4x5x5x16xf32, #tpu.memory_space<vmem>>, vector<1x1x1x4x16xf32>
    %225 = vector.shape_cast %224 : vector<1x1x1x4x16xf32> to vector<4x16xf32>
    %c6_310 = arith.constant 6 : index
    %c0_311 = arith.constant 0 : index
    %c0_312 = arith.constant 0 : index
    %226 = vector.load %arg2[%c6_310, %c0_311, %c0_312] : memref<9x16x16xf32, #tpu.memory_space<vmem>>, vector<1x16x16xf32>
    %227 = vector.shape_cast %226 : vector<1x16x16xf32> to vector<16x16xf32>
    %cst_313 = arith.constant dense<0.000000e+00> : vector<4x16xf32>
    %228 = tpu.matmul %225, %227, %cst_313 {dimension_numbers = #tpu.dot_dimension_numbers<[1], [0], [0], [1], [0, 0, 1, 1], [], []>} : vector<4x16xf32>, vector<16x16xf32>, vector<4x16xf32> -> vector<4x16xf32>
    %229 = arith.addf %223, %228 : vector<4x16xf32>
    %c0_314 = arith.constant 0 : index
    %c1_315 = arith.constant 1 : index
    %c4_316 = arith.constant 4 : index
    %c0_317 = arith.constant 0 : index
    %c0_318 = arith.constant 0 : index
    %230 = vector.load %arg1[%c0_314, %c1_315, %c4_316, %c0_317, %c0_318] : memref<1x4x5x5x16xf32, #tpu.memory_space<vmem>>, vector<1x1x1x4x16xf32>
    %231 = vector.shape_cast %230 : vector<1x1x1x4x16xf32> to vector<4x16xf32>
    %c7_319 = arith.constant 7 : index
    %c0_320 = arith.constant 0 : index
    %c0_321 = arith.constant 0 : index
    %232 = vector.load %arg2[%c7_319, %c0_320, %c0_321] : memref<9x16x16xf32, #tpu.memory_space<vmem>>, vector<1x16x16xf32>
    %233 = vector.shape_cast %232 : vector<1x16x16xf32> to vector<16x16xf32>
    %cst_322 = arith.constant dense<0.000000e+00> : vector<4x16xf32>
    %234 = tpu.matmul %231, %233, %cst_322 {dimension_numbers = #tpu.dot_dimension_numbers<[1], [0], [0], [1], [0, 0, 1, 1], [], []>} : vector<4x16xf32>, vector<16x16xf32>, vector<4x16xf32> -> vector<4x16xf32>
    %235 = arith.addf %229, %234 : vector<4x16xf32>
    %c0_323 = arith.constant 0 : index
    %c0_324 = arith.constant 0 : index
    %c4_325 = arith.constant 4 : index
    %c1_326 = arith.constant 1 : index
    %c0_327 = arith.constant 0 : index
    %236 = vector.load %arg1[%c0_323, %c0_324, %c4_325, %c1_326, %c0_327] : memref<1x4x5x5x16xf32, #tpu.memory_space<vmem>>, vector<1x1x1x4x16xf32>
    %237 = vector.shape_cast %236 : vector<1x1x1x4x16xf32> to vector<4x16xf32>
    %c8_328 = arith.constant 8 : index
    %c0_329 = arith.constant 0 : index
    %c0_330 = arith.constant 0 : index
    %238 = vector.load %arg2[%c8_328, %c0_329, %c0_330] : memref<9x16x16xf32, #tpu.memory_space<vmem>>, vector<1x16x16xf32>
    %239 = vector.shape_cast %238 : vector<1x16x16xf32> to vector<16x16xf32>
    %cst_331 = arith.constant dense<0.000000e+00> : vector<4x16xf32>
    %240 = tpu.matmul %237, %239, %cst_331 {dimension_numbers = #tpu.dot_dimension_numbers<[1], [0], [0], [1], [0, 0, 1, 1], [], []>} : vector<4x16xf32>, vector<16x16xf32>, vector<4x16xf32> -> vector<4x16xf32>
    %241 = arith.addf %235, %240 : vector<4x16xf32>
    %242 = vector.broadcast %0 : vector<1x16xf32> to vector<4x16xf32>
    %243 = arith.addf %241, %242 : vector<4x16xf32>
    %cst_332 = arith.constant 0.000000e+00 : f32
    %244 = vector.broadcast %cst_332 : f32 to vector<4x16xf32>
    %245 = arith.maximumf %243, %244 : vector<4x16xf32>
    %c0_333 = arith.constant 0 : index
    %c12 = arith.constant 12 : index
    %c0_334 = arith.constant 0 : index
    %246 = vector.load %arg4[%c0_333, %c12, %c0_334] : memref<1x16x16xf32, #tpu.memory_space<vmem>>, vector<1x4x16xf32>
    %247 = vector.shape_cast %246 : vector<1x4x16xf32> to vector<4x16xf32>
    %248 = vector.shape_cast %245 : vector<4x16xf32> to vector<1x4x16xf32>
    tpu.vector_store %arg4[%c0_333, %c12, %c0_334], %248 {strides = array<i32>} : memref<1x16x16xf32, #tpu.memory_space<vmem>>, vector<1x4x16xf32>,
    return
  }
  func.func @transform_0(%arg0: i32) -> (i32, i32, i32, i32, i32) {
    %c0_i32 = arith.constant 0 : i32
    %c0_i32_0 = arith.constant 0 : i32
    %c0_i32_1 = arith.constant 0 : i32
    %c0_i32_2 = arith.constant 0 : i32
    %c0_i32_3 = arith.constant 0 : i32
    return %arg0, %c0_i32, %c0_i32_0, %c0_i32_1, %c0_i32_2 : i32, i32, i32, i32, i32
  }
  func.func @transform_1(%arg0: i32) -> (i32, i32, i32) {
    %c0_i32 = arith.constant 0 : i32
    %c0_i32_0 = arith.constant 0 : i32
    %c0_i32_1 = arith.constant 0 : i32
    %c0_i32_2 = arith.constant 0 : i32
    return %c0_i32, %c0_i32_0, %c0_i32_1 : i32, i32, i32
  }
  func.func @transform_2(%arg0: i32) -> (i32, i32) {
    %c0_i32 = arith.constant 0 : i32
    %c0_i32_0 = arith.constant 0 : i32
    %c0_i32_1 = arith.constant 0 : i32
    return %c0_i32, %c0_i32_0 : i32, i32
  }
  func.func @transform_3(%arg0: i32) -> (i32, i32, i32) {
    %c0_i32 = arith.constant 0 : i32
    %c0_i32_0 = arith.constant 0 : i32
    %c0_i32_1 = arith.constant 0 : i32
    return %arg0, %c0_i32, %c0_i32_0 : i32, i32, i32
  }
}

module attributes {stable_mosaic.version = 11 : i64} {
  func.func @_tail_kernel(%arg0: i32, %arg1: memref<2x8xf32, #tpu.memory_space<vmem>>, %arg2: memref<2x16x16xf32, #tpu.memory_space<vmem>>, %arg3: memref<168x32xf32, #tpu.memory_space<vmem>>, %arg4: memref<6x32xf32, #tpu.memory_space<vmem>>, %arg5: memref<33x96xf32, #tpu.memory_space<vmem>>, %arg6: memref<2x1xf32, #tpu.memory_space<vmem>>) attributes {dimension_semantics = [#tpu.dimension_semantics<parallel>], iteration_bounds = array<i64: 1>, scalar_prefetch = 0 : i64, scratch_operands = 0 : i64, tpu.core_type = #tpu.core_type<tc>, window_params = [{transform_indices = @transform_0, window_bounds = array<i64: 2, 8>}, {transform_indices = @transform_1, window_bounds = array<i64: 2, 16, 16>}, {pipeline_mode = #tpu.pipeline_mode<synchronous>, transform_indices = @transform_2, window_bounds = array<i64: 168, 32>}, {pipeline_mode = #tpu.pipeline_mode<synchronous>, transform_indices = @transform_3, window_bounds = array<i64: 6, 32>}, {pipeline_mode = #tpu.pipeline_mode<synchronous>, transform_indices = @transform_4, window_bounds = array<i64: 33, 96>}, {transform_indices = @transform_5, window_bounds = array<i64: 2, 1>}]} {
    %c0 = arith.constant 0 : index
    %c0_0 = arith.constant 0 : index
    %c0_1 = arith.constant 0 : index
    %0 = vector.load %arg2[%c0, %c0_0, %c0_1] : memref<2x16x16xf32, #tpu.memory_space<vmem>>, vector<2x16x16xf32>
    %cst = arith.constant dense<0.000000e+00> : vector<2x16xf32>
    %1 = vector.multi_reduction <add>, %0, %cst [1] : vector<2x16x16xf32> to vector<2x16xf32>
    %cst_2 = arith.constant 6.250000e-02 : f32
    %2 = vector.broadcast %cst_2 : f32 to vector<2x16xf32>
    %3 = arith.mulf %1, %2 : vector<2x16xf32>
    %c0_3 = arith.constant 0 : index
    %c0_4 = arith.constant 0 : index
    %4 = vector.load %arg3[%c0_3, %c0_4] : memref<168x32xf32, #tpu.memory_space<vmem>>, vector<16x16xf32>
    %c0_5 = arith.constant 0 : index
    %c0_6 = arith.constant 0 : index
    %5 = vector.load %arg4[%c0_5, %c0_6] : memref<6x32xf32, #tpu.memory_space<vmem>>, vector<1x16xf32>
    %cst_7 = arith.constant dense<0.000000e+00> : vector<2x16xf32>
    %6 = tpu.matmul %3, %4, %cst_7 {dimension_numbers = #tpu.dot_dimension_numbers<[1], [0], [0], [1], [0, 0, 1, 1], [], []>} : vector<2x16xf32>, vector<16x16xf32>, vector<2x16xf32> -> vector<2x16xf32>
    %7 = vector.broadcast %5 : vector<1x16xf32> to vector<2x16xf32>
    %8 = arith.addf %6, %7 : vector<2x16xf32>
    %c0_8 = arith.constant 0 : index
    %c0_9 = arith.constant 0 : index
    %9 = vector.load %arg1[%c0_8, %c0_9] : memref<2x8xf32, #tpu.memory_space<vmem>>, vector<2x8xf32>
    %c16 = arith.constant 16 : index
    %c0_10 = arith.constant 0 : index
    %10 = vector.load %arg3[%c16, %c0_10] : memref<168x32xf32, #tpu.memory_space<vmem>>, vector<8x32xf32>
    %cst_11 = arith.constant dense<0.000000e+00> : vector<2x32xf32>
    %11 = tpu.matmul %9, %10, %cst_11 {dimension_numbers = #tpu.dot_dimension_numbers<[1], [0], [0], [1], [0, 0, 1, 1], [], []>} : vector<2x8xf32>, vector<8x32xf32>, vector<2x32xf32> -> vector<2x32xf32>
    %c24 = arith.constant 24 : index
    %c0_12 = arith.constant 0 : index
    %12 = vector.load %arg3[%c24, %c0_12] : memref<168x32xf32, #tpu.memory_space<vmem>>, vector<16x32xf32>
    %cst_13 = arith.constant dense<0.000000e+00> : vector<2x32xf32>
    %13 = tpu.matmul %8, %12, %cst_13 {dimension_numbers = #tpu.dot_dimension_numbers<[1], [0], [0], [1], [0, 0, 1, 1], [], []>} : vector<2x16xf32>, vector<16x32xf32>, vector<2x32xf32> -> vector<2x32xf32>
    %14 = arith.addf %11, %13 : vector<2x32xf32>
    %c1 = arith.constant 1 : index
    %c0_14 = arith.constant 0 : index
    %15 = vector.load %arg4[%c1, %c0_14] : memref<6x32xf32, #tpu.memory_space<vmem>>, vector<1x32xf32>
    %16 = vector.broadcast %15 : vector<1x32xf32> to vector<2x32xf32>
    %17 = arith.addf %14, %16 : vector<2x32xf32>
    %cst_15 = arith.constant 0.000000e+00 : f32
    %18 = vector.broadcast %cst_15 : f32 to vector<2x32xf32>
    %19 = arith.maximumf %17, %18 : vector<2x32xf32>
    %c40 = arith.constant 40 : index
    %c0_16 = arith.constant 0 : index
    %20 = vector.load %arg3[%c40, %c0_16] : memref<168x32xf32, #tpu.memory_space<vmem>>, vector<32x32xf32>
    %cst_17 = arith.constant dense<0.000000e+00> : vector<2x32xf32>
    %21 = tpu.matmul %19, %20, %cst_17 {dimension_numbers = #tpu.dot_dimension_numbers<[1], [0], [0], [1], [0, 0, 1, 1], [], []>} : vector<2x32xf32>, vector<32x32xf32>, vector<2x32xf32> -> vector<2x32xf32>
    %c2 = arith.constant 2 : index
    %c0_18 = arith.constant 0 : index
    %22 = vector.load %arg4[%c2, %c0_18] : memref<6x32xf32, #tpu.memory_space<vmem>>, vector<1x32xf32>
    %23 = vector.broadcast %22 : vector<1x32xf32> to vector<2x32xf32>
    %24 = arith.addf %21, %23 : vector<2x32xf32>
    %cst_19 = arith.constant 0.000000e+00 : f32
    %25 = vector.broadcast %cst_19 : f32 to vector<2x32xf32>
    %26 = arith.maximumf %24, %25 : vector<2x32xf32>
    %c72 = arith.constant 72 : index
    %c0_20 = arith.constant 0 : index
    %27 = vector.load %arg3[%c72, %c0_20] : memref<168x32xf32, #tpu.memory_space<vmem>>, vector<32x32xf32>
    %cst_21 = arith.constant dense<0.000000e+00> : vector<2x32xf32>
    %28 = tpu.matmul %26, %27, %cst_21 {dimension_numbers = #tpu.dot_dimension_numbers<[1], [0], [0], [1], [0, 0, 1, 1], [], []>} : vector<2x32xf32>, vector<32x32xf32>, vector<2x32xf32> -> vector<2x32xf32>
    %c3 = arith.constant 3 : index
    %c0_22 = arith.constant 0 : index
    %29 = vector.load %arg4[%c3, %c0_22] : memref<6x32xf32, #tpu.memory_space<vmem>>, vector<1x32xf32>
    %30 = vector.broadcast %29 : vector<1x32xf32> to vector<2x32xf32>
    %31 = arith.addf %28, %30 : vector<2x32xf32>
    %32 = arith.addf %17, %31 : vector<2x32xf32>
    %cst_23 = arith.constant 0.000000e+00 : f32
    %33 = vector.broadcast %cst_23 : f32 to vector<2x32xf32>
    %34 = arith.maximumf %32, %33 : vector<2x32xf32>
    %c104 = arith.constant 104 : index
    %c0_24 = arith.constant 0 : index
    %35 = vector.load %arg3[%c104, %c0_24] : memref<168x32xf32, #tpu.memory_space<vmem>>, vector<32x32xf32>
    %cst_25 = arith.constant dense<0.000000e+00> : vector<2x32xf32>
    %36 = tpu.matmul %34, %35, %cst_25 {dimension_numbers = #tpu.dot_dimension_numbers<[1], [0], [0], [1], [0, 0, 1, 1], [], []>} : vector<2x32xf32>, vector<32x32xf32>, vector<2x32xf32> -> vector<2x32xf32>
    %c4 = arith.constant 4 : index
    %c0_26 = arith.constant 0 : index
    %37 = vector.load %arg4[%c4, %c0_26] : memref<6x32xf32, #tpu.memory_space<vmem>>, vector<1x32xf32>
    %38 = vector.broadcast %37 : vector<1x32xf32> to vector<2x32xf32>
    %39 = arith.addf %36, %38 : vector<2x32xf32>
    %cst_27 = arith.constant 0.000000e+00 : f32
    %40 = vector.broadcast %cst_27 : f32 to vector<2x32xf32>
    %41 = arith.maximumf %39, %40 : vector<2x32xf32>
    %c136 = arith.constant 136 : index
    %c0_28 = arith.constant 0 : index
    %42 = vector.load %arg3[%c136, %c0_28] : memref<168x32xf32, #tpu.memory_space<vmem>>, vector<32x32xf32>
    %cst_29 = arith.constant dense<0.000000e+00> : vector<2x32xf32>
    %43 = tpu.matmul %41, %42, %cst_29 {dimension_numbers = #tpu.dot_dimension_numbers<[1], [0], [0], [1], [0, 0, 1, 1], [], []>} : vector<2x32xf32>, vector<32x32xf32>, vector<2x32xf32> -> vector<2x32xf32>
    %c5 = arith.constant 5 : index
    %c0_30 = arith.constant 0 : index
    %44 = vector.load %arg4[%c5, %c0_30] : memref<6x32xf32, #tpu.memory_space<vmem>>, vector<1x32xf32>
    %45 = vector.broadcast %44 : vector<1x32xf32> to vector<2x32xf32>
    %46 = arith.addf %43, %45 : vector<2x32xf32>
    %47 = arith.addf %32, %46 : vector<2x32xf32>
    %cst_31 = arith.constant 0.000000e+00 : f32
    %48 = vector.broadcast %cst_31 : f32 to vector<2x32xf32>
    %49 = arith.maximumf %47, %48 : vector<2x32xf32>
    %c0_32 = arith.constant 0 : index
    %c0_33 = arith.constant 0 : index
    %50 = vector.load %arg5[%c0_32, %c0_33] : memref<33x96xf32, #tpu.memory_space<vmem>>, vector<32x96xf32>
    %cst_34 = arith.constant dense<0.000000e+00> : vector<2x96xf32>
    %51 = tpu.matmul %49, %50, %cst_34 {dimension_numbers = #tpu.dot_dimension_numbers<[1], [0], [0], [1], [0, 0, 1, 1], [], []>} : vector<2x32xf32>, vector<32x96xf32>, vector<2x96xf32> -> vector<2x96xf32>
    %c32 = arith.constant 32 : index
    %c0_35 = arith.constant 0 : index
    %52 = vector.load %arg5[%c32, %c0_35] : memref<33x96xf32, #tpu.memory_space<vmem>>, vector<1x96xf32>
    %53 = vector.broadcast %52 : vector<1x96xf32> to vector<2x96xf32>
    %54 = arith.addf %51, %53 : vector<2x96xf32>
    %55 = vector.extract_strided_slice %54 {offsets = [0, 0], sizes = [2, 32], strides = [1, 1]} : vector<2x96xf32> to vector<2x32xf32>
    %56 = vector.extract_strided_slice %54 {offsets = [0, 32], sizes = [2, 32], strides = [1, 1]} : vector<2x96xf32> to vector<2x32xf32>
    %57 = vector.extract_strided_slice %54 {offsets = [0, 64], sizes = [2, 32], strides = [1, 1]} : vector<2x96xf32> to vector<2x32xf32>
    %cst_36 = arith.constant 0.000000e+00 : f32
    %58 = vector.broadcast %cst_36 : f32 to vector<2x32xf32>
    %59 = arith.maximumf %57, %58 : vector<2x32xf32>
    %60 = math.absf %57 : vector<2x32xf32>
    %cst_37 = arith.constant 0.000000e+00 : f32
    %61 = vector.broadcast %cst_37 : f32 to vector<2x32xf32>
    %62 = arith.subf %61, %60 : vector<2x32xf32>
    %63 = math.exp %62 : vector<2x32xf32>
    %cst_38 = arith.constant 1.000000e+00 : f32
    %64 = vector.broadcast %cst_38 : f32 to vector<2x32xf32>
    %65 = arith.addf %64, %63 : vector<2x32xf32>
    %66 = math.log %65 : vector<2x32xf32>
    %67 = arith.addf %59, %66 : vector<2x32xf32>
    %cst_39 = arith.constant 1.000000e-03 : f32
    %68 = vector.broadcast %cst_39 : f32 to vector<2x32xf32>
    %69 = arith.addf %68, %67 : vector<2x32xf32>
    %70 = tpu.reciprocal %69 : vector<2x32xf32> -> vector<2x32xf32>
    %71 = math.log %69 : vector<2x32xf32>
    %72 = vector.extract_strided_slice %56 {offsets = [0, 0], sizes = [2, 8], strides = [1, 1]} : vector<2x32xf32> to vector<2x8xf32>
    %73 = arith.subf %9, %72 : vector<2x8xf32>
    %74 = vector.extract_strided_slice %70 {offsets = [0, 0], sizes = [2, 8], strides = [1, 1]} : vector<2x32xf32> to vector<2x8xf32>
    %75 = arith.mulf %73, %74 : vector<2x8xf32>
    %76 = vector.extract_strided_slice %55 {offsets = [0, 0], sizes = [2, 8], strides = [1, 1]} : vector<2x32xf32> to vector<2x8xf32>
    %77 = vector.extract_strided_slice %55 {offsets = [0, 0], sizes = [2, 8], strides = [1, 1]} : vector<2x32xf32> to vector<2x8xf32>
    %cst_40 = arith.constant 5.000000e-01 : f32
    %78 = vector.broadcast %cst_40 : f32 to vector<2x8xf32>
    %79 = arith.mulf %78, %75 : vector<2x8xf32>
    %80 = arith.mulf %79, %75 : vector<2x8xf32>
    %81 = arith.subf %77, %80 : vector<2x8xf32>
    %82 = vector.extract_strided_slice %71 {offsets = [0, 0], sizes = [2, 8], strides = [1, 1]} : vector<2x32xf32> to vector<2x8xf32>
    %83 = arith.subf %81, %82 : vector<2x8xf32>
    %cst_41 = arith.constant 5.000000e-01 : f32
    %cst_42 = arith.constant 1.83787704 : f32
    %84 = arith.mulf %cst_41, %cst_42 : f32
    %85 = vector.broadcast %84 : f32 to vector<2x8xf32>
    %86 = arith.subf %83, %85 : vector<2x8xf32>
    %87 = vector.extract_strided_slice %56 {offsets = [0, 8], sizes = [2, 8], strides = [1, 1]} : vector<2x32xf32> to vector<2x8xf32>
    %88 = arith.subf %9, %87 : vector<2x8xf32>
    %89 = vector.extract_strided_slice %70 {offsets = [0, 8], sizes = [2, 8], strides = [1, 1]} : vector<2x32xf32> to vector<2x8xf32>
    %90 = arith.mulf %88, %89 : vector<2x8xf32>
    %91 = vector.extract_strided_slice %55 {offsets = [0, 8], sizes = [2, 8], strides = [1, 1]} : vector<2x32xf32> to vector<2x8xf32>
    %92 = vector.extract_strided_slice %55 {offsets = [0, 8], sizes = [2, 8], strides = [1, 1]} : vector<2x32xf32> to vector<2x8xf32>
    %cst_43 = arith.constant 5.000000e-01 : f32
    %93 = vector.broadcast %cst_43 : f32 to vector<2x8xf32>
    %94 = arith.mulf %93, %90 : vector<2x8xf32>
    %95 = arith.mulf %94, %90 : vector<2x8xf32>
    %96 = arith.subf %92, %95 : vector<2x8xf32>
    %97 = vector.extract_strided_slice %71 {offsets = [0, 8], sizes = [2, 8], strides = [1, 1]} : vector<2x32xf32> to vector<2x8xf32>
    %98 = arith.subf %96, %97 : vector<2x8xf32>
    %cst_44 = arith.constant 5.000000e-01 : f32
    %cst_45 = arith.constant 1.83787704 : f32
    %99 = arith.mulf %cst_44, %cst_45 : f32
    %100 = vector.broadcast %99 : f32 to vector<2x8xf32>
    %101 = arith.subf %98, %100 : vector<2x8xf32>
    %102 = vector.extract_strided_slice %56 {offsets = [0, 16], sizes = [2, 8], strides = [1, 1]} : vector<2x32xf32> to vector<2x8xf32>
    %103 = arith.subf %9, %102 : vector<2x8xf32>
    %104 = vector.extract_strided_slice %70 {offsets = [0, 16], sizes = [2, 8], strides = [1, 1]} : vector<2x32xf32> to vector<2x8xf32>
    %105 = arith.mulf %103, %104 : vector<2x8xf32>
    %106 = vector.extract_strided_slice %55 {offsets = [0, 16], sizes = [2, 8], strides = [1, 1]} : vector<2x32xf32> to vector<2x8xf32>
    %107 = vector.extract_strided_slice %55 {offsets = [0, 16], sizes = [2, 8], strides = [1, 1]} : vector<2x32xf32> to vector<2x8xf32>
    %cst_46 = arith.constant 5.000000e-01 : f32
    %108 = vector.broadcast %cst_46 : f32 to vector<2x8xf32>
    %109 = arith.mulf %108, %105 : vector<2x8xf32>
    %110 = arith.mulf %109, %105 : vector<2x8xf32>
    %111 = arith.subf %107, %110 : vector<2x8xf32>
    %112 = vector.extract_strided_slice %71 {offsets = [0, 16], sizes = [2, 8], strides = [1, 1]} : vector<2x32xf32> to vector<2x8xf32>
    %113 = arith.subf %111, %112 : vector<2x8xf32>
    %cst_47 = arith.constant 5.000000e-01 : f32
    %cst_48 = arith.constant 1.83787704 : f32
    %114 = arith.mulf %cst_47, %cst_48 : f32
    %115 = vector.broadcast %114 : f32 to vector<2x8xf32>
    %116 = arith.subf %113, %115 : vector<2x8xf32>
    %117 = vector.extract_strided_slice %56 {offsets = [0, 24], sizes = [2, 8], strides = [1, 1]} : vector<2x32xf32> to vector<2x8xf32>
    %118 = arith.subf %9, %117 : vector<2x8xf32>
    %119 = vector.extract_strided_slice %70 {offsets = [0, 24], sizes = [2, 8], strides = [1, 1]} : vector<2x32xf32> to vector<2x8xf32>
    %120 = arith.mulf %118, %119 : vector<2x8xf32>
    %121 = vector.extract_strided_slice %55 {offsets = [0, 24], sizes = [2, 8], strides = [1, 1]} : vector<2x32xf32> to vector<2x8xf32>
    %122 = vector.extract_strided_slice %55 {offsets = [0, 24], sizes = [2, 8], strides = [1, 1]} : vector<2x32xf32> to vector<2x8xf32>
    %cst_49 = arith.constant 5.000000e-01 : f32
    %123 = vector.broadcast %cst_49 : f32 to vector<2x8xf32>
    %124 = arith.mulf %123, %120 : vector<2x8xf32>
    %125 = arith.mulf %124, %120 : vector<2x8xf32>
    %126 = arith.subf %122, %125 : vector<2x8xf32>
    %127 = vector.extract_strided_slice %71 {offsets = [0, 24], sizes = [2, 8], strides = [1, 1]} : vector<2x32xf32> to vector<2x8xf32>
    %128 = arith.subf %126, %127 : vector<2x8xf32>
    %cst_50 = arith.constant 5.000000e-01 : f32
    %cst_51 = arith.constant 1.83787704 : f32
    %129 = arith.mulf %cst_50, %cst_51 : f32
    %130 = vector.broadcast %129 : f32 to vector<2x8xf32>
    %131 = arith.subf %128, %130 : vector<2x8xf32>
    %132 = arith.maximumf %76, %91 : vector<2x8xf32>
    %133 = arith.maximumf %86, %101 : vector<2x8xf32>
    %134 = arith.maximumf %132, %106 : vector<2x8xf32>
    %135 = arith.maximumf %133, %116 : vector<2x8xf32>
    %136 = arith.maximumf %134, %121 : vector<2x8xf32>
    %137 = arith.maximumf %135, %131 : vector<2x8xf32>
    %cst_52 = arith.constant 0.000000e+00 : f32
    %138 = vector.broadcast %cst_52 : f32 to vector<2x8xf32>
    %cst_53 = arith.constant 0.000000e+00 : f32
    %139 = vector.broadcast %cst_53 : f32 to vector<2x8xf32>
    %140 = arith.subf %76, %136 : vector<2x8xf32>
    %141 = math.exp %140 : vector<2x8xf32>
    %142 = arith.addf %138, %141 : vector<2x8xf32>
    %143 = arith.subf %86, %137 : vector<2x8xf32>
    %144 = math.exp %143 : vector<2x8xf32>
    %145 = arith.addf %139, %144 : vector<2x8xf32>
    %146 = arith.subf %91, %136 : vector<2x8xf32>
    %147 = math.exp %146 : vector<2x8xf32>
    %148 = arith.addf %142, %147 : vector<2x8xf32>
    %149 = arith.subf %101, %137 : vector<2x8xf32>
    %150 = math.exp %149 : vector<2x8xf32>
    %151 = arith.addf %145, %150 : vector<2x8xf32>
    %152 = arith.subf %106, %136 : vector<2x8xf32>
    %153 = math.exp %152 : vector<2x8xf32>
    %154 = arith.addf %148, %153 : vector<2x8xf32>
    %155 = arith.subf %116, %137 : vector<2x8xf32>
    %156 = math.exp %155 : vector<2x8xf32>
    %157 = arith.addf %151, %156 : vector<2x8xf32>
    %158 = arith.subf %121, %136 : vector<2x8xf32>
    %159 = math.exp %158 : vector<2x8xf32>
    %160 = arith.addf %154, %159 : vector<2x8xf32>
    %161 = arith.subf %131, %137 : vector<2x8xf32>
    %162 = math.exp %161 : vector<2x8xf32>
    %163 = arith.addf %157, %162 : vector<2x8xf32>
    %164 = math.log %163 : vector<2x8xf32>
    %165 = arith.addf %137, %164 : vector<2x8xf32>
    %166 = math.log %160 : vector<2x8xf32>
    %167 = arith.addf %136, %166 : vector<2x8xf32>
    %168 = arith.subf %165, %167 : vector<2x8xf32>
    %cst_54 = arith.constant dense<0.000000e+00> : vector<2xf32>
    %169 = vector.multi_reduction <add>, %168, %cst_54 [1] : vector<2x8xf32> to vector<2xf32>
    %170 = vector.shape_cast %169 : vector<2xf32> to vector<2x1xf32>
    %c0_55 = arith.constant 0 : index
    %c0_56 = arith.constant 0 : index
    %171 = vector.load %arg6[%c0_55, %c0_56] : memref<2x1xf32, #tpu.memory_space<vmem>>, vector<2x1xf32>
    tpu.vector_store %arg6[%c0_55, %c0_56], %170 {strides = array<i32>} : memref<2x1xf32, #tpu.memory_space<vmem>>, vector<2x1xf32>,
    return
  }
  func.func @transform_0(%arg0: i32) -> (i32, i32) {
    %c0_i32 = arith.constant 0 : i32
    %c0_i32_0 = arith.constant 0 : i32
    return %arg0, %c0_i32 : i32, i32
  }
  func.func @transform_1(%arg0: i32) -> (i32, i32, i32) {
    %c0_i32 = arith.constant 0 : i32
    %c0_i32_0 = arith.constant 0 : i32
    %c0_i32_1 = arith.constant 0 : i32
    return %arg0, %c0_i32, %c0_i32_0 : i32, i32, i32
  }
  func.func @transform_2(%arg0: i32) -> (i32, i32) {
    %c0_i32 = arith.constant 0 : i32
    %c0_i32_0 = arith.constant 0 : i32
    %c0_i32_1 = arith.constant 0 : i32
    return %c0_i32, %c0_i32_0 : i32, i32
  }
  func.func @transform_3(%arg0: i32) -> (i32, i32) {
    %c0_i32 = arith.constant 0 : i32
    %c0_i32_0 = arith.constant 0 : i32
    %c0_i32_1 = arith.constant 0 : i32
    return %c0_i32, %c0_i32_0 : i32, i32
  }
  func.func @transform_4(%arg0: i32) -> (i32, i32) {
    %c0_i32 = arith.constant 0 : i32
    %c0_i32_0 = arith.constant 0 : i32
    %c0_i32_1 = arith.constant 0 : i32
    return %c0_i32, %c0_i32_0 : i32, i32
  }
  func.func @transform_5(%arg0: i32) -> (i32, i32) {
    %c0_i32 = arith.constant 0 : i32
    %c0_i32_0 = arith.constant 0 : i32
    return %arg0, %c0_i32 : i32, i32
  }
}

</mosaic_0001>

<llo_original>
// kernel: dose_forward.3
$region0: #{dose_forward.3}
  #allocation0 [shape = 'u32[]', space=smem, size = 0x4, offset = 0x4, fixed_abs, tag = 'smem constant byte address 0x4 - core index']
  #allocation1 [shape = 'u32[72,128]{1,0:T(1,128)}', space=vmem, size = 0x9000, scoped, tag = 'internal scratch']
  %s0 = inlined_call_operand.vmem [shape: f32[2,4,9,9,1], index: 0, kind: input, shape index: {}]
  %s1 = inlined_call_operand.vmem [shape: f32[9,1,16], index: 1, kind: input, shape index: {}]
  %s2 = inlined_call_operand.vmem [shape: f32[1,16], index: 2, kind: input, shape index: {}]
  %s3 = inlined_call_operand.vmem [shape: f32[2,64,16], index: 3, kind: output, shape index: {}]
  %s4 = sld [smem:[#allocation0]]
  $region45: #{dose_forward.3} parent=0
    _
  %s6 = ssub.s32 1, %s4
  %s7 = scalar_select 0, %s6, %s4
  loop: start=0, step=1, limit=4
  $region2: #{dose_forward.3} parent=0 // loop_pre_header
    _
  $region3: #{dose_forward.3} parent=0 // loop_header
    %s9 = sphi 0, %s13
    %p10 = scmp.ge.s32.totalorder %s9, 4
    %s19 = sphi 0, %s21
    %s22 = sphi 0, %s19
    %s23 = sphi 0, %s22
    %s39 = sphi 0, %s23
    %s43 = sphi 0, %s43
    %s45 = sphi 0, %s43
    %s46 = sphi 0, %s45
    %s60 = sphi 0, %s46
    %s64 = sphi 0, %s64
    %s66 = sphi 0, %s64
    %s67 = sphi 0, %s66
    %s81 = sphi 0, %s67
    %s87 = sphi 0, %s89
    %s90 = sphi 0, %s87
    %s91 = sphi 0, %s90
    %s107 = sphi 0, %s91
  $region4: #{dose_forward.3} parent=0 // loop_header_branch
    %12 = sbr.rel (%p10) target = $region8
  $region5: #{dose_forward.3} parent=0 // loop_body
    %s14 = ssub.s32 %s9, 1
    %s15 = ssub.s32 %s9, 2
    %s16 = sadd.s32 %s9, 1
    %s17 = ssub.s32 %s9, %s16
    %p18 = scmp.eq.s32.totalorder %s17, 0
    %s20 = sadd.s32 %s19, 1
    %s21 = scalar_select %p18, %s19, %s20
    %p24 = pneg %p18
    %p25 = scmp.eq.s32.totalorder %s9, 1
    %p26 = por %p24, %p25
    %p27 = scmp.ne.s32.totalorder %s19, %s22
    %p28 = scmp.eq.s32.totalorder %s9, 0
    %p29 = por %p27, %p28
    %p30 = scmp.ne.s32.totalorder %s19, %s22
    %p31 = scmp.eq.s32.totalorder %s14, 1
    %p32 = por %p30, %p31
    %p33 = scmp.ne.s32.totalorder %s22, %s23
    %p34 = scmp.eq.s32.totalorder %s14, 0
    %p35 = por %p33, %p34
    %p36 = scmp.ne.s32.totalorder %s22, %s23
    %p37 = scmp.eq.s32.totalorder %s15, 1
    %p38 = por %p36, %p37
    %p40 = scmp.ne.s32.totalorder %s23, %s39
    %p41 = scmp.eq.s32.totalorder %s15, 0
    %p42 = por %p40, %p41
    %s44 = sadd.s32 %s43, 1
    %p47 = scmp.eq.s32.totalorder %s9, 1
    %p48 = scmp.ne.s32.totalorder %s43, %s45
    %p49 = scmp.eq.s32.totalorder %s9, 0
    %p50 = por %p48, %p49
    %p51 = scmp.ne.s32.totalorder %s43, %s45
    %p52 = scmp.eq.s32.totalorder %s14, 1
    %p53 = por %p51, %p52
    %p54 = scmp.ne.s32.totalorder %s45, %s46
    %p55 = scmp.eq.s32.totalorder %s14, 0
    %p56 = por %p54, %p55
    %p57 = scmp.ne.s32.totalorder %s45, %s46
    %p58 = scmp.eq.s32.totalorder %s15, 1
    %p59 = por %p57, %p58
    %p61 = scmp.ne.s32.totalorder %s46, %s60
    %p62 = scmp.eq.s32.totalorder %s15, 0
    %p63 = por %p61, %p62
    %s65 = sadd.s32 %s64, 1
    %p68 = scmp.eq.s32.totalorder %s9, 1
    %p69 = scmp.ne.s32.totalorder %s64, %s66
    %p70 = scmp.eq.s32.totalorder %s9, 0
    %p71 = por %p69, %p70
    %p72 = scmp.ne.s32.totalorder %s64, %s66
    %p73 = scmp.eq.s32.totalorder %s14, 1
    %p74 = por %p72, %p73
    %p75 = scmp.ne.s32.totalorder %s66, %s67
    %p76 = scmp.eq.s32.totalorder %s14, 0
    %p77 = por %p75, %p76
    %p78 = scmp.ne.s32.totalorder %s66, %s67
    %p79 = scmp.eq.s32.totalorder %s15, 1
    %p80 = por %p78, %p79
    %p82 = scmp.ne.s32.totalorder %s67, %s81
    %p83 = scmp.eq.s32.totalorder %s15, 0
    %p84 = por %p82, %p83
    %s85 = ssub.s32 %s9, %s16
    %p86 = scmp.eq.s32.totalorder %s85, 0
    %s88 = sadd.s32 %s87, 1
    %s89 = scalar_select %p86, %s87, %s88
    %p92 = pneg %p86
    %p93 = scmp.eq.s32.totalorder %s9, 1
    %p94 = por %p92, %p93
    %p95 = scmp.ne.s32.totalorder %s87, %s90
    %p96 = scmp.eq.s32.totalorder %s9, 0
    %p97 = por %p95, %p96
    %p98 = scmp.ne.s32.totalorder %s87, %s90
    %p99 = scmp.eq.s32.totalorder %s14, 1
    %p100 = por %p98, %p99
    %p101 = scmp.ne.s32.totalorder %s90, %s91
    %p102 = scmp.eq.s32.totalorder %s14, 0
    %p103 = por %p101, %p102
    %p104 = scmp.ne.s32.totalorder %s90, %s91
    %p105 = scmp.eq.s32.totalorder %s15, 1
    %p106 = por %p104, %p105
    %p108 = scmp.ne.s32.totalorder %s91, %s107
    %p109 = scmp.eq.s32.totalorder %s15, 0
    %p110 = por %p108, %p109
    %p111 = scmp.le.s32.totalorder 1, %s9
    %p112 = scmp.lt.s32.totalorder %s9, 3
    %p113 = pnand %p111, %p112
    %p114 = pneg %p113
    // Predicated region
    $region9: #{dose_forward.3} parent=5 // pred_check
      _
    $region10: #{dose_forward.3} parent=5 // pred_check_branch
      %116 = sbr.rel (%p113) target = $region12
    $region11: #{dose_forward.3} parent=5 // pred_region
      %s117 = ssub.s32 %s9, 1
      // Predicated region
      $region13: #{dose_forward.3} parent=11 // pred_check
        %p118 = pneg %p56
      $region14: #{dose_forward.3} parent=11 // pred_check_branch
        %120 = sbr.rel (%p118) target = $region16
      $region15: #{dose_forward.3} parent=11 // pred_region
        _
      $region16: #{dose_forward.3} parent=11 // pred_fallthru
        _
      // Predicated region
      $region17: #{dose_forward.3} parent=11 // pred_check
        %p121 = pneg %p77
      $region18: #{dose_forward.3} parent=11 // pred_check_branch
        %123 = sbr.rel (%p121) target = $region20
      $region19: #{dose_forward.3} parent=11 // pred_region
        _
      $region20: #{dose_forward.3} parent=11 // pred_fallthru
        _
    $region12: #{dose_forward.3} parent=5 // pred_fallthru
      _
    %p124 = scmp.lt.s32.totalorder %s9, 2
    // Predicated region
    $region21: #{dose_forward.3} parent=5 // pred_check
      %p125 = pneg %p124
    $region22: #{dose_forward.3} parent=5 // pred_check_branch
      %127 = sbr.rel (%p125) target = $region24
    $region23: #{dose_forward.3} parent=5 // pred_region
      // Predicated region
      $region25: #{dose_forward.3} parent=23 // pred_check
        %p128 = pneg %p29
      $region26: #{dose_forward.3} parent=23 // pred_check_branch
        %130 = sbr.rel (%p128) target = $region28
      $region27: #{dose_forward.3} parent=23 // pred_region
        %p131 = scmp.lt.s32.totalorder %s9, 1
        %s132 = scalar_select %p131, %s9, 1
        %s133 = smul.addr %s132, 72
        %s134 = smul.addr %s133, 8
        %s135 = scalar_lea.vmem %s0, %s134
      $region28: #{dose_forward.3} parent=23 // pred_fallthru
        _
    $region24: #{dose_forward.3} parent=5 // pred_fallthru
      _
    %p136 = scmp.le.s32.totalorder 1, %s9
    %p137 = scmp.lt.s32.totalorder %s9, 3
    %p138 = pnand %p136, %p137
    %p139 = pneg %p138
    // Predicated region
    $region29: #{dose_forward.3} parent=5 // pred_check
      _
    $region30: #{dose_forward.3} parent=5 // pred_check_branch
      %141 = sbr.rel (%p138) target = $region32
    $region31: #{dose_forward.3} parent=5 // pred_region
      %s142 = ssub.s32 %s9, 1
      %p143 = scmp.lt.s32.totalorder %s14, 1
      %s144 = scalar_select %p143, %s14, 1
      %s145 = smul.addr %s144, 72
      %s146 = smul.addr %s145, 8
      %s147 = scalar_lea.vmem %s0, %s146
      %p148 = pneg %p35
      %p149 = pneg %p32
      %p150 = pneg %p56
      %p151 = pneg %p53
      %p152 = pneg %p77
      %p153 = pneg %p74
      %p154 = pneg %p103
      %p155 = pneg %p100
      %p156 = scmp.lt.s32.totalorder %s14, 1
      %s157 = scalar_select %p156, %s14, 1
      %s158 = smul.addr %s157, 8
      %s159 = smul.addr %s158, 8
      %s160 = scalar_lea.vmem %s3, %s159
      %p161 = scmp.lt.s32.totalorder %s14, 1
      %s162 = scalar_select %p161, %s14, 1
      %s163 = smul.addr %s162, 72
      %s164 = smul.addr %s163, 8
      %s165 = scalar_lea.vmem %s0, %s164
      %p166 = scmp.lt.s32.totalorder %s14, 1
      %s167 = scalar_select %p166, %s14, 1
      %s168 = smul.addr %s167, 8
      %s169 = smul.addr %s168, 8
      %s170 = scalar_lea.vmem %s3, %s169
      %v171 = vld [vmem:[%s2] sm:$0x1]
      %v172 = vld [vmem:[%s165] sm:$0xff]
      %v173 = vld [vmem:[%s1] sm:$0x1]
      %175 = vset.pattern.permute.xlu0 0
      %176 = vperm.xlu0 %175, %v172
      %v177 = vpop.permute.xlu0 %176
      %v180 = vperm.slane %v173, 0
      %v182 = vmul.f32 %v177, %v180
      %v183 = vadd.f32 %v182, 0.0
      %s184 = scalar_lea.vmem %s165, 144
      %v185 = vld [vmem:[%s184] sm:$0xff]
      %s186 = scalar_lea.vmem %s1, 1
      %v187 = vld [vmem:[%s186] sm:$0x1]
      %189 = vset.pattern.permute.xlu0 0
      %190 = vperm.xlu0 %189, %v185
      %v191 = vpop.permute.xlu0 %190
      %v194 = vperm.slane %v187, 0
      %v196 = vmul.f32 %v191, %v194
      %v197 = vadd.f32 %v183, %v196
      %v198 = vld [vmem:[%s165 + $0x1] sm:$0xff]
      %s199 = scalar_lea.vmem %s1, 2
      %v200 = vld [vmem:[%s199] sm:$0x1]
      %202 = vset.pattern.permute.xlu0 0
      %203 = vperm.xlu0 %202, %v198
      %v204 = vpop.permute.xlu0 %203
      %v207 = vperm.slane %v200, 0
      %v209 = vmul.f32 %v204, %v207
      %v210 = vadd.f32 %v197, %v209
      %s211 = scalar_lea.vmem %s165, 288
      %v212 = vld [vmem:[%s211] sm:$0xff]
      %s213 = scalar_lea.vmem %s1, 3
      %v214 = vld [vmem:[%s213] sm:$0x1]
      %216 = vset.pattern.permute.xlu0 0
      %217 = vperm.xlu0 %216, %v212
      %v218 = vpop.permute.xlu0 %217
      %v221 = vperm.slane %v214, 0
      %v223 = vmul.f32 %v218, %v221
      %v224 = vadd.f32 %v210, %v223
      %s225 = scalar_lea.vmem %s165, 432
      %v226 = vld [vmem:[%s225] sm:$0xff]
      %s227 = scalar_lea.vmem %s1, 4
      %v228 = vld [vmem:[%s227] sm:$0x1]
      %230 = vset.pattern.permute.xlu0 0
      %231 = vperm.xlu0 %230, %v226
      %v232 = vpop.permute.xlu0 %231
      %v235 = vperm.slane %v228, 0
      %v237 = vmul.f32 %v232, %v235
      %v238 = vadd.f32 %v224, %v237
      %v239 = vld [vmem:[%s211 + $0x1] sm:$0xff]
      %s240 = scalar_lea.vmem %s1, 5
      %v241 = vld [vmem:[%s240] sm:$0x1]
      %243 = vset.pattern.permute.xlu0 0
      %244 = vperm.xlu0 %243, %v239
      %v245 = vpop.permute.xlu0 %244
      %v248 = vperm.slane %v241, 0
      %v250 = vmul.f32 %v245, %v248
      %v251 = vadd.f32 %v238, %v250
      %s252 = scalar_lea.vmem %s165, 16
      %v253 = vld [vmem:[%s252] sm:$0xff]
      %s254 = scalar_lea.vmem %s1, 6
      %v255 = vld [vmem:[%s254] sm:$0x1]
      %257 = vset.pattern.permute.xlu0 0
      %258 = vperm.xlu0 %257, %v253
      %v259 = vpop.permute.xlu0 %258
      %v262 = vperm.slane %v255, 0
      %v264 = vmul.f32 %v259, %v262
      %v265 = vadd.f32 %v251, %v264
      %s266 = scalar_lea.vmem %s165, 160
      %v267 = vld [vmem:[%s266] sm:$0xff]
      %s268 = scalar_lea.vmem %s1, 7
      %v269 = vld [vmem:[%s268] sm:$0x1]
      %271 = vset.pattern.permute.xlu0 0
      %272 = vperm.xlu0 %271, %v267
      %v273 = vpop.permute.xlu0 %272
      %v276 = vperm.slane %v269, 0
      %v278 = vmul.f32 %v273, %v276
      %v279 = vadd.f32 %v265, %v278
      %v280 = vld [vmem:[%s252 + $0x1] sm:$0xff]
      %s281 = scalar_lea.vmem %s1, 8
      %v282 = vld [vmem:[%s281] sm:$0x1]
      %284 = vset.pattern.permute.xlu0 0
      %285 = vperm.xlu0 %284, %v280
      %v286 = vpop.permute.xlu0 %285
      %v289 = vperm.slane %v282, 0
      %v291 = vmul.f32 %v286, %v289
      %v292 = vadd.f32 %v279, %v291
      %v294 = vperm.slane %v171, 0
      %v296 = vadd.f32 %v292, %v294
      %v297 = vmax.f32 %v296, 0.0
      %vm298 = vcmask 130048
      %299 = vst.msk [vmem:[%s170] sm:$0xff] %vm298, %v297
      %v300 = vld [vmem:[%s252] sm:$0xff]
      %v301 = vld [vmem:[%s1] sm:$0x1]
      %303 = vset.pattern.permute.xlu0 0
      %304 = vperm.xlu0 %303, %v300
      %v305 = vpop.permute.xlu0 %304
      %v308 = vperm.slane %v301, 0
      %v310 = vmul.f32 %v305, %v308
      %v311 = vadd.f32 %v310, 0.0
      %v312 = vld [vmem:[%s266] sm:$0xff]
      %v313 = vld [vmem:[%s186] sm:$0x1]
      %315 = vset.pattern.permute.xlu0 0
      %316 = vperm.xlu0 %315, %v312
      %v317 = vpop.permute.xlu0 %316
      %v320 = vperm.slane %v313, 0
      %v322 = vmul.f32 %v317, %v320
      %v323 = vadd.f32 %v311, %v322
      %v324 = vld [vmem:[%s252 + $0x1] sm:$0xff]
      %v325 = vld [vmem:[%s199] sm:$0x1]
      %327 = vset.pattern.permute.xlu0 0
      %328 = vperm.xlu0 %327, %v324
      %v329 = vpop.permute.xlu0 %328
      %v332 = vperm.slane %v325, 0
      %v334 = vmul.f32 %v329, %v332
      %v335 = vadd.f32 %v323, %v334
      %s336 = scalar_lea.vmem %s165, 304
      %v337 = vld [vmem:[%s336] sm:$0xff]
      %v338 = vld [vmem:[%s213] sm:$0x1]
      %340 = vset.pattern.permute.xlu0 0
      %341 = vperm.xlu0 %340, %v337
      %v342 = vpop.permute.xlu0 %341
      %v345 = vperm.slane %v338, 0
      %v347 = vmul.f32 %v342, %v345
      %v348 = vadd.f32 %v335, %v347
      %s349 = scalar_lea.vmem %s165, 448
      %v350 = vld [vmem:[%s349] sm:$0xff]
      %v351 = vld [vmem:[%s227] sm:$0x1]
      %353 = vset.pattern.permute.xlu0 0
      %354 = vperm.xlu0 %353, %v350
      %v355 = vpop.permute.xlu0 %354
      %v358 = vperm.slane %v351, 0
      %v360 = vmul.f32 %v355, %v358
      %v361 = vadd.f32 %v348, %v360
      %v362 = vld [vmem:[%s336 + $0x1] sm:$0xff]
      %v363 = vld [vmem:[%s240] sm:$0x1]
      %365 = vset.pattern.permute.xlu0 0
      %366 = vperm.xlu0 %365, %v362
      %v367 = vpop.permute.xlu0 %366
      %v370 = vperm.slane %v363, 0
      %v372 = vmul.f32 %v367, %v370
      %v373 = vadd.f32 %v361, %v372
      %s374 = scalar_lea.vmem %s165, 32
      %v375 = vld [vmem:[%s374] sm:$0xff]
      %v376 = vld [vmem:[%s254] sm:$0x1]
      %378 = vset.pattern.permute.xlu0 0
      %379 = vperm.xlu0 %378, %v375
      %v380 = vpop.permute.xlu0 %379
      %v383 = vperm.slane %v376, 0
      %v385 = vmul.f32 %v380, %v383
      %v386 = vadd.f32 %v373, %v385
      %s387 = scalar_lea.vmem %s165, 176
      %v388 = vld [vmem:[%s387] sm:$0xff]
      %v389 = vld [vmem:[%s268] sm:$0x1]
      %391 = vset.pattern.permute.xlu0 0
      %392 = vperm.xlu0 %391, %v388
      %v393 = vpop.permute.xlu0 %392
      %v396 = vperm.slane %v389, 0
      %v398 = vmul.f32 %v393, %v396
      %v399 = vadd.f32 %v386, %v398
      %v400 = vld [vmem:[%s374 + $0x1] sm:$0xff]
      %v401 = vld [vmem:[%s281] sm:$0x1]
      %403 = vset.pattern.permute.xlu0 0
      %404 = vperm.xlu0 %403, %v400
      %v405 = vpop.permute.xlu0 %404
      %v408 = vperm.slane %v401, 0
      %v410 = vmul.f32 %v405, %v408
      %v411 = vadd.f32 %v399, %v410
      %v412 = vadd.f32 %v411, %v294
      %v413 = vmax.f32 %v412, 0.0
      %414 = vst.msk [vmem:[%s170 + $0x8] sm:$0xff] %vm298, %v413
      %v415 = vld [vmem:[%s374] sm:$0xff]
      %v416 = vld [vmem:[%s1] sm:$0x1]
      %418 = vset.pattern.permute.xlu0 0
      %419 = vperm.xlu0 %418, %v415
      %v420 = vpop.permute.xlu0 %419
      %v423 = vperm.slane %v416, 0
      %v425 = vmul.f32 %v420, %v423
      %v426 = vadd.f32 %v425, 0.0
      %v427 = vld [vmem:[%s387] sm:$0xff]
      %v428 = vld [vmem:[%s186] sm:$0x1]
      %430 = vset.pattern.permute.xlu0 0
      %431 = vperm.xlu0 %430, %v427
      %v432 = vpop.permute.xlu0 %431
      %v435 = vperm.slane %v428, 0
      %v437 = vmul.f32 %v432, %v435
      %v438 = vadd.f32 %v426, %v437
      %v439 = vld [vmem:[%s374 + $0x1] sm:$0xff]
      %v440 = vld [vmem:[%s199] sm:$0x1]
      %442 = vset.pattern.permute.xlu0 0
      %443 = vperm.xlu0 %442, %v439
      %v444 = vpop.permute.xlu0 %443
      %v447 = vperm.slane %v440, 0
      %v449 = vmul.f32 %v444, %v447
      %v450 = vadd.f32 %v438, %v449
      %s451 = scalar_lea.vmem %s165, 320
      %v452 = vld [vmem:[%s451] sm:$0xff]
      %v453 = vld [vmem:[%s213] sm:$0x1]
      %455 = vset.pattern.permute.xlu0 0
      %456 = vperm.xlu0 %455, %v452
      %v457 = vpop.permute.xlu0 %456
      %v460 = vperm.slane %v453, 0
      %v462 = vmul.f32 %v457, %v460
      %v463 = vadd.f32 %v450, %v462
      %s464 = scalar_lea.vmem %s165, 464
      %v465 = vld [vmem:[%s464] sm:$0xff]
      %v466 = vld [vmem:[%s227] sm:$0x1]
      %468 = vset.pattern.permute.xlu0 0
      %469 = vperm.xlu0 %468, %v465
      %v470 = vpop.permute.xlu0 %469
      %v473 = vperm.slane %v466, 0
      %v475 = vmul.f32 %v470, %v473
      %v476 = vadd.f32 %v463, %v475
      %v477 = vld [vmem:[%s451 + $0x1] sm:$0xff]
      %v478 = vld [vmem:[%s240] sm:$0x1]
      %480 = vset.pattern.permute.xlu0 0
      %481 = vperm.xlu0 %480, %v477
      %v482 = vpop.permute.xlu0 %481
      %v485 = vperm.slane %v478, 0
      %v487 = vmul.f32 %v482, %v485
      %v488 = vadd.f32 %v476, %v487
      %s489 = scalar_lea.vmem %s165, 48
      %v490 = vld [vmem:[%s489] sm:$0xff]
      %v491 = vld [vmem:[%s254] sm:$0x1]
      %493 = vset.pattern.permute.xlu0 0
      %494 = vperm.xlu0 %493, %v490
      %v495 = vpop.permute.xlu0 %494
      %v498 = vperm.slane %v491, 0
      %v500 = vmul.f32 %v495, %v498
      %v501 = vadd.f32 %v488, %v500
      %s502 = scalar_lea.vmem %s165, 192
      %v503 = vld [vmem:[%s502] sm:$0xff]
      %v504 = vld [vmem:[%s268] sm:$0x1]
      %506 = vset.pattern.permute.xlu0 0
      %507 = vperm.xlu0 %506, %v503
      %v508 = vpop.permute.xlu0 %507
      %v511 = vperm.slane %v504, 0
      %v513 = vmul.f32 %v508, %v511
      %v514 = vadd.f32 %v501, %v513
      %v515 = vld [vmem:[%s489 + $0x1] sm:$0xff]
      %v516 = vld [vmem:[%s281] sm:$0x1]
      %518 = vset.pattern.permute.xlu0 0
      %519 = vperm.xlu0 %518, %v515
      %v520 = vpop.permute.xlu0 %519
      %v523 = vperm.slane %v516, 0
      %v525 = vmul.f32 %v520, %v523
      %v526 = vadd.f32 %v514, %v525
      %v527 = vadd.f32 %v526, %v294
      %v528 = vmax.f32 %v527, 0.0
      %529 = vst.msk [vmem:[%s170 + $0x10] sm:$0xff] %vm298, %v528
      %v530 = vld [vmem:[%s489] sm:$0xff]
      %v531 = vld [vmem:[%s1] sm:$0x1]
      %533 = vset.pattern.permute.xlu0 0
      %534 = vperm.xlu0 %533, %v530
      %v535 = vpop.permute.xlu0 %534
      %v538 = vperm.slane %v531, 0
      %v540 = vmul.f32 %v535, %v538
      %v541 = vadd.f32 %v540, 0.0
      %v542 = vld [vmem:[%s502] sm:$0xff]
      %v543 = vld [vmem:[%s186] sm:$0x1]
      %545 = vset.pattern.permute.xlu0 0
      %546 = vperm.xlu0 %545, %v542
      %v547 = vpop.permute.xlu0 %546
      %v550 = vperm.slane %v543, 0
      %v552 = vmul.f32 %v547, %v550
      %v553 = vadd.f32 %v541, %v552
      %v554 = vld [vmem:[%s489 + $0x1] sm:$0xff]
      %v555 = vld [vmem:[%s199] sm:$0x1]
      %557 = vset.pattern.permute.xlu0 0
      %558 = vperm.xlu0 %557, %v554
      %v559 = vpop.permute.xlu0 %558
      %v562 = vperm.slane %v555, 0
      %v564 = vmul.f32 %v559, %v562
      %v565 = vadd.f32 %v553, %v564
      %s566 = scalar_lea.vmem %s165, 336
      %v567 = vld [vmem:[%s566] sm:$0xff]
      %v568 = vld [vmem:[%s213] sm:$0x1]
      %570 = vset.pattern.permute.xlu0 0
      %571 = vperm.xlu0 %570, %v567
      %v572 = vpop.permute.xlu0 %571
      %v575 = vperm.slane %v568, 0
      %v577 = vmul.f32 %v572, %v575
      %v578 = vadd.f32 %v565, %v577
      %s579 = scalar_lea.vmem %s165, 480
      %v580 = vld [vmem:[%s579] sm:$0xff]
      %v581 = vld [vmem:[%s227] sm:$0x1]
      %583 = vset.pattern.permute.xlu0 0
      %584 = vperm.xlu0 %583, %v580
      %v585 = vpop.permute.xlu0 %584
      %v588 = vperm.slane %v581, 0
      %v590 = vmul.f32 %v585, %v588
      %v591 = vadd.f32 %v578, %v590
      %v592 = vld [vmem:[%s566 + $0x1] sm:$0xff]
      %v593 = vld [vmem:[%s240] sm:$0x1]
      %595 = vset.pattern.permute.xlu0 0
      %596 = vperm.xlu0 %595, %v592
      %v597 = vpop.permute.xlu0 %596
      %v600 = vperm.slane %v593, 0
      %v602 = vmul.f32 %v597, %v600
      %v603 = vadd.f32 %v591, %v602
      %s604 = scalar_lea.vmem %s165, 64
      %v605 = vld [vmem:[%s604] sm:$0xff]
      %v606 = vld [vmem:[%s254] sm:$0x1]
      %608 = vset.pattern.permute.xlu0 0
      %609 = vperm.xlu0 %608, %v605
      %v610 = vpop.permute.xlu0 %609
      %v613 = vperm.slane %v606, 0
      %v615 = vmul.f32 %v610, %v613
      %v616 = vadd.f32 %v603, %v615
      %s617 = scalar_lea.vmem %s165, 208
      %v618 = vld [vmem:[%s617] sm:$0xff]
      %v619 = vld [vmem:[%s268] sm:$0x1]
      %621 = vset.pattern.permute.xlu0 0
      %622 = vperm.xlu0 %621, %v618
      %v623 = vpop.permute.xlu0 %622
      %v626 = vperm.slane %v619, 0
      %v628 = vmul.f32 %v623, %v626
      %v629 = vadd.f32 %v616, %v628
      %v630 = vld [vmem:[%s604 + $0x1] sm:$0xff]
      %v631 = vld [vmem:[%s281] sm:$0x1]
      %633 = vset.pattern.permute.xlu0 0
      %634 = vperm.xlu0 %633, %v630
      %v635 = vpop.permute.xlu0 %634
      %v638 = vperm.slane %v631, 0
      %v640 = vmul.f32 %v635, %v638
      %v641 = vadd.f32 %v629, %v640
      %v642 = vadd.f32 %v641, %v294
      %v643 = vmax.f32 %v642, 0.0
      %644 = vst.msk [vmem:[%s170 + $0x18] sm:$0xff] %vm298, %v643
      %v645 = vld [vmem:[%s604] sm:$0xff]
      %v646 = vld [vmem:[%s1] sm:$0x1]
      %648 = vset.pattern.permute.xlu0 0
      %649 = vperm.xlu0 %648, %v645
      %v650 = vpop.permute.xlu0 %649
      %v653 = vperm.slane %v646, 0
      %v655 = vmul.f32 %v650, %v653
      %v656 = vadd.f32 %v655, 0.0
      %v657 = vld [vmem:[%s617] sm:$0xff]
      %v658 = vld [vmem:[%s186] sm:$0x1]
      %660 = vset.pattern.permute.xlu0 0
      %661 = vperm.xlu0 %660, %v657
      %v662 = vpop.permute.xlu0 %661
      %v665 = vperm.slane %v658, 0
      %v667 = vmul.f32 %v662, %v665
      %v668 = vadd.f32 %v656, %v667
      %v669 = vld [vmem:[%s604 + $0x1] sm:$0xff]
      %v670 = vld [vmem:[%s199] sm:$0x1]
      %672 = vset.pattern.permute.xlu0 0
      %673 = vperm.xlu0 %672, %v669
      %v674 = vpop.permute.xlu0 %673
      %v677 = vperm.slane %v670, 0
      %v679 = vmul.f32 %v674, %v677
      %v680 = vadd.f32 %v668, %v679
      %s681 = scalar_lea.vmem %s165, 352
      %v682 = vld [vmem:[%s681] sm:$0xff]
      %v683 = vld [vmem:[%s213] sm:$0x1]
      %685 = vset.pattern.permute.xlu0 0
      %686 = vperm.xlu0 %685, %v682
      %v687 = vpop.permute.xlu0 %686
      %v690 = vperm.slane %v683, 0
      %v692 = vmul.f32 %v687, %v690
      %v693 = vadd.f32 %v680, %v692
      %s694 = scalar_lea.vmem %s165, 496
      %v695 = vld [vmem:[%s694] sm:$0xff]
      %v696 = vld [vmem:[%s227] sm:$0x1]
      %698 = vset.pattern.permute.xlu0 0
      %699 = vperm.xlu0 %698, %v695
      %v700 = vpop.permute.xlu0 %699
      %v703 = vperm.slane %v696, 0
      %v705 = vmul.f32 %v700, %v703
      %v706 = vadd.f32 %v693, %v705
      %v707 = vld [vmem:[%s681 + $0x1] sm:$0xff]
      %v708 = vld [vmem:[%s240] sm:$0x1]
      %710 = vset.pattern.permute.xlu0 0
      %711 = vperm.xlu0 %710, %v707
      %v712 = vpop.permute.xlu0 %711
      %v715 = vperm.slane %v708, 0
      %v717 = vmul.f32 %v712, %v715
      %v718 = vadd.f32 %v706, %v717
      %s719 = scalar_lea.vmem %s165, 80
      %v720 = vld [vmem:[%s719] sm:$0xff]
      %v721 = vld [vmem:[%s254] sm:$0x1]
      %723 = vset.pattern.permute.xlu0 0
      %724 = vperm.xlu0 %723, %v720
      %v725 = vpop.permute.xlu0 %724
      %v728 = vperm.slane %v721, 0
      %v730 = vmul.f32 %v725, %v728
      %v731 = vadd.f32 %v718, %v730
      %s732 = scalar_lea.vmem %s165, 224
      %v733 = vld [vmem:[%s732] sm:$0xff]
      %v734 = vld [vmem:[%s268] sm:$0x1]
      %736 = vset.pattern.permute.xlu0 0
      %737 = vperm.xlu0 %736, %v733
      %v738 = vpop.permute.xlu0 %737
      %v741 = vperm.slane %v734, 0
      %v743 = vmul.f32 %v738, %v741
      %v744 = vadd.f32 %v731, %v743
      %v745 = vld [vmem:[%s719 + $0x1] sm:$0xff]
      %v746 = vld [vmem:[%s281] sm:$0x1]
      %748 = vset.pattern.permute.xlu0 0
      %749 = vperm.xlu0 %748, %v745
      %v750 = vpop.permute.xlu0 %749
      %v753 = vperm.slane %v746, 0
      %v755 = vmul.f32 %v750, %v753
      %v756 = vadd.f32 %v744, %v755
      %v757 = vadd.f32 %v756, %v294
      %v758 = vmax.f32 %v757, 0.0
      %759 = vst.msk [vmem:[%s170 + $0x20] sm:$0xff] %vm298, %v758
      %v760 = vld [vmem:[%s719] sm:$0xff]
      %v761 = vld [vmem:[%s1] sm:$0x1]
      %763 = vset.pattern.permute.xlu0 0
      %764 = vperm.xlu0 %763, %v760
      %v765 = vpop.permute.xlu0 %764
      %v768 = vperm.slane %v761, 0
      %v770 = vmul.f32 %v765, %v768
      %v771 = vadd.f32 %v770, 0.0
      %v772 = vld [vmem:[%s732] sm:$0xff]
      %v773 = vld [vmem:[%s186] sm:$0x1]
      %775 = vset.pattern.permute.xlu0 0
      %776 = vperm.xlu0 %775, %v772
      %v777 = vpop.permute.xlu0 %776
      %v780 = vperm.slane %v773, 0
      %v782 = vmul.f32 %v777, %v780
      %v783 = vadd.f32 %v771, %v782
      %v784 = vld [vmem:[%s719 + $0x1] sm:$0xff]
      %v785 = vld [vmem:[%s199] sm:$0x1]
      %787 = vset.pattern.permute.xlu0 0
      %788 = vperm.xlu0 %787, %v784
      %v789 = vpop.permute.xlu0 %788
      %v792 = vperm.slane %v785, 0
      %v794 = vmul.f32 %v789, %v792
      %v795 = vadd.f32 %v783, %v794
      %s796 = scalar_lea.vmem %s165, 368
      %v797 = vld [vmem:[%s796] sm:$0xff]
      %v798 = vld [vmem:[%s213] sm:$0x1]
      %800 = vset.pattern.permute.xlu0 0
      %801 = vperm.xlu0 %800, %v797
      %v802 = vpop.permute.xlu0 %801
      %v805 = vperm.slane %v798, 0
      %v807 = vmul.f32 %v802, %v805
      %v808 = vadd.f32 %v795, %v807
      %s809 = scalar_lea.vmem %s165, 512
      %v810 = vld [vmem:[%s809] sm:$0xff]
      %v811 = vld [vmem:[%s227] sm:$0x1]
      %813 = vset.pattern.permute.xlu0 0
      %814 = vperm.xlu0 %813, %v810
      %v815 = vpop.permute.xlu0 %814
      %v818 = vperm.slane %v811, 0
      %v820 = vmul.f32 %v815, %v818
      %v821 = vadd.f32 %v808, %v820
      %v822 = vld [vmem:[%s796 + $0x1] sm:$0xff]
      %v823 = vld [vmem:[%s240] sm:$0x1]
      %825 = vset.pattern.permute.xlu0 0
      %826 = vperm.xlu0 %825, %v822
      %v827 = vpop.permute.xlu0 %826
      %v830 = vperm.slane %v823, 0
      %v832 = vmul.f32 %v827, %v830
      %v833 = vadd.f32 %v821, %v832
      %s834 = scalar_lea.vmem %s165, 96
      %v835 = vld [vmem:[%s834] sm:$0xff]
      %v836 = vld [vmem:[%s254] sm:$0x1]
      %838 = vset.pattern.permute.xlu0 0
      %839 = vperm.xlu0 %838, %v835
      %v840 = vpop.permute.xlu0 %839
      %v843 = vperm.slane %v836, 0
      %v845 = vmul.f32 %v840, %v843
      %v846 = vadd.f32 %v833, %v845
      %s847 = scalar_lea.vmem %s165, 240
      %v848 = vld [vmem:[%s847] sm:$0xff]
      %v849 = vld [vmem:[%s268] sm:$0x1]
      %851 = vset.pattern.permute.xlu0 0
      %852 = vperm.xlu0 %851, %v848
      %v853 = vpop.permute.xlu0 %852
      %v856 = vperm.slane %v849, 0
      %v858 = vmul.f32 %v853, %v856
      %v859 = vadd.f32 %v846, %v858
      %v860 = vld [vmem:[%s834 + $0x1] sm:$0xff]
      %v861 = vld [vmem:[%s281] sm:$0x1]
      %863 = vset.pattern.permute.xlu0 0
      %864 = vperm.xlu0 %863, %v860
      %v865 = vpop.permute.xlu0 %864
      %v868 = vperm.slane %v861, 0
      %v870 = vmul.f32 %v865, %v868
      %v871 = vadd.f32 %v859, %v870
      %v872 = vadd.f32 %v871, %v294
      %v873 = vmax.f32 %v872, 0.0
      %874 = vst.msk [vmem:[%s170 + $0x28] sm:$0xff] %vm298, %v873
      %v875 = vld [vmem:[%s834] sm:$0xff]
      %v876 = vld [vmem:[%s1] sm:$0x1]
      %878 = vset.pattern.permute.xlu0 0
      %879 = vperm.xlu0 %878, %v875
      %v880 = vpop.permute.xlu0 %879
      %v883 = vperm.slane %v876, 0
      %v885 = vmul.f32 %v880, %v883
      %v886 = vadd.f32 %v885, 0.0
      %v887 = vld [vmem:[%s847] sm:$0xff]
      %v888 = vld [vmem:[%s186] sm:$0x1]
      %890 = vset.pattern.permute.xlu0 0
      %891 = vperm.xlu0 %890, %v887
      %v892 = vpop.permute.xlu0 %891
      %v895 = vperm.slane %v888, 0
      %v897 = vmul.f32 %v892, %v895
      %v898 = vadd.f32 %v886, %v897
      %v899 = vld [vmem:[%s834 + $0x1] sm:$0xff]
      %v900 = vld [vmem:[%s199] sm:$0x1]
      %902 = vset.pattern.permute.xlu0 0
      %903 = vperm.xlu0 %902, %v899
      %v904 = vpop.permute.xlu0 %903
      %v907 = vperm.slane %v900, 0
      %v909 = vmul.f32 %v904, %v907
      %v910 = vadd.f32 %v898, %v909
      %s911 = scalar_lea.vmem %s165, 384
      %v912 = vld [vmem:[%s911] sm:$0xff]
      %v913 = vld [vmem:[%s213] sm:$0x1]
      %915 = vset.pattern.permute.xlu0 0
      %916 = vperm.xlu0 %915, %v912
      %v917 = vpop.permute.xlu0 %916
      %v920 = vperm.slane %v913, 0
      %v922 = vmul.f32 %v917, %v920
      %v923 = vadd.f32 %v910, %v922
      %s924 = scalar_lea.vmem %s165, 528
      %v925 = vld [vmem:[%s924] sm:$0xff]
      %v926 = vld [vmem:[%s227] sm:$0x1]
      %928 = vset.pattern.permute.xlu0 0
      %929 = vperm.xlu0 %928, %v925
      %v930 = vpop.permute.xlu0 %929
      %v933 = vperm.slane %v926, 0
      %v935 = vmul.f32 %v930, %v933
      %v936 = vadd.f32 %v923, %v935
      %v937 = vld [vmem:[%s911 + $0x1] sm:$0xff]
      %v938 = vld [vmem:[%s240] sm:$0x1]
      %940 = vset.pattern.permute.xlu0 0
      %941 = vperm.xlu0 %940, %v937
      %v942 = vpop.permute.xlu0 %941
      %v945 = vperm.slane %v938, 0
      %v947 = vmul.f32 %v942, %v945
      %v948 = vadd.f32 %v936, %v947
      %s949 = scalar_lea.vmem %s165, 112
      %v950 = vld [vmem:[%s949] sm:$0xff]
      %v951 = vld [vmem:[%s254] sm:$0x1]
      %953 = vset.pattern.permute.xlu0 0
      %954 = vperm.xlu0 %953, %v950
      %v955 = vpop.permute.xlu0 %954
      %v958 = vperm.slane %v951, 0
      %v960 = vmul.f32 %v955, %v958
      %v961 = vadd.f32 %v948, %v960
      %s962 = scalar_lea.vmem %s165, 256
      %v963 = vld [vmem:[%s962] sm:$0xff]
      %v964 = vld [vmem:[%s268] sm:$0x1]
      %966 = vset.pattern.permute.xlu0 0
      %967 = vperm.xlu0 %966, %v963
      %v968 = vpop.permute.xlu0 %967
      %v971 = vperm.slane %v964, 0
      %v973 = vmul.f32 %v968, %v971
      %v974 = vadd.f32 %v961, %v973
      %v975 = vld [vmem:[%s949 + $0x1] sm:$0xff]
      %v976 = vld [vmem:[%s281] sm:$0x1]
      %978 = vset.pattern.permute.xlu0 0
      %979 = vperm.xlu0 %978, %v975
      %v980 = vpop.permute.xlu0 %979
      %v983 = vperm.slane %v976, 0
      %v985 = vmul.f32 %v980, %v983
      %v986 = vadd.f32 %v974, %v985
      %v987 = vadd.f32 %v986, %v294
      %v988 = vmax.f32 %v987, 0.0
      %989 = vst.msk [vmem:[%s170 + $0x30] sm:$0xff] %vm298, %v988
      %v990 = vld [vmem:[%s949] sm:$0xff]
      %v991 = vld [vmem:[%s1] sm:$0x1]
      %993 = vset.pattern.permute.xlu0 0
      %994 = vperm.xlu0 %993, %v990
      %v995 = vpop.permute.xlu0 %994
      %v998 = vperm.slane %v991, 0
      %v1000 = vmul.f32 %v995, %v998
      %v1001 = vadd.f32 %v1000, 0.0
      %v1002 = vld [vmem:[%s962] sm:$0xff]
      %v1003 = vld [vmem:[%s186] sm:$0x1]
      %1005 = vset.pattern.permute.xlu0 0
      %1006 = vperm.xlu0 %1005, %v1002
      %v1007 = vpop.permute.xlu0 %1006
      %v1010 = vperm.slane %v1003, 0
      %v1012 = vmul.f32 %v1007, %v1010
      %v1013 = vadd.f32 %v1001, %v1012
      %v1014 = vld [vmem:[%s949 + $0x1] sm:$0xff]
      %v1015 = vld [vmem:[%s199] sm:$0x1]
      %1017 = vset.pattern.permute.xlu0 0
      %1018 = vperm.xlu0 %1017, %v1014
      %v1019 = vpop.permute.xlu0 %1018
      %v1022 = vperm.slane %v1015, 0
      %v1024 = vmul.f32 %v1019, %v1022
      %v1025 = vadd.f32 %v1013, %v1024
      %s1026 = scalar_lea.vmem %s165, 400
      %v1027 = vld [vmem:[%s1026] sm:$0xff]
      %v1028 = vld [vmem:[%s213] sm:$0x1]
      %1030 = vset.pattern.permute.xlu0 0
      %1031 = vperm.xlu0 %1030, %v1027
      %v1032 = vpop.permute.xlu0 %1031
      %v1035 = vperm.slane %v1028, 0
      %v1037 = vmul.f32 %v1032, %v1035
      %v1038 = vadd.f32 %v1025, %v1037
      %s1039 = scalar_lea.vmem %s165, 544
      %v1040 = vld [vmem:[%s1039] sm:$0xff]
      %v1041 = vld [vmem:[%s227] sm:$0x1]
      %1043 = vset.pattern.permute.xlu0 0
      %1044 = vperm.xlu0 %1043, %v1040
      %v1045 = vpop.permute.xlu0 %1044
      %v1048 = vperm.slane %v1041, 0
      %v1050 = vmul.f32 %v1045, %v1048
      %v1051 = vadd.f32 %v1038, %v1050
      %v1052 = vld [vmem:[%s1026 + $0x1] sm:$0xff]
      %v1053 = vld [vmem:[%s240] sm:$0x1]
      %1055 = vset.pattern.permute.xlu0 0
      %1056 = vperm.xlu0 %1055, %v1052
      %v1057 = vpop.permute.xlu0 %1056
      %v1060 = vperm.slane %v1053, 0
      %v1062 = vmul.f32 %v1057, %v1060
      %v1063 = vadd.f32 %v1051, %v1062
      %s1064 = scalar_lea.vmem %s165, 128
      %v1065 = vld [vmem:[%s1064] sm:$0xff]
      %v1066 = vld [vmem:[%s254] sm:$0x1]
      %1068 = vset.pattern.permute.xlu0 0
      %1069 = vperm.xlu0 %1068, %v1065
      %v1070 = vpop.permute.xlu0 %1069
      %v1073 = vperm.slane %v1066, 0
      %v1075 = vmul.f32 %v1070, %v1073
      %v1076 = vadd.f32 %v1063, %v1075
      %s1077 = scalar_lea.vmem %s165, 272
      %v1078 = vld [vmem:[%s1077] sm:$0xff]
      %v1079 = vld [vmem:[%s268] sm:$0x1]
      %1081 = vset.pattern.permute.xlu0 0
      %1082 = vperm.xlu0 %1081, %v1078
      %v1083 = vpop.permute.xlu0 %1082
      %v1086 = vperm.slane %v1079, 0
      %v1088 = vmul.f32 %v1083, %v1086
      %v1089 = vadd.f32 %v1076, %v1088
      %v1090 = vld [vmem:[%s1064 + $0x1] sm:$0xff]
      %v1091 = vld [vmem:[%s281] sm:$0x1]
      %1093 = vset.pattern.permute.xlu0 0
      %1094 = vperm.xlu0 %1093, %v1090
      %v1095 = vpop.permute.xlu0 %1094
      %v1098 = vperm.slane %v1091, 0
      %v1100 = vmul.f32 %v1095, %v1098
      %v1101 = vadd.f32 %v1089, %v1100
      %v1102 = vadd.f32 %v1101, %v294
      %v1103 = vmax.f32 %v1102, 0.0
      %1104 = vst.msk [vmem:[%s170 + $0x38] sm:$0xff] %vm298, %v1103
      %p1105 = scmp.lt.s32.totalorder %s14, 1
      %s1106 = scalar_select %p1105, %s14, 1
      %s1107 = smul.addr %s1106, 8
      %s1108 = smul.addr %s1107, 8
      %s1109 = scalar_lea.vmem %s3, %s1108
      // Predicated region
      $region33: #{dose_forward.3} parent=31 // pred_check
        %p1110 = pneg %p100
      $region34: #{dose_forward.3} parent=31 // pred_check_branch
        %1112 = sbr.rel (%p1110) target = $region36
      $region35: #{dose_forward.3} parent=31 // pred_region
        _
      $region36: #{dose_forward.3} parent=31 // pred_fallthru
        _
    $region32: #{dose_forward.3} parent=5 // pred_fallthru
      _
    %p1113 = scmp.le.s32.totalorder 2, %s9
    // Predicated region
    $region37: #{dose_forward.3} parent=5 // pred_check
      %p1114 = pneg %p1113
    $region38: #{dose_forward.3} parent=5 // pred_check_branch
      %1116 = sbr.rel (%p1114) target = $region40
    $region39: #{dose_forward.3} parent=5 // pred_region
      %s1117 = ssub.s32 %s9, 2
      // Predicated region
      $region41: #{dose_forward.3} parent=39 // pred_check
        %p1118 = pneg %p106
      $region42: #{dose_forward.3} parent=39 // pred_check_branch
        %1120 = sbr.rel (%p1118) target = $region44
      $region43: #{dose_forward.3} parent=39 // pred_region
        %p1121 = scmp.lt.s32.totalorder %s15, 1
        %s1122 = scalar_select %p1121, %s15, 1
        %s1123 = smul.addr %s1122, 8
        %s1124 = smul.addr %s1123, 8
        %s1125 = scalar_lea.vmem %s3, %s1124
      $region44: #{dose_forward.3} parent=39 // pred_fallthru
        _
    $region40: #{dose_forward.3} parent=5 // pred_fallthru
      _
  $region6: #{dose_forward.3} parent=0 // loop_footer
    %s13 = sadd.s32 1, %s9
  $region7: #{dose_forward.3} parent=0 // loop_footer_branch
    %8 = sbr.rel target = $region3
  $region8: #{dose_forward.3} parent=0 // loop_exit
    _

// kernel: dose_forward.4
$region0: #{dose_forward.4}
  #allocation0 [shape = 'u32[]', space=smem, size = 0x4, offset = 0x4, fixed_abs, tag = 'smem constant byte address 0x4 - core index']
  #allocation1 [shape = 'u32[72,128]{1,0:T(1,128)}', space=vmem, size = 0x9000, scoped, tag = 'internal scratch']
  %s0 = inlined_call_operand.vmem [shape: f32[2,4,5,5,16], index: 0, kind: input, shape index: {}]
  %s1 = inlined_call_operand.vmem [shape: f32[9,16,16], index: 1, kind: input, shape index: {}]
  %s2 = inlined_call_operand.vmem [shape: f32[1,16], index: 2, kind: input, shape index: {}]
  %s3 = inlined_call_operand.vmem [shape: f32[2,16,16], index: 3, kind: output, shape index: {}]
  %s4 = sld [smem:[#allocation0]]
  $region45: #{dose_forward.4} parent=0
    _
  %s6 = ssub.s32 1, %s4
  %s7 = scalar_select 0, %s6, %s4
  loop: start=0, step=1, limit=4
  $region2: #{dose_forward.4} parent=0 // loop_pre_header
    _
  $region3: #{dose_forward.4} parent=0 // loop_header
    %s9 = sphi 0, %s13
    %p10 = scmp.ge.s32.totalorder %s9, 4
    %s19 = sphi 0, %s21
    %s22 = sphi 0, %s19
    %s23 = sphi 0, %s22
    %s39 = sphi 0, %s23
    %s43 = sphi 0, %s43
    %s45 = sphi 0, %s43
    %s46 = sphi 0, %s45
    %s60 = sphi 0, %s46
    %s64 = sphi 0, %s64
    %s66 = sphi 0, %s64
    %s67 = sphi 0, %s66
    %s81 = sphi 0, %s67
    %s87 = sphi 0, %s89
    %s90 = sphi 0, %s87
    %s91 = sphi 0, %s90
    %s107 = sphi 0, %s91
  $region4: #{dose_forward.4} parent=0 // loop_header_branch
    %12 = sbr.rel (%p10) target = $region8
  $region5: #{dose_forward.4} parent=0 // loop_body
    %s14 = ssub.s32 %s9, 1
    %s15 = ssub.s32 %s9, 2
    %s16 = sadd.s32 %s9, 1
    %s17 = ssub.s32 %s9, %s16
    %p18 = scmp.eq.s32.totalorder %s17, 0
    %s20 = sadd.s32 %s19, 1
    %s21 = scalar_select %p18, %s19, %s20
    %p24 = pneg %p18
    %p25 = scmp.eq.s32.totalorder %s9, 1
    %p26 = por %p24, %p25
    %p27 = scmp.ne.s32.totalorder %s19, %s22
    %p28 = scmp.eq.s32.totalorder %s9, 0
    %p29 = por %p27, %p28
    %p30 = scmp.ne.s32.totalorder %s19, %s22
    %p31 = scmp.eq.s32.totalorder %s14, 1
    %p32 = por %p30, %p31
    %p33 = scmp.ne.s32.totalorder %s22, %s23
    %p34 = scmp.eq.s32.totalorder %s14, 0
    %p35 = por %p33, %p34
    %p36 = scmp.ne.s32.totalorder %s22, %s23
    %p37 = scmp.eq.s32.totalorder %s15, 1
    %p38 = por %p36, %p37
    %p40 = scmp.ne.s32.totalorder %s23, %s39
    %p41 = scmp.eq.s32.totalorder %s15, 0
    %p42 = por %p40, %p41
    %s44 = sadd.s32 %s43, 1
    %p47 = scmp.eq.s32.totalorder %s9, 1
    %p48 = scmp.ne.s32.totalorder %s43, %s45
    %p49 = scmp.eq.s32.totalorder %s9, 0
    %p50 = por %p48, %p49
    %p51 = scmp.ne.s32.totalorder %s43, %s45
    %p52 = scmp.eq.s32.totalorder %s14, 1
    %p53 = por %p51, %p52
    %p54 = scmp.ne.s32.totalorder %s45, %s46
    %p55 = scmp.eq.s32.totalorder %s14, 0
    %p56 = por %p54, %p55
    %p57 = scmp.ne.s32.totalorder %s45, %s46
    %p58 = scmp.eq.s32.totalorder %s15, 1
    %p59 = por %p57, %p58
    %p61 = scmp.ne.s32.totalorder %s46, %s60
    %p62 = scmp.eq.s32.totalorder %s15, 0
    %p63 = por %p61, %p62
    %s65 = sadd.s32 %s64, 1
    %p68 = scmp.eq.s32.totalorder %s9, 1
    %p69 = scmp.ne.s32.totalorder %s64, %s66
    %p70 = scmp.eq.s32.totalorder %s9, 0
    %p71 = por %p69, %p70
    %p72 = scmp.ne.s32.totalorder %s64, %s66
    %p73 = scmp.eq.s32.totalorder %s14, 1
    %p74 = por %p72, %p73
    %p75 = scmp.ne.s32.totalorder %s66, %s67
    %p76 = scmp.eq.s32.totalorder %s14, 0
    %p77 = por %p75, %p76
    %p78 = scmp.ne.s32.totalorder %s66, %s67
    %p79 = scmp.eq.s32.totalorder %s15, 1
    %p80 = por %p78, %p79
    %p82 = scmp.ne.s32.totalorder %s67, %s81
    %p83 = scmp.eq.s32.totalorder %s15, 0
    %p84 = por %p82, %p83
    %s85 = ssub.s32 %s9, %s16
    %p86 = scmp.eq.s32.totalorder %s85, 0
    %s88 = sadd.s32 %s87, 1
    %s89 = scalar_select %p86, %s87, %s88
    %p92 = pneg %p86
    %p93 = scmp.eq.s32.totalorder %s9, 1
    %p94 = por %p92, %p93
    %p95 = scmp.ne.s32.totalorder %s87, %s90
    %p96 = scmp.eq.s32.totalorder %s9, 0
    %p97 = por %p95, %p96
    %p98 = scmp.ne.s32.totalorder %s87, %s90
    %p99 = scmp.eq.s32.totalorder %s14, 1
    %p100 = por %p98, %p99
    %p101 = scmp.ne.s32.totalorder %s90, %s91
    %p102 = scmp.eq.s32.totalorder %s14, 0
    %p103 = por %p101, %p102
    %p104 = scmp.ne.s32.totalorder %s90, %s91
    %p105 = scmp.eq.s32.totalorder %s15, 1
    %p106 = por %p104, %p105
    %p108 = scmp.ne.s32.totalorder %s91, %s107
    %p109 = scmp.eq.s32.totalorder %s15, 0
    %p110 = por %p108, %p109
    %p111 = scmp.le.s32.totalorder 1, %s9
    %p112 = scmp.lt.s32.totalorder %s9, 3
    %p113 = pnand %p111, %p112
    %p114 = pneg %p113
    // Predicated region
    $region9: #{dose_forward.4} parent=5 // pred_check
      _
    $region10: #{dose_forward.4} parent=5 // pred_check_branch
      %116 = sbr.rel (%p113) target = $region12
    $region11: #{dose_forward.4} parent=5 // pred_region
      %s117 = ssub.s32 %s9, 1
      // Predicated region
      $region13: #{dose_forward.4} parent=11 // pred_check
        %p118 = pneg %p56
      $region14: #{dose_forward.4} parent=11 // pred_check_branch
        %120 = sbr.rel (%p118) target = $region16
      $region15: #{dose_forward.4} parent=11 // pred_region
        _
      $region16: #{dose_forward.4} parent=11 // pred_fallthru
        _
      // Predicated region
      $region17: #{dose_forward.4} parent=11 // pred_check
        %p121 = pneg %p77
      $region18: #{dose_forward.4} parent=11 // pred_check_branch
        %123 = sbr.rel (%p121) target = $region20
      $region19: #{dose_forward.4} parent=11 // pred_region
        _
      $region20: #{dose_forward.4} parent=11 // pred_fallthru
        _
    $region12: #{dose_forward.4} parent=5 // pred_fallthru
      _
    %p124 = scmp.lt.s32.totalorder %s9, 2
    // Predicated region
    $region21: #{dose_forward.4} parent=5 // pred_check
      %p125 = pneg %p124
    $region22: #{dose_forward.4} parent=5 // pred_check_branch
      %127 = sbr.rel (%p125) target = $region24
    $region23: #{dose_forward.4} parent=5 // pred_region
      // Predicated region
      $region25: #{dose_forward.4} parent=23 // pred_check
        %p128 = pneg %p29
      $region26: #{dose_forward.4} parent=23 // pred_check_branch
        %130 = sbr.rel (%p128) target = $region28
      $region27: #{dose_forward.4} parent=23 // pred_region
        %p131 = scmp.lt.s32.totalorder %s9, 1
        %s132 = scalar_select %p131, %s9, 1
        %s133 = smul.addr %s132, 20
        %s134 = smul.addr %s133, 8
        %s135 = scalar_lea.vmem %s0, %s134
      $region28: #{dose_forward.4} parent=23 // pred_fallthru
        _
    $region24: #{dose_forward.4} parent=5 // pred_fallthru
      _
    %p136 = scmp.le.s32.totalorder 1, %s9
    %p137 = scmp.lt.s32.totalorder %s9, 3
    %p138 = pnand %p136, %p137
    %p139 = pneg %p138
    // Predicated region
    $region29: #{dose_forward.4} parent=5 // pred_check
      _
    $region30: #{dose_forward.4} parent=5 // pred_check_branch
      %141 = sbr.rel (%p138) target = $region32
    $region31: #{dose_forward.4} parent=5 // pred_region
      %s142 = ssub.s32 %s9, 1
      %p143 = scmp.lt.s32.totalorder %s14, 1
      %s144 = scalar_select %p143, %s14, 1
      %s145 = smul.addr %s144, 20
      %s146 = smul.addr %s145, 8
      %s147 = scalar_lea.vmem %s0, %s146
      %p148 = pneg %p35
      %p149 = pneg %p32
      %p150 = pneg %p56
      %p151 = pneg %p53
      %p152 = pneg %p77
      %p153 = pneg %p74
      %p154 = pneg %p103
      %p155 = pneg %p100
      %p156 = scmp.lt.s32.totalorder %s14, 1
      %s157 = scalar_select %p156, %s14, 1
      %s158 = smul.addr %s157, 2
      %s159 = smul.addr %s158, 8
      %s160 = scalar_lea.vmem %s3, %s159
      %p161 = scmp.lt.s32.totalorder %s14, 1
      %s162 = scalar_select %p161, %s14, 1
      %s163 = smul.addr %s162, 20
      %s164 = smul.addr %s163, 8
      %s165 = scalar_lea.vmem %s0, %s164
      %p166 = scmp.lt.s32.totalorder %s14, 1
      %s167 = scalar_select %p166, %s14, 1
      %s168 = smul.addr %s167, 2
      %s169 = smul.addr %s168, 8
      %s170 = scalar_lea.vmem %s3, %s169
      %v171 = vld [vmem:[%s2] sm:$0x1]
      %v172 = vld [vmem:[%s165] sm:$0xf]
      %v173 = vld [vmem:[%s1] sm:$0xff]
      %v174 = vld [vmem:[%s1 + $0x8] sm:$0xff]
      %s175 = scalar_lea.vmem %s165, 40
      %v176 = vld [vmem:[%s175] sm:$0xf]
      %s177 = scalar_lea.vmem %s1, 16
      %v178 = vld [vmem:[%s177] sm:$0xff]
      %v179 = vld [vmem:[%s177 + $0x8] sm:$0xff]
      %vm180 = vcmask 130048
      %v182 = vsel %vm180, %v176, 0
      %184 = vmatpush.msra.mxu0 0.0
      %185 = vmatpush.msra.mxu0 0.0
      %186 = vmatpush.msra.mxu0 0.0
      %187 = vmatpush.msra.mxu0 0.0
      %188 = vmatpush.msra.mxu0 0.0
      %189 = vmatpush.msra.mxu0 0.0
      %190 = vmatpush.msra.mxu0 0.0
      %191 = vmatpush.msra.mxu0 0.0
      %192 = vmatpush.msra.mxu0 0.0
      %193 = vmatpush.msra.mxu0 0.0
      %194 = vmatpush.msra.mxu0 0.0
      %195 = vmatpush.msra.mxu0 0.0
      %196 = vmatpush.msra.mxu0 0.0
      %197 = vmatpush.msra.mxu0 0.0
      %198 = vmatpush.msra.mxu0 %v179
      %199 = vmatpush.msra.mxu0 %v178
      %200 = vmatmul.f32.gmra.mxu0 %v182
      %v201 = vpop.f32.mrf.mxu0
      %v202 = vadd.f32 0.0, %v201
      %203 = vdwg.mxu0
      %v205 = vsel %vm180, %v172, 0
      %207 = vmatpush.msra.mxu0 0.0
      %208 = vmatpush.msra.mxu0 0.0
      %209 = vmatpush.msra.mxu0 0.0
      %210 = vmatpush.msra.mxu0 0.0
      %211 = vmatpush.msra.mxu0 0.0
      %212 = vmatpush.msra.mxu0 0.0
      %213 = vmatpush.msra.mxu0 0.0
      %214 = vmatpush.msra.mxu0 0.0
      %215 = vmatpush.msra.mxu0 0.0
      %216 = vmatpush.msra.mxu0 0.0
      %217 = vmatpush.msra.mxu0 0.0
      %218 = vmatpush.msra.mxu0 0.0
      %219 = vmatpush.msra.mxu0 0.0
      %220 = vmatpush.msra.mxu0 0.0
      %221 = vmatpush.msra.mxu0 %v174
      %222 = vmatpush.msra.mxu0 %v173
      %223 = vmatmul.f32.gmra.mxu0 %v205
      %v224 = vpop.f32.mrf.mxu0
      %v225 = vadd.f32 %v202, %v224
      %226 = vdwg.mxu0
      %v227 = vld [vmem:[%s165 + $0x1] sm:$0xf]
      %s228 = scalar_lea.vmem %s1, 32
      %v229 = vld [vmem:[%s228] sm:$0xff]
      %v230 = vld [vmem:[%s228 + $0x8] sm:$0xff]
      %v232 = vsel %vm180, %v227, 0
      %234 = vmatpush.msra.mxu0 0.0
      %235 = vmatpush.msra.mxu0 0.0
      %236 = vmatpush.msra.mxu0 0.0
      %237 = vmatpush.msra.mxu0 0.0
      %238 = vmatpush.msra.mxu0 0.0
      %239 = vmatpush.msra.mxu0 0.0
      %240 = vmatpush.msra.mxu0 0.0
      %241 = vmatpush.msra.mxu0 0.0
      %242 = vmatpush.msra.mxu0 0.0
      %243 = vmatpush.msra.mxu0 0.0
      %244 = vmatpush.msra.mxu0 0.0
      %245 = vmatpush.msra.mxu0 0.0
      %246 = vmatpush.msra.mxu0 0.0
      %247 = vmatpush.msra.mxu0 0.0
      %248 = vmatpush.msra.mxu0 %v230
      %249 = vmatpush.msra.mxu0 %v229
      %250 = vmatmul.f32.gmra.mxu0 %v232
      %v251 = vpop.f32.mrf.mxu0
      %v252 = vadd.f32 0.0, %v251
      %253 = vdwg.mxu0
      %v254 = vadd.f32 %v225, %v252
      %s255 = scalar_lea.vmem %s165, 80
      %v256 = vld [vmem:[%s255] sm:$0xf]
      %s257 = scalar_lea.vmem %s1, 48
      %v258 = vld [vmem:[%s257] sm:$0xff]
      %v259 = vld [vmem:[%s257 + $0x8] sm:$0xff]
      %v261 = vsel %vm180, %v256, 0
      %263 = vmatpush.msra.mxu0 0.0
      %264 = vmatpush.msra.mxu0 0.0
      %265 = vmatpush.msra.mxu0 0.0
      %266 = vmatpush.msra.mxu0 0.0
      %267 = vmatpush.msra.mxu0 0.0
      %268 = vmatpush.msra.mxu0 0.0
      %269 = vmatpush.msra.mxu0 0.0
      %270 = vmatpush.msra.mxu0 0.0
      %271 = vmatpush.msra.mxu0 0.0
      %272 = vmatpush.msra.mxu0 0.0
      %273 = vmatpush.msra.mxu0 0.0
      %274 = vmatpush.msra.mxu0 0.0
      %275 = vmatpush.msra.mxu0 0.0
      %276 = vmatpush.msra.mxu0 0.0
      %277 = vmatpush.msra.mxu0 %v259
      %278 = vmatpush.msra.mxu0 %v258
      %279 = vmatmul.f32.gmra.mxu0 %v261
      %v280 = vpop.f32.mrf.mxu0
      %v281 = vadd.f32 0.0, %v280
      %282 = vdwg.mxu0
      %v283 = vadd.f32 %v254, %v281
      %s284 = scalar_lea.vmem %s165, 120
      %v285 = vld [vmem:[%s284] sm:$0xf]
      %s286 = scalar_lea.vmem %s1, 64
      %v287 = vld [vmem:[%s286] sm:$0xff]
      %v288 = vld [vmem:[%s286 + $0x8] sm:$0xff]
      %v290 = vsel %vm180, %v285, 0
      %292 = vmatpush.msra.mxu0 0.0
      %293 = vmatpush.msra.mxu0 0.0
      %294 = vmatpush.msra.mxu0 0.0
      %295 = vmatpush.msra.mxu0 0.0
      %296 = vmatpush.msra.mxu0 0.0
      %297 = vmatpush.msra.mxu0 0.0
      %298 = vmatpush.msra.mxu0 0.0
      %299 = vmatpush.msra.mxu0 0.0
      %300 = vmatpush.msra.mxu0 0.0
      %301 = vmatpush.msra.mxu0 0.0
      %302 = vmatpush.msra.mxu0 0.0
      %303 = vmatpush.msra.mxu0 0.0
      %304 = vmatpush.msra.mxu0 0.0
      %305 = vmatpush.msra.mxu0 0.0
      %306 = vmatpush.msra.mxu0 %v288
      %307 = vmatpush.msra.mxu0 %v287
      %308 = vmatmul.f32.gmra.mxu0 %v290
      %v309 = vpop.f32.mrf.mxu0
      %v310 = vadd.f32 0.0, %v309
      %311 = vdwg.mxu0
      %v312 = vadd.f32 %v283, %v310
      %v313 = vld [vmem:[%s255 + $0x1] sm:$0xf]
      %s314 = scalar_lea.vmem %s1, 80
      %v315 = vld [vmem:[%s314] sm:$0xff]
      %v316 = vld [vmem:[%s314 + $0x8] sm:$0xff]
      %v318 = vsel %vm180, %v313, 0
      %320 = vmatpush.msra.mxu0 0.0
      %321 = vmatpush.msra.mxu0 0.0
      %322 = vmatpush.msra.mxu0 0.0
      %323 = vmatpush.msra.mxu0 0.0
      %324 = vmatpush.msra.mxu0 0.0
      %325 = vmatpush.msra.mxu0 0.0
      %326 = vmatpush.msra.mxu0 0.0
      %327 = vmatpush.msra.mxu0 0.0
      %328 = vmatpush.msra.mxu0 0.0
      %329 = vmatpush.msra.mxu0 0.0
      %330 = vmatpush.msra.mxu0 0.0
      %331 = vmatpush.msra.mxu0 0.0
      %332 = vmatpush.msra.mxu0 0.0
      %333 = vmatpush.msra.mxu0 0.0
      %334 = vmatpush.msra.mxu0 %v316
      %335 = vmatpush.msra.mxu0 %v315
      %336 = vmatmul.f32.gmra.mxu0 %v318
      %v337 = vpop.f32.mrf.mxu0
      %v338 = vadd.f32 0.0, %v337
      %339 = vdwg.mxu0
      %v340 = vadd.f32 %v312, %v338
      %s341 = scalar_lea.vmem %s165, 8
      %v342 = vld [vmem:[%s341] sm:$0xf]
      %s343 = scalar_lea.vmem %s1, 96
      %v344 = vld [vmem:[%s343] sm:$0xff]
      %v345 = vld [vmem:[%s343 + $0x8] sm:$0xff]
      %v347 = vsel %vm180, %v342, 0
      %349 = vmatpush.msra.mxu0 0.0
      %350 = vmatpush.msra.mxu0 0.0
      %351 = vmatpush.msra.mxu0 0.0
      %352 = vmatpush.msra.mxu0 0.0
      %353 = vmatpush.msra.mxu0 0.0
      %354 = vmatpush.msra.mxu0 0.0
      %355 = vmatpush.msra.mxu0 0.0
      %356 = vmatpush.msra.mxu0 0.0
      %357 = vmatpush.msra.mxu0 0.0
      %358 = vmatpush.msra.mxu0 0.0
      %359 = vmatpush.msra.mxu0 0.0
      %360 = vmatpush.msra.mxu0 0.0
      %361 = vmatpush.msra.mxu0 0.0
      %362 = vmatpush.msra.mxu0 0.0
      %363 = vmatpush.msra.mxu0 %v345
      %364 = vmatpush.msra.mxu0 %v344
      %365 = vmatmul.f32.gmra.mxu0 %v347
      %v366 = vpop.f32.mrf.mxu0
      %v367 = vadd.f32 0.0, %v366
      %368 = vdwg.mxu0
      %v369 = vadd.f32 %v340, %v367
      %s370 = scalar_lea.vmem %s165, 48
      %v371 = vld [vmem:[%s370] sm:$0xf]
      %s372 = scalar_lea.vmem %s1, 112
      %v373 = vld [vmem:[%s372] sm:$0xff]
      %v374 = vld [vmem:[%s372 + $0x8] sm:$0xff]
      %v376 = vsel %vm180, %v371, 0
      %378 = vmatpush.msra.mxu0 0.0
      %379 = vmatpush.msra.mxu0 0.0
      %380 = vmatpush.msra.mxu0 0.0
      %381 = vmatpush.msra.mxu0 0.0
      %382 = vmatpush.msra.mxu0 0.0
      %383 = vmatpush.msra.mxu0 0.0
      %384 = vmatpush.msra.mxu0 0.0
      %385 = vmatpush.msra.mxu0 0.0
      %386 = vmatpush.msra.mxu0 0.0
      %387 = vmatpush.msra.mxu0 0.0
      %388 = vmatpush.msra.mxu0 0.0
      %389 = vmatpush.msra.mxu0 0.0
      %390 = vmatpush.msra.mxu0 0.0
      %391 = vmatpush.msra.mxu0 0.0
      %392 = vmatpush.msra.mxu0 %v374
      %393 = vmatpush.msra.mxu0 %v373
      %394 = vmatmul.f32.gmra.mxu0 %v376
      %v395 = vpop.f32.mrf.mxu0
      %v396 = vadd.f32 0.0, %v395
      %397 = vdwg.mxu0
      %v398 = vadd.f32 %v369, %v396
      %v399 = vld [vmem:[%s341 + $0x1] sm:$0xf]
      %s400 = scalar_lea.vmem %s1, 128
      %v401 = vld [vmem:[%s400] sm:$0xff]
      %v402 = vld [vmem:[%s400 + $0x8] sm:$0xff]
      %v404 = vsel %vm180, %v399, 0
      %406 = vmatpush.msra.mxu0 0.0
      %407 = vmatpush.msra.mxu0 0.0
      %408 = vmatpush.msra.mxu0 0.0
      %409 = vmatpush.msra.mxu0 0.0
      %410 = vmatpush.msra.mxu0 0.0
      %411 = vmatpush.msra.mxu0 0.0
      %412 = vmatpush.msra.mxu0 0.0
      %413 = vmatpush.msra.mxu0 0.0
      %414 = vmatpush.msra.mxu0 0.0
      %415 = vmatpush.msra.mxu0 0.0
      %416 = vmatpush.msra.mxu0 0.0
      %417 = vmatpush.msra.mxu0 0.0
      %418 = vmatpush.msra.mxu0 0.0
      %419 = vmatpush.msra.mxu0 0.0
      %420 = vmatpush.msra.mxu0 %v402
      %421 = vmatpush.msra.mxu0 %v401
      %422 = vmatmul.f32.gmra.mxu0 %v404
      %v423 = vpop.f32.mrf.mxu0
      %v424 = vadd.f32 0.0, %v423
      %425 = vdwg.mxu0
      %v426 = vadd.f32 %v398, %v424
      %v428 = vperm.slane %v171, 0
      %v430 = vadd.f32 %v426, %v428
      %v431 = vmax.f32 %v430, 0.0
      %vm432 = vcmask 125952
      %433 = vst.msk [vmem:[%s170] sm:$0xf] %vm432, %v431
      %v434 = vld [vmem:[%s341] sm:$0xf]
      %v435 = vld [vmem:[%s1] sm:$0xff]
      %v436 = vld [vmem:[%s1 + $0x8] sm:$0xff]
      %v437 = vld [vmem:[%s370] sm:$0xf]
      %v438 = vld [vmem:[%s177] sm:$0xff]
      %v439 = vld [vmem:[%s177 + $0x8] sm:$0xff]
      %v441 = vsel %vm180, %v437, 0
      %443 = vmatpush.msra.mxu0 0.0
      %444 = vmatpush.msra.mxu0 0.0
      %445 = vmatpush.msra.mxu0 0.0
      %446 = vmatpush.msra.mxu0 0.0
      %447 = vmatpush.msra.mxu0 0.0
      %448 = vmatpush.msra.mxu0 0.0
      %449 = vmatpush.msra.mxu0 0.0
      %450 = vmatpush.msra.mxu0 0.0
      %451 = vmatpush.msra.mxu0 0.0
      %452 = vmatpush.msra.mxu0 0.0
      %453 = vmatpush.msra.mxu0 0.0
      %454 = vmatpush.msra.mxu0 0.0
      %455 = vmatpush.msra.mxu0 0.0
      %456 = vmatpush.msra.mxu0 0.0
      %457 = vmatpush.msra.mxu0 %v439
      %458 = vmatpush.msra.mxu0 %v438
      %459 = vmatmul.f32.gmra.mxu0 %v441
      %v460 = vpop.f32.mrf.mxu0
      %v461 = vadd.f32 0.0, %v460
      %462 = vdwg.mxu0
      %v464 = vsel %vm180, %v434, 0
      %466 = vmatpush.msra.mxu0 0.0
      %467 = vmatpush.msra.mxu0 0.0
      %468 = vmatpush.msra.mxu0 0.0
      %469 = vmatpush.msra.mxu0 0.0
      %470 = vmatpush.msra.mxu0 0.0
      %471 = vmatpush.msra.mxu0 0.0
      %472 = vmatpush.msra.mxu0 0.0
      %473 = vmatpush.msra.mxu0 0.0
      %474 = vmatpush.msra.mxu0 0.0
      %475 = vmatpush.msra.mxu0 0.0
      %476 = vmatpush.msra.mxu0 0.0
      %477 = vmatpush.msra.mxu0 0.0
      %478 = vmatpush.msra.mxu0 0.0
      %479 = vmatpush.msra.mxu0 0.0
      %480 = vmatpush.msra.mxu0 %v436
      %481 = vmatpush.msra.mxu0 %v435
      %482 = vmatmul.f32.gmra.mxu0 %v464
      %v483 = vpop.f32.mrf.mxu0
      %v484 = vadd.f32 %v461, %v483
      %485 = vdwg.mxu0
      %v486 = vld [vmem:[%s341 + $0x1] sm:$0xf]
      %v487 = vld [vmem:[%s228] sm:$0xff]
      %v488 = vld [vmem:[%s228 + $0x8] sm:$0xff]
      %v490 = vsel %vm180, %v486, 0
      %492 = vmatpush.msra.mxu0 0.0
      %493 = vmatpush.msra.mxu0 0.0
      %494 = vmatpush.msra.mxu0 0.0
      %495 = vmatpush.msra.mxu0 0.0
      %496 = vmatpush.msra.mxu0 0.0
      %497 = vmatpush.msra.mxu0 0.0
      %498 = vmatpush.msra.mxu0 0.0
      %499 = vmatpush.msra.mxu0 0.0
      %500 = vmatpush.msra.mxu0 0.0
      %501 = vmatpush.msra.mxu0 0.0
      %502 = vmatpush.msra.mxu0 0.0
      %503 = vmatpush.msra.mxu0 0.0
      %504 = vmatpush.msra.mxu0 0.0
      %505 = vmatpush.msra.mxu0 0.0
      %506 = vmatpush.msra.mxu0 %v488
      %507 = vmatpush.msra.mxu0 %v487
      %508 = vmatmul.f32.gmra.mxu0 %v490
      %v509 = vpop.f32.mrf.mxu0
      %v510 = vadd.f32 0.0, %v509
      %511 = vdwg.mxu0
      %v512 = vadd.f32 %v484, %v510
      %s513 = scalar_lea.vmem %s165, 88
      %v514 = vld [vmem:[%s513] sm:$0xf]
      %v515 = vld [vmem:[%s257] sm:$0xff]
      %v516 = vld [vmem:[%s257 + $0x8] sm:$0xff]
      %v518 = vsel %vm180, %v514, 0
      %520 = vmatpush.msra.mxu0 0.0
      %521 = vmatpush.msra.mxu0 0.0
      %522 = vmatpush.msra.mxu0 0.0
      %523 = vmatpush.msra.mxu0 0.0
      %524 = vmatpush.msra.mxu0 0.0
      %525 = vmatpush.msra.mxu0 0.0
      %526 = vmatpush.msra.mxu0 0.0
      %527 = vmatpush.msra.mxu0 0.0
      %528 = vmatpush.msra.mxu0 0.0
      %529 = vmatpush.msra.mxu0 0.0
      %530 = vmatpush.msra.mxu0 0.0
      %531 = vmatpush.msra.mxu0 0.0
      %532 = vmatpush.msra.mxu0 0.0
      %533 = vmatpush.msra.mxu0 0.0
      %534 = vmatpush.msra.mxu0 %v516
      %535 = vmatpush.msra.mxu0 %v515
      %536 = vmatmul.f32.gmra.mxu0 %v518
      %v537 = vpop.f32.mrf.mxu0
      %v538 = vadd.f32 0.0, %v537
      %539 = vdwg.mxu0
      %v540 = vadd.f32 %v512, %v538
      %s541 = scalar_lea.vmem %s165, 128
      %v542 = vld [vmem:[%s541] sm:$0xf]
      %v543 = vld [vmem:[%s286] sm:$0xff]
      %v544 = vld [vmem:[%s286 + $0x8] sm:$0xff]
      %v546 = vsel %vm180, %v542, 0
      %548 = vmatpush.msra.mxu0 0.0
      %549 = vmatpush.msra.mxu0 0.0
      %550 = vmatpush.msra.mxu0 0.0
      %551 = vmatpush.msra.mxu0 0.0
      %552 = vmatpush.msra.mxu0 0.0
      %553 = vmatpush.msra.mxu0 0.0
      %554 = vmatpush.msra.mxu0 0.0
      %555 = vmatpush.msra.mxu0 0.0
      %556 = vmatpush.msra.mxu0 0.0
      %557 = vmatpush.msra.mxu0 0.0
      %558 = vmatpush.msra.mxu0 0.0
      %559 = vmatpush.msra.mxu0 0.0
      %560 = vmatpush.msra.mxu0 0.0
      %561 = vmatpush.msra.mxu0 0.0
      %562 = vmatpush.msra.mxu0 %v544
      %563 = vmatpush.msra.mxu0 %v543
      %564 = vmatmul.f32.gmra.mxu0 %v546
      %v565 = vpop.f32.mrf.mxu0
      %v566 = vadd.f32 0.0, %v565
      %567 = vdwg.mxu0
      %v568 = vadd.f32 %v540, %v566
      %v569 = vld [vmem:[%s513 + $0x1] sm:$0xf]
      %v570 = vld [vmem:[%s314] sm:$0xff]
      %v571 = vld [vmem:[%s314 + $0x8] sm:$0xff]
      %v573 = vsel %vm180, %v569, 0
      %575 = vmatpush.msra.mxu0 0.0
      %576 = vmatpush.msra.mxu0 0.0
      %577 = vmatpush.msra.mxu0 0.0
      %578 = vmatpush.msra.mxu0 0.0
      %579 = vmatpush.msra.mxu0 0.0
      %580 = vmatpush.msra.mxu0 0.0
      %581 = vmatpush.msra.mxu0 0.0
      %582 = vmatpush.msra.mxu0 0.0
      %583 = vmatpush.msra.mxu0 0.0
      %584 = vmatpush.msra.mxu0 0.0
      %585 = vmatpush.msra.mxu0 0.0
      %586 = vmatpush.msra.mxu0 0.0
      %587 = vmatpush.msra.mxu0 0.0
      %588 = vmatpush.msra.mxu0 0.0
      %589 = vmatpush.msra.mxu0 %v571
      %590 = vmatpush.msra.mxu0 %v570
      %591 = vmatmul.f32.gmra.mxu0 %v573
      %v592 = vpop.f32.mrf.mxu0
      %v593 = vadd.f32 0.0, %v592
      %594 = vdwg.mxu0
      %v595 = vadd.f32 %v568, %v593
      %s596 = scalar_lea.vmem %s165, 16
      %v597 = vld [vmem:[%s596] sm:$0xf]
      %v598 = vld [vmem:[%s343] sm:$0xff]
      %v599 = vld [vmem:[%s343 + $0x8] sm:$0xff]
      %v601 = vsel %vm180, %v597, 0
      %603 = vmatpush.msra.mxu0 0.0
      %604 = vmatpush.msra.mxu0 0.0
      %605 = vmatpush.msra.mxu0 0.0
      %606 = vmatpush.msra.mxu0 0.0
      %607 = vmatpush.msra.mxu0 0.0
      %608 = vmatpush.msra.mxu0 0.0
      %609 = vmatpush.msra.mxu0 0.0
      %610 = vmatpush.msra.mxu0 0.0
      %611 = vmatpush.msra.mxu0 0.0
      %612 = vmatpush.msra.mxu0 0.0
      %613 = vmatpush.msra.mxu0 0.0
      %614 = vmatpush.msra.mxu0 0.0
      %615 = vmatpush.msra.mxu0 0.0
      %616 = vmatpush.msra.mxu0 0.0
      %617 = vmatpush.msra.mxu0 %v599
      %618 = vmatpush.msra.mxu0 %v598
      %619 = vmatmul.f32.gmra.mxu0 %v601
      %v620 = vpop.f32.mrf.mxu0
      %v621 = vadd.f32 0.0, %v620
      %622 = vdwg.mxu0
      %v623 = vadd.f32 %v595, %v621
      %s624 = scalar_lea.vmem %s165, 56
      %v625 = vld [vmem:[%s624] sm:$0xf]
      %v626 = vld [vmem:[%s372] sm:$0xff]
      %v627 = vld [vmem:[%s372 + $0x8] sm:$0xff]
      %v629 = vsel %vm180, %v625, 0
      %631 = vmatpush.msra.mxu0 0.0
      %632 = vmatpush.msra.mxu0 0.0
      %633 = vmatpush.msra.mxu0 0.0
      %634 = vmatpush.msra.mxu0 0.0
      %635 = vmatpush.msra.mxu0 0.0
      %636 = vmatpush.msra.mxu0 0.0
      %637 = vmatpush.msra.mxu0 0.0
      %638 = vmatpush.msra.mxu0 0.0
      %639 = vmatpush.msra.mxu0 0.0
      %640 = vmatpush.msra.mxu0 0.0
      %641 = vmatpush.msra.mxu0 0.0
      %642 = vmatpush.msra.mxu0 0.0
      %643 = vmatpush.msra.mxu0 0.0
      %644 = vmatpush.msra.mxu0 0.0
      %645 = vmatpush.msra.mxu0 %v627
      %646 = vmatpush.msra.mxu0 %v626
      %647 = vmatmul.f32.gmra.mxu0 %v629
      %v648 = vpop.f32.mrf.mxu0
      %v649 = vadd.f32 0.0, %v648
      %650 = vdwg.mxu0
      %v651 = vadd.f32 %v623, %v649
      %v652 = vld [vmem:[%s596 + $0x1] sm:$0xf]
      %v653 = vld [vmem:[%s400] sm:$0xff]
      %v654 = vld [vmem:[%s400 + $0x8] sm:$0xff]
      %v656 = vsel %vm180, %v652, 0
      %658 = vmatpush.msra.mxu0 0.0
      %659 = vmatpush.msra.mxu0 0.0
      %660 = vmatpush.msra.mxu0 0.0
      %661 = vmatpush.msra.mxu0 0.0
      %662 = vmatpush.msra.mxu0 0.0
      %663 = vmatpush.msra.mxu0 0.0
      %664 = vmatpush.msra.mxu0 0.0
      %665 = vmatpush.msra.mxu0 0.0
      %666 = vmatpush.msra.mxu0 0.0
      %667 = vmatpush.msra.mxu0 0.0
      %668 = vmatpush.msra.mxu0 0.0
      %669 = vmatpush.msra.mxu0 0.0
      %670 = vmatpush.msra.mxu0 0.0
      %671 = vmatpush.msra.mxu0 0.0
      %672 = vmatpush.msra.mxu0 %v654
      %673 = vmatpush.msra.mxu0 %v653
      %674 = vmatmul.f32.gmra.mxu0 %v656
      %v675 = vpop.f32.mrf.mxu0
      %v676 = vadd.f32 0.0, %v675
      %677 = vdwg.mxu0
      %v678 = vadd.f32 %v651, %v676
      %v679 = vadd.f32 %v678, %v428
      %v680 = vmax.f32 %v679, 0.0
      %681 = vst.msk [vmem:[%s170 + $0x4] sm:$0xf] %vm432, %v680
      %v682 = vld [vmem:[%s596] sm:$0xf]
      %v683 = vld [vmem:[%s1] sm:$0xff]
      %v684 = vld [vmem:[%s1 + $0x8] sm:$0xff]
      %v685 = vld [vmem:[%s624] sm:$0xf]
      %v686 = vld [vmem:[%s177] sm:$0xff]
      %v687 = vld [vmem:[%s177 + $0x8] sm:$0xff]
      %v689 = vsel %vm180, %v685, 0
      %691 = vmatpush.msra.mxu0 0.0
      %692 = vmatpush.msra.mxu0 0.0
      %693 = vmatpush.msra.mxu0 0.0
      %694 = vmatpush.msra.mxu0 0.0
      %695 = vmatpush.msra.mxu0 0.0
      %696 = vmatpush.msra.mxu0 0.0
      %697 = vmatpush.msra.mxu0 0.0
      %698 = vmatpush.msra.mxu0 0.0
      %699 = vmatpush.msra.mxu0 0.0
      %700 = vmatpush.msra.mxu0 0.0
      %701 = vmatpush.msra.mxu0 0.0
      %702 = vmatpush.msra.mxu0 0.0
      %703 = vmatpush.msra.mxu0 0.0
      %704 = vmatpush.msra.mxu0 0.0
      %705 = vmatpush.msra.mxu0 %v687
      %706 = vmatpush.msra.mxu0 %v686
      %707 = vmatmul.f32.gmra.mxu0 %v689
      %v708 = vpop.f32.mrf.mxu0
      %v709 = vadd.f32 0.0, %v708
      %710 = vdwg.mxu0
      %v712 = vsel %vm180, %v682, 0
      %714 = vmatpush.msra.mxu0 0.0
      %715 = vmatpush.msra.mxu0 0.0
      %716 = vmatpush.msra.mxu0 0.0
      %717 = vmatpush.msra.mxu0 0.0
      %718 = vmatpush.msra.mxu0 0.0
      %719 = vmatpush.msra.mxu0 0.0
      %720 = vmatpush.msra.mxu0 0.0
      %721 = vmatpush.msra.mxu0 0.0
      %722 = vmatpush.msra.mxu0 0.0
      %723 = vmatpush.msra.mxu0 0.0
      %724 = vmatpush.msra.mxu0 0.0
      %725 = vmatpush.msra.mxu0 0.0
      %726 = vmatpush.msra.mxu0 0.0
      %727 = vmatpush.msra.mxu0 0.0
      %728 = vmatpush.msra.mxu0 %v684
      %729 = vmatpush.msra.mxu0 %v683
      %730 = vmatmul.f32.gmra.mxu0 %v712
      %v731 = vpop.f32.mrf.mxu0
      %v732 = vadd.f32 %v709, %v731
      %733 = vdwg.mxu0
      %v734 = vld [vmem:[%s596 + $0x1] sm:$0xf]
      %v735 = vld [vmem:[%s228] sm:$0xff]
      %v736 = vld [vmem:[%s228 + $0x8] sm:$0xff]
      %v738 = vsel %vm180, %v734, 0
      %740 = vmatpush.msra.mxu0 0.0
      %741 = vmatpush.msra.mxu0 0.0
      %742 = vmatpush.msra.mxu0 0.0
      %743 = vmatpush.msra.mxu0 0.0
      %744 = vmatpush.msra.mxu0 0.0
      %745 = vmatpush.msra.mxu0 0.0
      %746 = vmatpush.msra.mxu0 0.0
      %747 = vmatpush.msra.mxu0 0.0
      %748 = vmatpush.msra.mxu0 0.0
      %749 = vmatpush.msra.mxu0 0.0
      %750 = vmatpush.msra.mxu0 0.0
      %751 = vmatpush.msra.mxu0 0.0
      %752 = vmatpush.msra.mxu0 0.0
      %753 = vmatpush.msra.mxu0 0.0
      %754 = vmatpush.msra.mxu0 %v736
      %755 = vmatpush.msra.mxu0 %v735
      %756 = vmatmul.f32.gmra.mxu0 %v738
      %v757 = vpop.f32.mrf.mxu0
      %v758 = vadd.f32 0.0, %v757
      %759 = vdwg.mxu0
      %v760 = vadd.f32 %v732, %v758
      %s761 = scalar_lea.vmem %s165, 96
      %v762 = vld [vmem:[%s761] sm:$0xf]
      %v763 = vld [vmem:[%s257] sm:$0xff]
      %v764 = vld [vmem:[%s257 + $0x8] sm:$0xff]
      %v766 = vsel %vm180, %v762, 0
      %768 = vmatpush.msra.mxu0 0.0
      %769 = vmatpush.msra.mxu0 0.0
      %770 = vmatpush.msra.mxu0 0.0
      %771 = vmatpush.msra.mxu0 0.0
      %772 = vmatpush.msra.mxu0 0.0
      %773 = vmatpush.msra.mxu0 0.0
      %774 = vmatpush.msra.mxu0 0.0
      %775 = vmatpush.msra.mxu0 0.0
      %776 = vmatpush.msra.mxu0 0.0
      %777 = vmatpush.msra.mxu0 0.0
      %778 = vmatpush.msra.mxu0 0.0
      %779 = vmatpush.msra.mxu0 0.0
      %780 = vmatpush.msra.mxu0 0.0
      %781 = vmatpush.msra.mxu0 0.0
      %782 = vmatpush.msra.mxu0 %v764
      %783 = vmatpush.msra.mxu0 %v763
      %784 = vmatmul.f32.gmra.mxu0 %v766
      %v785 = vpop.f32.mrf.mxu0
      %v786 = vadd.f32 0.0, %v785
      %787 = vdwg.mxu0
      %v788 = vadd.f32 %v760, %v786
      %s789 = scalar_lea.vmem %s165, 136
      %v790 = vld [vmem:[%s789] sm:$0xf]
      %v791 = vld [vmem:[%s286] sm:$0xff]
      %v792 = vld [vmem:[%s286 + $0x8] sm:$0xff]
      %v794 = vsel %vm180, %v790, 0
      %796 = vmatpush.msra.mxu0 0.0
      %797 = vmatpush.msra.mxu0 0.0
      %798 = vmatpush.msra.mxu0 0.0
      %799 = vmatpush.msra.mxu0 0.0
      %800 = vmatpush.msra.mxu0 0.0
      %801 = vmatpush.msra.mxu0 0.0
      %802 = vmatpush.msra.mxu0 0.0
      %803 = vmatpush.msra.mxu0 0.0
      %804 = vmatpush.msra.mxu0 0.0
      %805 = vmatpush.msra.mxu0 0.0
      %806 = vmatpush.msra.mxu0 0.0
      %807 = vmatpush.msra.mxu0 0.0
      %808 = vmatpush.msra.mxu0 0.0
      %809 = vmatpush.msra.mxu0 0.0
      %810 = vmatpush.msra.mxu0 %v792
      %811 = vmatpush.msra.mxu0 %v791
      %812 = vmatmul.f32.gmra.mxu0 %v794
      %v813 = vpop.f32.mrf.mxu0
      %v814 = vadd.f32 0.0, %v813
      %815 = vdwg.mxu0
      %v816 = vadd.f32 %v788, %v814
      %v817 = vld [vmem:[%s761 + $0x1] sm:$0xf]
      %v818 = vld [vmem:[%s314] sm:$0xff]
      %v819 = vld [vmem:[%s314 + $0x8] sm:$0xff]
      %v821 = vsel %vm180, %v817, 0
      %823 = vmatpush.msra.mxu0 0.0
      %824 = vmatpush.msra.mxu0 0.0
      %825 = vmatpush.msra.mxu0 0.0
      %826 = vmatpush.msra.mxu0 0.0
      %827 = vmatpush.msra.mxu0 0.0
      %828 = vmatpush.msra.mxu0 0.0
      %829 = vmatpush.msra.mxu0 0.0
      %830 = vmatpush.msra.mxu0 0.0
      %831 = vmatpush.msra.mxu0 0.0
      %832 = vmatpush.msra.mxu0 0.0
      %833 = vmatpush.msra.mxu0 0.0
      %834 = vmatpush.msra.mxu0 0.0
      %835 = vmatpush.msra.mxu0 0.0
      %836 = vmatpush.msra.mxu0 0.0
      %837 = vmatpush.msra.mxu0 %v819
      %838 = vmatpush.msra.mxu0 %v818
      %839 = vmatmul.f32.gmra.mxu0 %v821
      %v840 = vpop.f32.mrf.mxu0
      %v841 = vadd.f32 0.0, %v840
      %842 = vdwg.mxu0
      %v843 = vadd.f32 %v816, %v841
      %s844 = scalar_lea.vmem %s165, 24
      %v845 = vld [vmem:[%s844] sm:$0xf]
      %v846 = vld [vmem:[%s343] sm:$0xff]
      %v847 = vld [vmem:[%s343 + $0x8] sm:$0xff]
      %v849 = vsel %vm180, %v845, 0
      %851 = vmatpush.msra.mxu0 0.0
      %852 = vmatpush.msra.mxu0 0.0
      %853 = vmatpush.msra.mxu0 0.0
      %854 = vmatpush.msra.mxu0 0.0
      %855 = vmatpush.msra.mxu0 0.0
      %856 = vmatpush.msra.mxu0 0.0
      %857 = vmatpush.msra.mxu0 0.0
      %858 = vmatpush.msra.mxu0 0.0
      %859 = vmatpush.msra.mxu0 0.0
      %860 = vmatpush.msra.mxu0 0.0
      %861 = vmatpush.msra.mxu0 0.0
      %862 = vmatpush.msra.mxu0 0.0
      %863 = vmatpush.msra.mxu0 0.0
      %864 = vmatpush.msra.mxu0 0.0
      %865 = vmatpush.msra.mxu0 %v847
      %866 = vmatpush.msra.mxu0 %v846
      %867 = vmatmul.f32.gmra.mxu0 %v849
      %v868 = vpop.f32.mrf.mxu0
      %v869 = vadd.f32 0.0, %v868
      %870 = vdwg.mxu0
      %v871 = vadd.f32 %v843, %v869
      %s872 = scalar_lea.vmem %s165, 64
      %v873 = vld [vmem:[%s872] sm:$0xf]
      %v874 = vld [vmem:[%s372] sm:$0xff]
      %v875 = vld [vmem:[%s372 + $0x8] sm:$0xff]
      %v877 = vsel %vm180, %v873, 0
      %879 = vmatpush.msra.mxu0 0.0
      %880 = vmatpush.msra.mxu0 0.0
      %881 = vmatpush.msra.mxu0 0.0
      %882 = vmatpush.msra.mxu0 0.0
      %883 = vmatpush.msra.mxu0 0.0
      %884 = vmatpush.msra.mxu0 0.0
      %885 = vmatpush.msra.mxu0 0.0
      %886 = vmatpush.msra.mxu0 0.0
      %887 = vmatpush.msra.mxu0 0.0
      %888 = vmatpush.msra.mxu0 0.0
      %889 = vmatpush.msra.mxu0 0.0
      %890 = vmatpush.msra.mxu0 0.0
      %891 = vmatpush.msra.mxu0 0.0
      %892 = vmatpush.msra.mxu0 0.0
      %893 = vmatpush.msra.mxu0 %v875
      %894 = vmatpush.msra.mxu0 %v874
      %895 = vmatmul.f32.gmra.mxu0 %v877
      %v896 = vpop.f32.mrf.mxu0
      %v897 = vadd.f32 0.0, %v896
      %898 = vdwg.mxu0
      %v899 = vadd.f32 %v871, %v897
      %v900 = vld [vmem:[%s844 + $0x1] sm:$0xf]
      %v901 = vld [vmem:[%s400] sm:$0xff]
      %v902 = vld [vmem:[%s400 + $0x8] sm:$0xff]
      %v904 = vsel %vm180, %v900, 0
      %906 = vmatpush.msra.mxu0 0.0
      %907 = vmatpush.msra.mxu0 0.0
      %908 = vmatpush.msra.mxu0 0.0
      %909 = vmatpush.msra.mxu0 0.0
      %910 = vmatpush.msra.mxu0 0.0
      %911 = vmatpush.msra.mxu0 0.0
      %912 = vmatpush.msra.mxu0 0.0
      %913 = vmatpush.msra.mxu0 0.0
      %914 = vmatpush.msra.mxu0 0.0
      %915 = vmatpush.msra.mxu0 0.0
      %916 = vmatpush.msra.mxu0 0.0
      %917 = vmatpush.msra.mxu0 0.0
      %918 = vmatpush.msra.mxu0 0.0
      %919 = vmatpush.msra.mxu0 0.0
      %920 = vmatpush.msra.mxu0 %v902
      %921 = vmatpush.msra.mxu0 %v901
      %922 = vmatmul.f32.gmra.mxu0 %v904
      %v923 = vpop.f32.mrf.mxu0
      %v924 = vadd.f32 0.0, %v923
      %925 = vdwg.mxu0
      %v926 = vadd.f32 %v899, %v924
      %v927 = vadd.f32 %v926, %v428
      %v928 = vmax.f32 %v927, 0.0
      %929 = vst.msk [vmem:[%s170 + $0x8] sm:$0xf] %vm432, %v928
      %v930 = vld [vmem:[%s844] sm:$0xf]
      %v931 = vld [vmem:[%s1] sm:$0xff]
      %v932 = vld [vmem:[%s1 + $0x8] sm:$0xff]
      %v933 = vld [vmem:[%s872] sm:$0xf]
      %v934 = vld [vmem:[%s177] sm:$0xff]
      %v935 = vld [vmem:[%s177 + $0x8] sm:$0xff]
      %v937 = vsel %vm180, %v933, 0
      %939 = vmatpush.msra.mxu0 0.0
      %940 = vmatpush.msra.mxu0 0.0
      %941 = vmatpush.msra.mxu0 0.0
      %942 = vmatpush.msra.mxu0 0.0
      %943 = vmatpush.msra.mxu0 0.0
      %944 = vmatpush.msra.mxu0 0.0
      %945 = vmatpush.msra.mxu0 0.0
      %946 = vmatpush.msra.mxu0 0.0
      %947 = vmatpush.msra.mxu0 0.0
      %948 = vmatpush.msra.mxu0 0.0
      %949 = vmatpush.msra.mxu0 0.0
      %950 = vmatpush.msra.mxu0 0.0
      %951 = vmatpush.msra.mxu0 0.0
      %952 = vmatpush.msra.mxu0 0.0
      %953 = vmatpush.msra.mxu0 %v935
      %954 = vmatpush.msra.mxu0 %v934
      %955 = vmatmul.f32.gmra.mxu0 %v937
      %v956 = vpop.f32.mrf.mxu0
      %v957 = vadd.f32 0.0, %v956
      %958 = vdwg.mxu0
      %v960 = vsel %vm180, %v930, 0
      %962 = vmatpush.msra.mxu0 0.0
      %963 = vmatpush.msra.mxu0 0.0
      %964 = vmatpush.msra.mxu0 0.0
      %965 = vmatpush.msra.mxu0 0.0
      %966 = vmatpush.msra.mxu0 0.0
      %967 = vmatpush.msra.mxu0 0.0
      %968 = vmatpush.msra.mxu0 0.0
      %969 = vmatpush.msra.mxu0 0.0
      %970 = vmatpush.msra.mxu0 0.0
      %971 = vmatpush.msra.mxu0 0.0
      %972 = vmatpush.msra.mxu0 0.0
      %973 = vmatpush.msra.mxu0 0.0
      %974 = vmatpush.msra.mxu0 0.0
      %975 = vmatpush.msra.mxu0 0.0
      %976 = vmatpush.msra.mxu0 %v932
      %977 = vmatpush.msra.mxu0 %v931
      %978 = vmatmul.f32.gmra.mxu0 %v960
      %v979 = vpop.f32.mrf.mxu0
      %v980 = vadd.f32 %v957, %v979
      %981 = vdwg.mxu0
      %v982 = vld [vmem:[%s844 + $0x1] sm:$0xf]
      %v983 = vld [vmem:[%s228] sm:$0xff]
      %v984 = vld [vmem:[%s228 + $0x8] sm:$0xff]
      %v986 = vsel %vm180, %v982, 0
      %988 = vmatpush.msra.mxu0 0.0
      %989 = vmatpush.msra.mxu0 0.0
      %990 = vmatpush.msra.mxu0 0.0
      %991 = vmatpush.msra.mxu0 0.0
      %992 = vmatpush.msra.mxu0 0.0
      %993 = vmatpush.msra.mxu0 0.0
      %994 = vmatpush.msra.mxu0 0.0
      %995 = vmatpush.msra.mxu0 0.0
      %996 = vmatpush.msra.mxu0 0.0
      %997 = vmatpush.msra.mxu0 0.0
      %998 = vmatpush.msra.mxu0 0.0
      %999 = vmatpush.msra.mxu0 0.0
      %1000 = vmatpush.msra.mxu0 0.0
      %1001 = vmatpush.msra.mxu0 0.0
      %1002 = vmatpush.msra.mxu0 %v984
      %1003 = vmatpush.msra.mxu0 %v983
      %1004 = vmatmul.f32.gmra.mxu0 %v986
      %v1005 = vpop.f32.mrf.mxu0
      %v1006 = vadd.f32 0.0, %v1005
      %1007 = vdwg.mxu0
      %v1008 = vadd.f32 %v980, %v1006
      %s1009 = scalar_lea.vmem %s165, 104
      %v1010 = vld [vmem:[%s1009] sm:$0xf]
      %v1011 = vld [vmem:[%s257] sm:$0xff]
      %v1012 = vld [vmem:[%s257 + $0x8] sm:$0xff]
      %v1014 = vsel %vm180, %v1010, 0
      %1016 = vmatpush.msra.mxu0 0.0
      %1017 = vmatpush.msra.mxu0 0.0
      %1018 = vmatpush.msra.mxu0 0.0
      %1019 = vmatpush.msra.mxu0 0.0
      %1020 = vmatpush.msra.mxu0 0.0
      %1021 = vmatpush.msra.mxu0 0.0
      %1022 = vmatpush.msra.mxu0 0.0
      %1023 = vmatpush.msra.mxu0 0.0
      %1024 = vmatpush.msra.mxu0 0.0
      %1025 = vmatpush.msra.mxu0 0.0
      %1026 = vmatpush.msra.mxu0 0.0
      %1027 = vmatpush.msra.mxu0 0.0
      %1028 = vmatpush.msra.mxu0 0.0
      %1029 = vmatpush.msra.mxu0 0.0
      %1030 = vmatpush.msra.mxu0 %v1012
      %1031 = vmatpush.msra.mxu0 %v1011
      %1032 = vmatmul.f32.gmra.mxu0 %v1014
      %v1033 = vpop.f32.mrf.mxu0
      %v1034 = vadd.f32 0.0, %v1033
      %1035 = vdwg.mxu0
      %v1036 = vadd.f32 %v1008, %v1034
      %s1037 = scalar_lea.vmem %s165, 144
      %v1038 = vld [vmem:[%s1037] sm:$0xf]
      %v1039 = vld [vmem:[%s286] sm:$0xff]
      %v1040 = vld [vmem:[%s286 + $0x8] sm:$0xff]
      %v1042 = vsel %vm180, %v1038, 0
      %1044 = vmatpush.msra.mxu0 0.0
      %1045 = vmatpush.msra.mxu0 0.0
      %1046 = vmatpush.msra.mxu0 0.0
      %1047 = vmatpush.msra.mxu0 0.0
      %1048 = vmatpush.msra.mxu0 0.0
      %1049 = vmatpush.msra.mxu0 0.0
      %1050 = vmatpush.msra.mxu0 0.0
      %1051 = vmatpush.msra.mxu0 0.0
      %1052 = vmatpush.msra.mxu0 0.0
      %1053 = vmatpush.msra.mxu0 0.0
      %1054 = vmatpush.msra.mxu0 0.0
      %1055 = vmatpush.msra.mxu0 0.0
      %1056 = vmatpush.msra.mxu0 0.0
      %1057 = vmatpush.msra.mxu0 0.0
      %1058 = vmatpush.msra.mxu0 %v1040
      %1059 = vmatpush.msra.mxu0 %v1039
      %1060 = vmatmul.f32.gmra.mxu0 %v1042
      %v1061 = vpop.f32.mrf.mxu0
      %v1062 = vadd.f32 0.0, %v1061
      %1063 = vdwg.mxu0
      %v1064 = vadd.f32 %v1036, %v1062
      %v1065 = vld [vmem:[%s1009 + $0x1] sm:$0xf]
      %v1066 = vld [vmem:[%s314] sm:$0xff]
      %v1067 = vld [vmem:[%s314 + $0x8] sm:$0xff]
      %v1069 = vsel %vm180, %v1065, 0
      %1071 = vmatpush.msra.mxu0 0.0
      %1072 = vmatpush.msra.mxu0 0.0
      %1073 = vmatpush.msra.mxu0 0.0
      %1074 = vmatpush.msra.mxu0 0.0
      %1075 = vmatpush.msra.mxu0 0.0
      %1076 = vmatpush.msra.mxu0 0.0
      %1077 = vmatpush.msra.mxu0 0.0
      %1078 = vmatpush.msra.mxu0 0.0
      %1079 = vmatpush.msra.mxu0 0.0
      %1080 = vmatpush.msra.mxu0 0.0
      %1081 = vmatpush.msra.mxu0 0.0
      %1082 = vmatpush.msra.mxu0 0.0
      %1083 = vmatpush.msra.mxu0 0.0
      %1084 = vmatpush.msra.mxu0 0.0
      %1085 = vmatpush.msra.mxu0 %v1067
      %1086 = vmatpush.msra.mxu0 %v1066
      %1087 = vmatmul.f32.gmra.mxu0 %v1069
      %v1088 = vpop.f32.mrf.mxu0
      %v1089 = vadd.f32 0.0, %v1088
      %1090 = vdwg.mxu0
      %v1091 = vadd.f32 %v1064, %v1089
      %s1092 = scalar_lea.vmem %s165, 32
      %v1093 = vld [vmem:[%s1092] sm:$0xf]
      %v1094 = vld [vmem:[%s343] sm:$0xff]
      %v1095 = vld [vmem:[%s343 + $0x8] sm:$0xff]
      %v1097 = vsel %vm180, %v1093, 0
      %1099 = vmatpush.msra.mxu0 0.0
      %1100 = vmatpush.msra.mxu0 0.0
      %1101 = vmatpush.msra.mxu0 0.0
      %1102 = vmatpush.msra.mxu0 0.0
      %1103 = vmatpush.msra.mxu0 0.0
      %1104 = vmatpush.msra.mxu0 0.0
      %1105 = vmatpush.msra.mxu0 0.0
      %1106 = vmatpush.msra.mxu0 0.0
      %1107 = vmatpush.msra.mxu0 0.0
      %1108 = vmatpush.msra.mxu0 0.0
      %1109 = vmatpush.msra.mxu0 0.0
      %1110 = vmatpush.msra.mxu0 0.0
      %1111 = vmatpush.msra.mxu0 0.0
      %1112 = vmatpush.msra.mxu0 0.0
      %1113 = vmatpush.msra.mxu0 %v1095
      %1114 = vmatpush.msra.mxu0 %v1094
      %1115 = vmatmul.f32.gmra.mxu0 %v1097
      %v1116 = vpop.f32.mrf.mxu0
      %v1117 = vadd.f32 0.0, %v1116
      %1118 = vdwg.mxu0
      %v1119 = vadd.f32 %v1091, %v1117
      %s1120 = scalar_lea.vmem %s165, 72
      %v1121 = vld [vmem:[%s1120] sm:$0xf]
      %v1122 = vld [vmem:[%s372] sm:$0xff]
      %v1123 = vld [vmem:[%s372 + $0x8] sm:$0xff]
      %v1125 = vsel %vm180, %v1121, 0
      %1127 = vmatpush.msra.mxu0 0.0
      %1128 = vmatpush.msra.mxu0 0.0
      %1129 = vmatpush.msra.mxu0 0.0
      %1130 = vmatpush.msra.mxu0 0.0
      %1131 = vmatpush.msra.mxu0 0.0
      %1132 = vmatpush.msra.mxu0 0.0
      %1133 = vmatpush.msra.mxu0 0.0
      %1134 = vmatpush.msra.mxu0 0.0
      %1135 = vmatpush.msra.mxu0 0.0
      %1136 = vmatpush.msra.mxu0 0.0
      %1137 = vmatpush.msra.mxu0 0.0
      %1138 = vmatpush.msra.mxu0 0.0
      %1139 = vmatpush.msra.mxu0 0.0
      %1140 = vmatpush.msra.mxu0 0.0
      %1141 = vmatpush.msra.mxu0 %v1123
      %1142 = vmatpush.msra.mxu0 %v1122
      %1143 = vmatmul.f32.gmra.mxu0 %v1125
      %v1144 = vpop.f32.mrf.mxu0
      %v1145 = vadd.f32 0.0, %v1144
      %1146 = vdwg.mxu0
      %v1147 = vadd.f32 %v1119, %v1145
      %v1148 = vld [vmem:[%s1092 + $0x1] sm:$0xf]
      %v1149 = vld [vmem:[%s400] sm:$0xff]
      %v1150 = vld [vmem:[%s400 + $0x8] sm:$0xff]
      %v1152 = vsel %vm180, %v1148, 0
      %1154 = vmatpush.msra.mxu0 0.0
      %1155 = vmatpush.msra.mxu0 0.0
      %1156 = vmatpush.msra.mxu0 0.0
      %1157 = vmatpush.msra.mxu0 0.0
      %1158 = vmatpush.msra.mxu0 0.0
      %1159 = vmatpush.msra.mxu0 0.0
      %1160 = vmatpush.msra.mxu0 0.0
      %1161 = vmatpush.msra.mxu0 0.0
      %1162 = vmatpush.msra.mxu0 0.0
      %1163 = vmatpush.msra.mxu0 0.0
      %1164 = vmatpush.msra.mxu0 0.0
      %1165 = vmatpush.msra.mxu0 0.0
      %1166 = vmatpush.msra.mxu0 0.0
      %1167 = vmatpush.msra.mxu0 0.0
      %1168 = vmatpush.msra.mxu0 %v1150
      %1169 = vmatpush.msra.mxu0 %v1149
      %1170 = vmatmul.f32.gmra.mxu0 %v1152
      %v1171 = vpop.f32.mrf.mxu0
      %v1172 = vadd.f32 0.0, %v1171
      %1173 = vdwg.mxu0
      %v1174 = vadd.f32 %v1147, %v1172
      %v1175 = vadd.f32 %v1174, %v428
      %v1176 = vmax.f32 %v1175, 0.0
      %1177 = vst.msk [vmem:[%s170 + $0xc] sm:$0xf] %vm432, %v1176
      %p1178 = scmp.lt.s32.totalorder %s14, 1
      %s1179 = scalar_select %p1178, %s14, 1
      %s1180 = smul.addr %s1179, 2
      %s1181 = smul.addr %s1180, 8
      %s1182 = scalar_lea.vmem %s3, %s1181
      // Predicated region
      $region33: #{dose_forward.4} parent=31 // pred_check
        %p1183 = pneg %p100
      $region34: #{dose_forward.4} parent=31 // pred_check_branch
        %1185 = sbr.rel (%p1183) target = $region36
      $region35: #{dose_forward.4} parent=31 // pred_region
        _
      $region36: #{dose_forward.4} parent=31 // pred_fallthru
        _
    $region32: #{dose_forward.4} parent=5 // pred_fallthru
      _
    %p1186 = scmp.le.s32.totalorder 2, %s9
    // Predicated region
    $region37: #{dose_forward.4} parent=5 // pred_check
      %p1187 = pneg %p1186
    $region38: #{dose_forward.4} parent=5 // pred_check_branch
      %1189 = sbr.rel (%p1187) target = $region40
    $region39: #{dose_forward.4} parent=5 // pred_region
      %s1190 = ssub.s32 %s9, 2
      // Predicated region
      $region41: #{dose_forward.4} parent=39 // pred_check
        %p1191 = pneg %p106
      $region42: #{dose_forward.4} parent=39 // pred_check_branch
        %1193 = sbr.rel (%p1191) target = $region44
      $region43: #{dose_forward.4} parent=39 // pred_region
        %p1194 = scmp.lt.s32.totalorder %s15, 1
        %s1195 = scalar_select %p1194, %s15, 1
        %s1196 = smul.addr %s1195, 2
        %s1197 = smul.addr %s1196, 8
        %s1198 = scalar_lea.vmem %s3, %s1197
      $region44: #{dose_forward.4} parent=39 // pred_fallthru
        _
    $region40: #{dose_forward.4} parent=5 // pred_fallthru
      _
  $region6: #{dose_forward.4} parent=0 // loop_footer
    %s13 = sadd.s32 1, %s9
  $region7: #{dose_forward.4} parent=0 // loop_footer_branch
    %8 = sbr.rel target = $region3
  $region8: #{dose_forward.4} parent=0 // loop_exit
    _

// kernel: dose_forward.5
$region0: #{dose_forward.5}
  #allocation0 [shape = 'u32[]', space=smem, size = 0x4, offset = 0x4, fixed_abs, tag = 'smem constant byte address 0x4 - core index']
  #allocation1 [shape = 'u32[72,128]{1,0:T(1,128)}', space=vmem, size = 0x9000, scoped, tag = 'internal scratch']
  %s0 = inlined_call_operand.vmem [shape: f32[2,8], index: 0, kind: input, shape index: {}]
  %s1 = inlined_call_operand.vmem [shape: f32[2,16,16], index: 1, kind: input, shape index: {}]
  %s2 = inlined_call_operand.vmem [shape: f32[168,32], index: 2, kind: input, shape index: {}]
  %s3 = inlined_call_operand.vmem [shape: f32[6,32], index: 3, kind: input, shape index: {}]
  %s4 = inlined_call_operand.vmem [shape: f32[33,96], index: 4, kind: input, shape index: {}]
  %s5 = inlined_call_operand.vmem [shape: f32[2,1], index: 5, kind: output, shape index: {}]
  %s6 = sld [smem:[#allocation0]]
  $region30: #{dose_forward.5} parent=0
    _
  %s8 = ssub.s32 1, %s6
  %s9 = scalar_select 0, %s8, %s6
  // Predicated region
  $region2: #{dose_forward.5} parent=0 // pred_check
    _
  $region3: #{dose_forward.5} parent=0 // pred_check_branch
    %11 = sbr.rel (0) target = $region5
  $region4: #{dose_forward.5} parent=0 // pred_region
    _
  $region5: #{dose_forward.5} parent=0 // pred_fallthru
    _
  // Predicated region
  $region6: #{dose_forward.5} parent=0 // pred_check
    _
  $region7: #{dose_forward.5} parent=0 // pred_check_branch
    %13 = sbr.rel (0) target = $region9
  $region8: #{dose_forward.5} parent=0 // pred_region
    _
  $region9: #{dose_forward.5} parent=0 // pred_fallthru
    _
  // Predicated region
  $region10: #{dose_forward.5} parent=0 // pred_check
    _
  $region11: #{dose_forward.5} parent=0 // pred_check_branch
    %15 = sbr.rel (0) target = $region13
  $region12: #{dose_forward.5} parent=0 // pred_region
    _
  $region13: #{dose_forward.5} parent=0 // pred_fallthru
    _
  // Predicated region
  $region14: #{dose_forward.5} parent=0 // pred_check
    _
  $region15: #{dose_forward.5} parent=0 // pred_check_branch
    %17 = sbr.rel (0) target = $region17
  $region16: #{dose_forward.5} parent=0 // pred_region
    _
  $region17: #{dose_forward.5} parent=0 // pred_fallthru
    _
  // Predicated region
  $region18: #{dose_forward.5} parent=0 // pred_check
    _
  $region19: #{dose_forward.5} parent=0 // pred_check_branch
    %19 = sbr.rel (0) target = $region21
  $region20: #{dose_forward.5} parent=0 // pred_region
    _
  $region21: #{dose_forward.5} parent=0 // pred_fallthru
    _
  %v20 = vld [vmem:[%s1] sm:$0xff]
  %v21 = vld [vmem:[%s1 + $0x8] sm:$0xff]
  %v22 = vld [vmem:[%s1 + $0x10] sm:$0xff]
  %v23 = vld [vmem:[%s1 + $0x18] sm:$0xff]
  %vm24 = vcmask 130048
  %v25 = vsel %vm24, %v20, 0.0
  %v26 = vsel %vm24, %v21, 0.0
  %v27 = vadd.f32 %v25, %v26
  %v28 = vrot.slane %v27, 4
  %v29 = vadd.f32 %v27, %v28
  %v30 = vrot.slane %v29, 2
  %v31 = vadd.f32 %v29, %v30
  %v32 = vrot.slane %v31, 1
  %v33 = vadd.f32 %v31, %v32
  %v34 = vsel %vm24, %v22, 0.0
  %v35 = vsel %vm24, %v23, 0.0
  %v36 = vadd.f32 %v34, %v35
  %v37 = vrot.slane %v36, 4
  %v38 = vadd.f32 %v36, %v37
  %v39 = vrot.slane %v38, 2
  %v40 = vadd.f32 %v38, %v39
  %v41 = vrot.slane %v40, 1
  %v42 = vadd.f32 %v40, %v41
  %v43 = vmul.f32 %v33, 0.0625
  %v44 = vmul.f32 %v42, 0.0625
  %v45 = vld [vmem:[%s2] sm:$0xff]
  %v46 = vld [vmem:[%s2 + $0x8] sm:$0xff]
  %v47 = vld [vmem:[%s3] sm:$0x1]
  %v48 = vperm.slane %v47, 0
  %vm51 = vcmask 1041409
  %v52 = vsel %vm51, %v44, %v43
  %v53 = vsel %vm24, %v52, 0
  %55 = vmatpush.msra.mxu0 0.0
  %56 = vmatpush.msra.mxu0 0.0
  %57 = vmatpush.msra.mxu0 0.0
  %58 = vmatpush.msra.mxu0 0.0
  %59 = vmatpush.msra.mxu0 0.0
  %60 = vmatpush.msra.mxu0 0.0
  %61 = vmatpush.msra.mxu0 0.0
  %62 = vmatpush.msra.mxu0 0.0
  %63 = vmatpush.msra.mxu0 0.0
  %64 = vmatpush.msra.mxu0 0.0
  %65 = vmatpush.msra.mxu0 0.0
  %66 = vmatpush.msra.mxu0 0.0
  %67 = vmatpush.msra.mxu0 0.0
  %68 = vmatpush.msra.mxu0 0.0
  %69 = vmatpush.msra.mxu0 %v46
  %70 = vmatpush.msra.mxu0 %v45
  %71 = vmatmul.f32.gmra.mxu0 %v53
  %v72 = vpop.f32.mrf.mxu0
  %v73 = vadd.f32 %v48, %v72
  %74 = vdwg.mxu0
  %v75 = vld [vmem:[%s0] sm:$0x3]
  %v76 = vld [vmem:[%s2 + $0x10] sm:$0xff]
  %v77 = vld [vmem:[%s2 + $0x18] sm:$0xff]
  %v78 = vld [vmem:[%s2 + $0x20] sm:$0xff]
  %v80 = vsel %vm24, %v73, 0
  %82 = vmatpush.msra.mxu0 0.0
  %83 = vmatpush.msra.mxu0 0.0
  %84 = vmatpush.msra.mxu0 0.0
  %85 = vmatpush.msra.mxu0 0.0
  %86 = vmatpush.msra.mxu0 0.0
  %87 = vmatpush.msra.mxu0 0.0
  %88 = vmatpush.msra.mxu0 0.0
  %89 = vmatpush.msra.mxu0 0.0
  %90 = vmatpush.msra.mxu0 0.0
  %91 = vmatpush.msra.mxu0 0.0
  %92 = vmatpush.msra.mxu0 0.0
  %93 = vmatpush.msra.mxu0 0.0
  %94 = vmatpush.msra.mxu0 0.0
  %95 = vmatpush.msra.mxu0 0.0
  %96 = vmatpush.msra.mxu0 %v78
  %97 = vmatpush.msra.mxu0 %v77
  %98 = vmatmul.f32.gmra.mxu0 %v80
  %v99 = vpop.f32.mrf.mxu0
  %v100 = vadd.f32 0.0, %v99
  %101 = vdwg.mxu0
  %vm102 = vcmask 64512
  %v104 = vsel %vm102, %v75, 0
  %106 = vmatpush.msra.mxu0 0.0
  %107 = vmatpush.msra.mxu0 0.0
  %108 = vmatpush.msra.mxu0 0.0
  %109 = vmatpush.msra.mxu0 0.0
  %110 = vmatpush.msra.mxu0 0.0
  %111 = vmatpush.msra.mxu0 0.0
  %112 = vmatpush.msra.mxu0 0.0
  %113 = vmatpush.msra.mxu0 0.0
  %114 = vmatpush.msra.mxu0 0.0
  %115 = vmatpush.msra.mxu0 0.0
  %116 = vmatpush.msra.mxu0 0.0
  %117 = vmatpush.msra.mxu0 0.0
  %118 = vmatpush.msra.mxu0 0.0
  %119 = vmatpush.msra.mxu0 0.0
  %120 = vmatpush.msra.mxu0 0.0
  %121 = vmatpush.msra.mxu0 %v76
  %122 = vmatmul.f32.gmra.mxu0 %v104
  %v123 = vpop.f32.mrf.mxu0
  %v124 = vadd.f32 %v100, %v123
  %125 = vdwg.mxu0
  %v126 = vld [vmem:[%s3 + $0x1] sm:$0x1]
  %v127 = vperm.slane %v126, 0
  %v128 = vadd.f32 %v124, %v127
  %v129 = vmax.f32 %v128, 0.0
  %v130 = vld [vmem:[%s2 + $0x28] sm:$0xff]
  %v131 = vld [vmem:[%s2 + $0x30] sm:$0xff]
  %v132 = vld [vmem:[%s2 + $0x38] sm:$0xff]
  %v133 = vld [vmem:[%s2 + $0x40] sm:$0xff]
  %v134 = vld [vmem:[%s3 + $0x2] sm:$0x1]
  %v135 = vperm.slane %v134, 0
  %vm136 = vcmask 261120
  %v138 = vsel %vm136, %v129, 0
  %140 = vmatpush.msra.mxu0 0.0
  %141 = vmatpush.msra.mxu0 0.0
  %142 = vmatpush.msra.mxu0 0.0
  %143 = vmatpush.msra.mxu0 0.0
  %144 = vmatpush.msra.mxu0 0.0
  %145 = vmatpush.msra.mxu0 0.0
  %146 = vmatpush.msra.mxu0 0.0
  %147 = vmatpush.msra.mxu0 0.0
  %148 = vmatpush.msra.mxu0 0.0
  %149 = vmatpush.msra.mxu0 0.0
  %150 = vmatpush.msra.mxu0 0.0
  %151 = vmatpush.msra.mxu0 0.0
  %152 = vmatpush.msra.mxu0 %v133
  %153 = vmatpush.msra.mxu0 %v132
  %154 = vmatpush.msra.mxu0 %v131
  %155 = vmatpush.msra.mxu0 %v130
  %156 = vmatmul.f32.gmra.mxu0 %v138
  %v157 = vpop.f32.mrf.mxu0
  %v158 = vadd.f32 %v135, %v157
  %159 = vdwg.mxu0
  %v160 = vmax.f32 %v158, 0.0
  %v161 = vld [vmem:[%s2 + $0x48] sm:$0xff]
  %v162 = vld [vmem:[%s2 + $0x50] sm:$0xff]
  %v163 = vld [vmem:[%s2 + $0x58] sm:$0xff]
  %v164 = vld [vmem:[%s2 + $0x60] sm:$0xff]
  %v165 = vld [vmem:[%s3 + $0x3] sm:$0x1]
  %v166 = vperm.slane %v165, 0
  %v168 = vsel %vm136, %v160, 0
  %170 = vmatpush.msra.mxu0 0.0
  %171 = vmatpush.msra.mxu0 0.0
  %172 = vmatpush.msra.mxu0 0.0
  %173 = vmatpush.msra.mxu0 0.0
  %174 = vmatpush.msra.mxu0 0.0
  %175 = vmatpush.msra.mxu0 0.0
  %176 = vmatpush.msra.mxu0 0.0
  %177 = vmatpush.msra.mxu0 0.0
  %178 = vmatpush.msra.mxu0 0.0
  %179 = vmatpush.msra.mxu0 0.0
  %180 = vmatpush.msra.mxu0 0.0
  %181 = vmatpush.msra.mxu0 0.0
  %182 = vmatpush.msra.mxu0 %v164
  %183 = vmatpush.msra.mxu0 %v163
  %184 = vmatpush.msra.mxu0 %v162
  %185 = vmatpush.msra.mxu0 %v161
  %186 = vmatmul.f32.gmra.mxu0 %v168
  %v187 = vpop.f32.mrf.mxu0
  %v188 = vadd.f32 %v166, %v187
  %189 = vdwg.mxu0
  %v190 = vadd.f32 %v128, %v188
  %v191 = vmax.f32 %v190, 0.0
  %v192 = vld [vmem:[%s2 + $0x68] sm:$0xff]
  %v193 = vld [vmem:[%s2 + $0x70] sm:$0xff]
  %v194 = vld [vmem:[%s2 + $0x78] sm:$0xff]
  %v195 = vld [vmem:[%s2 + $0x80] sm:$0xff]
  %v196 = vld [vmem:[%s3 + $0x4] sm:$0x1]
  %v197 = vperm.slane %v196, 0
  %v199 = vsel %vm136, %v191, 0
  %201 = vmatpush.msra.mxu0 0.0
  %202 = vmatpush.msra.mxu0 0.0
  %203 = vmatpush.msra.mxu0 0.0
  %204 = vmatpush.msra.mxu0 0.0
  %205 = vmatpush.msra.mxu0 0.0
  %206 = vmatpush.msra.mxu0 0.0
  %207 = vmatpush.msra.mxu0 0.0
  %208 = vmatpush.msra.mxu0 0.0
  %209 = vmatpush.msra.mxu0 0.0
  %210 = vmatpush.msra.mxu0 0.0
  %211 = vmatpush.msra.mxu0 0.0
  %212 = vmatpush.msra.mxu0 0.0
  %213 = vmatpush.msra.mxu0 %v195
  %214 = vmatpush.msra.mxu0 %v194
  %215 = vmatpush.msra.mxu0 %v193
  %216 = vmatpush.msra.mxu0 %v192
  %217 = vmatmul.f32.gmra.mxu0 %v199
  %v218 = vpop.f32.mrf.mxu0
  %v219 = vadd.f32 %v197, %v218
  %220 = vdwg.mxu0
  %v221 = vmax.f32 %v219, 0.0
  %v222 = vld [vmem:[%s2 + $0x88] sm:$0xff]
  %v223 = vld [vmem:[%s2 + $0x90] sm:$0xff]
  %v224 = vld [vmem:[%s2 + $0x98] sm:$0xff]
  %v225 = vld [vmem:[%s2 + $0xa0] sm:$0xff]
  %v226 = vld [vmem:[%s3 + $0x5] sm:$0x1]
  %v227 = vperm.slane %v226, 0
  %v229 = vsel %vm136, %v221, 0
  %231 = vmatpush.msra.mxu0 0.0
  %232 = vmatpush.msra.mxu0 0.0
  %233 = vmatpush.msra.mxu0 0.0
  %234 = vmatpush.msra.mxu0 0.0
  %235 = vmatpush.msra.mxu0 0.0
  %236 = vmatpush.msra.mxu0 0.0
  %237 = vmatpush.msra.mxu0 0.0
  %238 = vmatpush.msra.mxu0 0.0
  %239 = vmatpush.msra.mxu0 0.0
  %240 = vmatpush.msra.mxu0 0.0
  %241 = vmatpush.msra.mxu0 0.0
  %242 = vmatpush.msra.mxu0 0.0
  %243 = vmatpush.msra.mxu0 %v225
  %244 = vmatpush.msra.mxu0 %v224
  %245 = vmatpush.msra.mxu0 %v223
  %246 = vmatpush.msra.mxu0 %v222
  %247 = vmatmul.f32.gmra.mxu0 %v229
  %v248 = vpop.f32.mrf.mxu0
  %v249 = vadd.f32 %v227, %v248
  %250 = vdwg.mxu0
  %v251 = vadd.f32 %v190, %v249
  %v252 = vmax.f32 %v251, 0.0
  %v253 = vld [vmem:[%s4] sm:$0xff]
  %v254 = vld [vmem:[%s4 + $0x8] sm:$0xff]
  %v255 = vld [vmem:[%s4 + $0x10] sm:$0xff]
  %v256 = vld [vmem:[%s4 + $0x18] sm:$0xff]
  %v257 = vld [vmem:[%s4 + $0x20] sm:$0x1]
  %v258 = vperm.slane %v257, 0
  %v260 = vsel %vm136, %v252, 0
  %262 = vmatpush.msra.mxu0 0.0
  %263 = vmatpush.msra.mxu0 0.0
  %264 = vmatpush.msra.mxu0 0.0
  %265 = vmatpush.msra.mxu0 0.0
  %266 = vmatpush.msra.mxu0 0.0
  %267 = vmatpush.msra.mxu0 0.0
  %268 = vmatpush.msra.mxu0 0.0
  %269 = vmatpush.msra.mxu0 0.0
  %270 = vmatpush.msra.mxu0 0.0
  %271 = vmatpush.msra.mxu0 0.0
  %272 = vmatpush.msra.mxu0 0.0
  %273 = vmatpush.msra.mxu0 0.0
  %274 = vmatpush.msra.mxu0 %v256
  %275 = vmatpush.msra.mxu0 %v255
  %276 = vmatpush.msra.mxu0 %v254
  %277 = vmatpush.msra.mxu0 %v253
  %278 = vmatmul.f32.gmra.mxu0 %v260
  %v279 = vpop.f32.mrf.mxu0
  %v280 = vadd.f32 %v258, %v279
  %281 = vdwg.mxu0
  %v282 = vmax.f32 %v280, 0.0
  %v283 = vand.u32 2147483647, %v280
  %v284 = vsub.f32 0.0, %v283
  %v285 = vmul.f32 %v284, 1.442695
  %v286 = vpow.pop %v285
  %v287 = vadd.f32 %v286, 1.0
  %v288 = vlog2.pop %v287
  %v289 = vmul.f32 %v288, 0.6931472
  %v290 = vadd.f32 %v282, %v289
  %v291 = vadd.f32 %v290, 0.001
  %v292 = vrcp.pop %v291
  %v293 = vmul.f32 %v291, %v292
  %v294 = vsub.f32 1.0, %v293
  %v295 = vmul.f32 %v292, %v294
  %v296 = vadd.f32 %v292, %v295
  %vm297 = vweird.f32 %v291
  %vm298 = vweird.f32 %v292
  %vm299 = vmor %vm297, %vm298
  %v300 = vsel %vm299, %v292, %v296
  %v301 = vand.u32 2147483647, %v291
  %vm302 = vcmp.eq.f32.partialorder %v301, 8.507059e+37
  %v303 = vand.u32 %v291, 2147483648
  %v304 = vor.u32 1.1754944e-38, %v303
  %v305 = vsel %vm302, %v304, %v300
  %v306 = vlog2.pop %v291
  %v307 = vmul.f32 %v306, 0.6931472
  %309 = vrot.lane.b32.xlu0 %v280, 96
  %v310 = vpop.permute.xlu0 %309
  %v312 = vsub.f32 %v75, %v310
  %314 = vrot.lane.b32.xlu0 %v305, 64
  %v315 = vpop.permute.xlu0 %314
  %v317 = vmul.f32 %v312, %v315
  %v318 = vmul.f32 %v317, 0.5
  %v319 = vmul.f32 %v318, %v317
  %v320 = vsub.f32 %v280, %v319
  %322 = vrot.lane.b32.xlu0 %v307, 64
  %v323 = vpop.permute.xlu0 %322
  %v325 = vsub.f32 %v320, %v323
  %v326 = vsub.f32 %v325, 0.9189385
  %327 = vrot.lane.b32.xlu0 %v280, 88
  %v328 = vpop.permute.xlu0 %327
  %v330 = vsub.f32 %v75, %v328
  %331 = vrot.lane.b32.xlu0 %v305, 56
  %v332 = vpop.permute.xlu0 %331
  %v334 = vmul.f32 %v330, %v332
  %v335 = vmul.f32 %v334, 0.5
  %v336 = vmul.f32 %v335, %v334
  %338 = vrot.lane.b32.xlu0 %v336, 8
  %v339 = vpop.permute.xlu0 %338
  %v341 = vsub.f32 %v280, %v339
  %v342 = vsub.f32 %v341, %v323
  %v343 = vsub.f32 %v342, 0.9189385
  %344 = vrot.lane.b32.xlu0 %v280, 80
  %v345 = vpop.permute.xlu0 %344
  %v347 = vsub.f32 %v75, %v345
  %348 = vrot.lane.b32.xlu0 %v305, 48
  %v349 = vpop.permute.xlu0 %348
  %v351 = vmul.f32 %v347, %v349
  %v352 = vmul.f32 %v351, 0.5
  %v353 = vmul.f32 %v352, %v351
  %355 = vrot.lane.b32.xlu0 %v353, 16
  %v356 = vpop.permute.xlu0 %355
  %v358 = vsub.f32 %v280, %v356
  %v359 = vsub.f32 %v358, %v323
  %v360 = vsub.f32 %v359, 0.9189385
  %361 = vrot.lane.b32.xlu0 %v280, 72
  %v362 = vpop.permute.xlu0 %361
  %v364 = vsub.f32 %v75, %v362
  %365 = vrot.lane.b32.xlu0 %v305, 40
  %v366 = vpop.permute.xlu0 %365
  %v368 = vmul.f32 %v364, %v366
  %v369 = vmul.f32 %v368, 0.5
  %v370 = vmul.f32 %v369, %v368
  %372 = vrot.lane.b32.xlu0 %v370, 24
  %v373 = vpop.permute.xlu0 %372
  %v375 = vsub.f32 %v280, %v373
  %v376 = vsub.f32 %v375, %v323
  %v377 = vsub.f32 %v376, 0.9189385
  %378 = vrot.lane.b32.xlu0 %v280, 120
  %v379 = vpop.permute.xlu0 %378
  %v381 = vmax.f32 %v280, %v379
  %383 = vrot.lane.b32.xlu0 %v343, 120
  %v384 = vpop.permute.xlu0 %383
  %v386 = vmax.f32 %v326, %v384
  %387 = vrot.lane.b32.xlu0 %v280, 112
  %v388 = vpop.permute.xlu0 %387
  %v390 = vmax.f32 %v381, %v388
  %392 = vrot.lane.b32.xlu0 %v360, 112
  %v393 = vpop.permute.xlu0 %392
  %v395 = vmax.f32 %v386, %v393
  %396 = vrot.lane.b32.xlu0 %v280, 104
  %v397 = vpop.permute.xlu0 %396
  %v399 = vmax.f32 %v390, %v397
  %401 = vrot.lane.b32.xlu0 %v377, 104
  %v402 = vpop.permute.xlu0 %401
  %v404 = vmax.f32 %v395, %v402
  %v405 = vsub.f32 %v280, %v399
  %v406 = vmul.f32 %v405, 1.442695
  %v407 = vpow.pop %v406
  %v408 = vadd.f32 %v407, 0.0
  %v409 = vsub.f32 %v326, %v404
  %v410 = vmul.f32 %v409, 1.442695
  %v411 = vpow.pop %v410
  %v412 = vadd.f32 %v411, 0.0
  %414 = vrot.lane.b32.xlu0 %v399, 8
  %v415 = vpop.permute.xlu0 %414
  %v417 = vsub.f32 %v280, %v415
  %v418 = vmul.f32 %v417, 1.442695
  %v419 = vpow.pop %v418
  %421 = vrot.lane.b32.xlu0 %v419, 120
  %v422 = vpop.permute.xlu0 %421
  %v424 = vadd.f32 %v408, %v422
  %426 = vrot.lane.b32.xlu0 %v404, 8
  %v427 = vpop.permute.xlu0 %426
  %v429 = vsub.f32 %v343, %v427
  %v430 = vmul.f32 %v429, 1.442695
  %v431 = vpow.pop %v430
  %433 = vrot.lane.b32.xlu0 %v431, 120
  %v434 = vpop.permute.xlu0 %433
  %v436 = vadd.f32 %v412, %v434
  %437 = vrot.lane.b32.xlu0 %v399, 16
  %v438 = vpop.permute.xlu0 %437
  %v440 = vsub.f32 %v280, %v438
  %v441 = vmul.f32 %v440, 1.442695
  %v442 = vpow.pop %v441
  %444 = vrot.lane.b32.xlu0 %v442, 112
  %v445 = vpop.permute.xlu0 %444
  %v447 = vadd.f32 %v424, %v445
  %448 = vrot.lane.b32.xlu0 %v404, 16
  %v449 = vpop.permute.xlu0 %448
  %v451 = vsub.f32 %v360, %v449
  %v452 = vmul.f32 %v451, 1.442695
  %v453 = vpow.pop %v452
  %455 = vrot.lane.b32.xlu0 %v453, 112
  %v456 = vpop.permute.xlu0 %455
  %v458 = vadd.f32 %v436, %v456
  %459 = vrot.lane.b32.xlu0 %v399, 24
  %v460 = vpop.permute.xlu0 %459
  %v462 = vsub.f32 %v280, %v460
  %v463 = vmul.f32 %v462, 1.442695
  %v464 = vpow.pop %v463
  %466 = vrot.lane.b32.xlu0 %v464, 104
  %v467 = vpop.permute.xlu0 %466
  %v469 = vadd.f32 %v447, %v467
  %470 = vrot.lane.b32.xlu0 %v404, 24
  %v471 = vpop.permute.xlu0 %470
  %v473 = vsub.f32 %v377, %v471
  %v474 = vmul.f32 %v473, 1.442695
  %v475 = vpow.pop %v474
  %477 = vrot.lane.b32.xlu0 %v475, 104
  %v478 = vpop.permute.xlu0 %477
  %v480 = vadd.f32 %v458, %v478
  %v481 = vlog2.pop %v480
  %v482 = vmul.f32 %v481, 0.6931472
  %v483 = vadd.f32 %v404, %v482
  %v484 = vlog2.pop %v469
  %v485 = vmul.f32 %v484, 0.6931472
  %v486 = vadd.f32 %v399, %v485
  %v487 = vsub.f32 %v483, %v486
  %vm488 = vcmask 58368
  %v489 = vsel %vm488, %v487, 0.0
  %490 = vadd.xlane.f32.xlu0 %v489
  %v491 = vpop.xlane.xlu0 %490
  %vm492 = vcmask 1024
  %493 = vst.msk [vmem:[%s5] sm:$0x3] %vm492, %v491
  // Predicated region
  $region22: #{dose_forward.5} parent=0 // pred_check
    _
  $region23: #{dose_forward.5} parent=0 // pred_check_branch
    %495 = sbr.rel (0) target = $region25
  $region24: #{dose_forward.5} parent=0 // pred_region
    _
  $region25: #{dose_forward.5} parent=0 // pred_fallthru
    _
  // Predicated region
  $region26: #{dose_forward.5} parent=0 // pred_check
    _
  $region27: #{dose_forward.5} parent=0 // pred_check_branch
    %497 = sbr.rel (0) target = $region29
  $region28: #{dose_forward.5} parent=0 // pred_region
    _
  $region29: #{dose_forward.5} parent=0 // pred_fallthru
    _

</llo_original>
